<compile_context>
chip_gen: v6e
topology: v6e:2x2x1
jax: 0.10.0
libtpu: 0.0.40
codegen_flags: <defaults>
</compile_context>

<pallas_src>
import jax
import jax.numpy as jnp
from jax.experimental import pallas as pl
from jax.experimental.pallas import tpu as pltpu

LANE = 128


def _round_up(x, m):
    return ((x + m - 1) // m) * m


def _pad_to(a, shape):
    return jnp.pad(a, [(0, t - s) for s, t in zip(a.shape, shape)])


def btcnn_pool_kernel(e_ref, x_ref, w1_ref, b1_ref, w2_ref, b2_ref, pool_ref):
    """Two BinaryTreeConv+ReLU layers + adaptive max-pool for a block of TB trees.

    e_ref:    (1, TB*N, 3) int32  flattened (self,left,right) node ids, offset by
                                  tree_id*N in the wrapper; -1 marks the null node
    x_ref:    (1, TB*N, C)  bf16  node features at TRUE channel width
    w*_ref:   (3, Cin, Cout) bf16 conv weights per tap
    b*_ref:   (1, Cout)      f32  conv bias
    pool_ref: (TB, H2P)      f32  per-tree max-pooled features (lane-dense tile)
    """
    _, TBN, _ = e_ref.shape
    TB, H2P = pool_ref.shape
    N = TBN // TB

    # Block-diagonal one-hot gather matrices: built ONCE per grid step, reused
    # by both conv layers. Null sources were remapped to -1 in the wrapper so
    # they never match the iota -> gathers from the null node are exact zeros.
    idx = e_ref[0]                                               # (TBN, 3) int32
    col = jax.lax.broadcasted_iota(jnp.int32, (1, TBN), 1)       # (1, TBN)
    gmats = [(idx[:, j:j + 1] == col).astype(jnp.bfloat16) for j in range(3)]

    def tree_conv(h_flat, w_ref, b_ref):
        # h_flat: (TBN, Cin) bf16. Per tap: one (TBN,TBN)@(TBN,Cin) gather on
        # the MXU, then a (TBN,Cin)@(Cin,Cout) weight matmul at the TRUE input
        # width, accumulated in f32 (no zero-padded K, no concat slab).
        cout = w_ref.shape[-1]
        acc = jnp.zeros((TBN, cout), jnp.float32)
        for j in range(3):
            tap = jnp.dot(gmats[j], h_flat,
                          preferred_element_type=jnp.float32)    # exact row select
            acc = acc + jnp.dot(tap.astype(jnp.bfloat16), w_ref[j],
                                preferred_element_type=jnp.float32)
        return jnp.maximum(acc + b_ref[...], 0.0)                # bias + ReLU, f32

    h1 = tree_conv(x_ref[0], w1_ref, b1_ref).astype(jnp.bfloat16)  # bf16 hop
    h2 = tree_conv(h1, w2_ref, b2_ref)                           # (TBN, H2P) f32

    # Zero the per-tree null node (node 0) before pooling, then max over nodes.
    h2 = h2.reshape(TB, N, H2P)
    node_id = jax.lax.broadcasted_iota(jnp.int32, (TB, N, 1), 1)
    h2 = jnp.where(node_id != 0, h2, 0.0)
    pool_ref[...] = jnp.max(h2, axis=1)                          # adaptive max-pool


def binary_tree_regressor(vertices, edges, params, *, tree_block=8):
    """vertices: (B, C_in, N) f32, edges: (B, N, 3) int32 -> (B, 1) f32."""
    B, C, N = vertices.shape
    H1 = params["w1"].shape[-1]
    H2 = params["w2"].shape[-1]
    H2P = _round_up(H2, LANE)                     # lane-dense pooled output

    # Keep grid >= 2 where possible (v7x has 2 TensorCores); raise tree_block
    # for large batches to amortize the ~0.35us per-grid-step overhead.
    TB = min(tree_block, max(1, B // 2))
    BP = _round_up(B, TB)
    G = BP // TB
    TBN = TB * N

    # Node-major features at true channel width (bf16 for the MXU), grouped
    # into blocks of TB trees -> (G, TB*N, C).
    x = jnp.transpose(vertices, (0, 2, 1))                       # (B, N, C)
    x = _pad_to(x, (BP, N, C)).astype(jnp.bfloat16).reshape(G, TBN, C)

    # Edge ids flattened into block-local node ids (tree-local id + tree*N).
    # The null node (id 0) is redirected to -1 so its one-hot row is all-zero.
    e = _pad_to(edges.astype(jnp.int32), (BP, N, 3))
    local_off = (jnp.arange(BP, dtype=jnp.int32) % TB)[:, None, None] * N
    e = jnp.where(e == 0, -1, e + local_off).reshape(G, TBN, 3)

    # Conv weights per tap at true input width; only the final output dim is
    # padded to 128 lanes for the lane-dense pooled tile. bf16 weights, f32 bias.
    w1 = params["w1"].astype(jnp.bfloat16)                       # (3, C, H1)
    b1 = params["b1"].astype(jnp.float32)                        # (1, H1)
    w2 = _pad_to(params["w2"], (3, H1, H2P)).astype(jnp.bfloat16)
    b2 = _pad_to(params["b2"], (1, H2P)).astype(jnp.float32)

    # Rough per-step VMEM need: double-buffered tiles + resident one-hots + f32
    # accumulators; generous 4x headroom, capped under v7x's 64 MiB physical.
    vmem_bytes = (
        2 * (TBN * 3 * 4 + TBN * C * 2 + TB * H2P * 4
             + 3 * C * H1 * 2 + H1 * 4 + 3 * H1 * H2P * 2 + H2P * 4)
        + 3 * TBN * TBN * 2                     # one-hot gather matrices (bf16)
        + TBN * (H1 + H2P) * 4                  # f32 layer accumulators
        + TBN * max(C, H1) * 6                  # gathered tap scratch
    )
    vmem_limit = int(min(64 * 1024 * 1024, max(4 * vmem_bytes, 32 * 1024 * 1024)))

    pooled = pl.pallas_call(
        btcnn_pool_kernel,
        out_shape=jax.ShapeDtypeStruct((BP, H2P), jnp.float32),
        grid=(G,),
        in_specs=[
            pl.BlockSpec((1, TBN, 3), lambda g: (g, 0, 0)),      # edges
            pl.BlockSpec((1, TBN, C), lambda g: (g, 0, 0)),      # vertex features
            pl.BlockSpec((3, C, H1), lambda g: (0, 0, 0)),       # tree-conv 1 weight
            pl.BlockSpec((1, H1), lambda g: (0, 0)),             # tree-conv 1 bias
            pl.BlockSpec((3, H1, H2P), lambda g: (0, 0, 0)),     # tree-conv 2 weight
            pl.BlockSpec((1, H2P), lambda g: (0, 0)),            # tree-conv 2 bias
        ],
        out_specs=pl.BlockSpec((TB, H2P), lambda g: (g, 0)),     # lane-dense tile
        compiler_params=pltpu.CompilerParams(
            dimension_semantics=("parallel",),
            vmem_limit_bytes=vmem_limit),
    )(e, x, w1, b1, w2, b2)

    pooled = pooled[:B, :H2]                                     # drop batch/lane pad
    # fcnn head: (B,H2)@(H2,F)@(F,1) — near-free as plain XLA f32 matmuls.
    f1 = jax.nn.relu(pooled @ params["wf1"] + params["bf1"])
    return f1 @ params["wf2"] + params["bf2"]                    # (B, 1)


def reference_forward(vertices, edges, p):
    """Pure-JAX f32 reference with identical semantics (for correctness check)."""
    x = jnp.transpose(vertices, (0, 2, 1))                       # (B, N, C)
    not_null = (jnp.arange(x.shape[1]) != 0)[None, :, None]

    def tree_conv(h, w, b):
        h = jnp.where(not_null, h, 0.0)                          # zero null-node row
        acc = 0.0
        for j in range(3):
            g = jnp.take_along_axis(h, edges[:, :, j:j + 1], axis=1)
            acc = acc + jnp.einsum("bnc,ch->bnh", g, w[j])
        return jax.nn.relu(acc + b)

    h1 = tree_conv(x, p["w1"], p["b1"])
    h2 = tree_conv(h1, p["w2"], p["b2"])
    h2 = jnp.where(not_null, h2, 0.0)                            # fresh zero null node
    pooled = jnp.max(h2, axis=1)                                 # (B, H2)
    f1 = jax.nn.relu(pooled @ p["wf1"] + p["bf1"])
    return f1 @ p["wf2"] + p["bf2"]                              # (B, 1)


def make_params(key, C_in, H1, H2, F):
    ks = jax.random.split(key, 8)
    scale = lambda fan_in: 1.0 / jnp.sqrt(jnp.float32(fan_in))
    return {
        "w1": jax.random.normal(ks[0], (3, C_in, H1), jnp.float32) * scale(3 * C_in),
        "b1": jax.random.normal(ks[1], (1, H1), jnp.float32) * 0.1,
        "w2": jax.random.normal(ks[2], (3, H1, H2), jnp.float32) * scale(3 * H1),
        "b2": jax.random.normal(ks[3], (1, H2), jnp.float32) * 0.1,
        "wf1": jax.random.normal(ks[4], (H2, F), jnp.float32) * scale(H2),
        "bf1": jax.random.normal(ks[5], (1, F), jnp.float32) * 0.1,
        "wf2": jax.random.normal(ks[6], (F, 1), jnp.float32) * scale(F),
        "bf2": jax.random.normal(ks[7], (1, 1), jnp.float32) * 0.1,
    }


def make_tree_edges(B, N):
    # Node 0 is the "null" (zero-feature) node; nodes 1..N-1 form a binary heap.
    rows = []
    for i in range(N):
        if i == 0:
            rows.append((0, 0, 0))
        else:
            left = 2 * i if 2 * i < N else 0
            right = 2 * i + 1 if 2 * i + 1 < N else 0
            rows.append((i, left, right))
    e = jnp.array(rows, dtype=jnp.int32)                         # (N, 3)
    return jnp.broadcast_to(e[None], (B, N, 3))


if __name__ == "__main__":
    B, C_in, N = 16, 8, 32
    H1, H2, F = 32, 64, 32

    key = jax.random.PRNGKey(0)
    k_x, k_p = jax.random.split(key)

    vertices = jax.random.normal(k_x, (B, C_in, N), jnp.float32)
    vertices = vertices.at[:, :, 0].set(0.0)                     # null node zero feats
    edges = make_tree_edges(B, N)
    params = make_params(k_p, C_in, H1, H2, F)

    out = jax.block_until_ready(binary_tree_regressor(vertices, edges, params))
    ref = jax.block_until_ready(reference_forward(vertices, edges, params))

    assert out.shape == (B, 1), out.shape
    # Kernel runs bf16 matmuls with f32 accumulation; reference is pure f32.
    assert jnp.allclose(out, ref, rtol=2e-2, atol=2e-2), (out, ref)
    print("KERNEL_OK")
</pallas_src>

<mosaic_0001>
module attributes {stable_mosaic.version = 11 : i64} {
  func.func @btcnn_pool_kernel(%arg0: i32, %arg1: memref<1x256x3xi32, #tpu.memory_space<vmem>>, %arg2: memref<1x256x8xbf16, #tpu.memory_space<vmem>>, %arg3: memref<3x8x32xbf16, #tpu.memory_space<vmem>>, %arg4: memref<1x32xf32, #tpu.memory_space<vmem>>, %arg5: memref<3x32x128xbf16, #tpu.memory_space<vmem>>, %arg6: memref<1x128xf32, #tpu.memory_space<vmem>>, %arg7: memref<8x128xf32, #tpu.memory_space<vmem>>) attributes {dimension_semantics = [#tpu.dimension_semantics<parallel>], iteration_bounds = array<i64: 2>, scalar_prefetch = 0 : i64, scratch_operands = 0 : i64, tpu.core_type = #tpu.core_type<tc>, window_params = [{transform_indices = @transform_0, window_bounds = array<i64: 1, 256, 3>}, {transform_indices = @transform_1, window_bounds = array<i64: 1, 256, 8>}, {pipeline_mode = #tpu.pipeline_mode<synchronous>, transform_indices = @transform_2, window_bounds = array<i64: 3, 8, 32>}, {pipeline_mode = #tpu.pipeline_mode<synchronous>, transform_indices = @transform_3, window_bounds = array<i64: 1, 32>}, {pipeline_mode = #tpu.pipeline_mode<synchronous>, transform_indices = @transform_4, window_bounds = array<i64: 3, 32, 128>}, {pipeline_mode = #tpu.pipeline_mode<synchronous>, transform_indices = @transform_5, window_bounds = array<i64: 1, 128>}, {transform_indices = @transform_6, window_bounds = array<i64: 8, 128>}]} {
    %c0 = arith.constant 0 : index
    %c0_0 = arith.constant 0 : index
    %c0_1 = arith.constant 0 : index
    %0 = vector.load %arg1[%c0, %c0_0, %c0_1] : memref<1x256x3xi32, #tpu.memory_space<vmem>>, vector<1x256x3xi32>
    %1 = vector.shape_cast %0 : vector<1x256x3xi32> to vector<256x3xi32>
    %2 = tpu.iota {dimensions = array<i32: 1>} : vector<1x256xi32>
    %3 = vector.extract_strided_slice %1 {offsets = [0, 0], sizes = [256, 1], strides = [1, 1]} : vector<256x3xi32> to vector<256x1xi32>
    %4 = vector.broadcast %3 : vector<256x1xi32> to vector<256x256xi32>
    %5 = vector.broadcast %2 : vector<1x256xi32> to vector<256x256xi32>
    %6 = arith.cmpi eq, %4, %5 : vector<256x256xi32>
    %7 = arith.extui %6 : vector<256x256xi1> to vector<256x256xi32>
    %8 = arith.sitofp %7 : vector<256x256xi32> to vector<256x256xf32>
    %9 = arith.truncf %8 : vector<256x256xf32> to vector<256x256xbf16>
    %10 = vector.extract_strided_slice %1 {offsets = [0, 1], sizes = [256, 1], strides = [1, 1]} : vector<256x3xi32> to vector<256x1xi32>
    %11 = vector.broadcast %10 : vector<256x1xi32> to vector<256x256xi32>
    %12 = vector.broadcast %2 : vector<1x256xi32> to vector<256x256xi32>
    %13 = arith.cmpi eq, %11, %12 : vector<256x256xi32>
    %14 = arith.extui %13 : vector<256x256xi1> to vector<256x256xi32>
    %15 = arith.sitofp %14 : vector<256x256xi32> to vector<256x256xf32>
    %16 = arith.truncf %15 : vector<256x256xf32> to vector<256x256xbf16>
    %17 = vector.extract_strided_slice %1 {offsets = [0, 2], sizes = [256, 1], strides = [1, 1]} : vector<256x3xi32> to vector<256x1xi32>
    %18 = vector.broadcast %17 : vector<256x1xi32> to vector<256x256xi32>
    %19 = vector.broadcast %2 : vector<1x256xi32> to vector<256x256xi32>
    %20 = arith.cmpi eq, %18, %19 : vector<256x256xi32>
    %21 = arith.extui %20 : vector<256x256xi1> to vector<256x256xi32>
    %22 = arith.sitofp %21 : vector<256x256xi32> to vector<256x256xf32>
    %23 = arith.truncf %22 : vector<256x256xf32> to vector<256x256xbf16>
    %c0_2 = arith.constant 0 : index
    %c0_3 = arith.constant 0 : index
    %c0_4 = arith.constant 0 : index
    %24 = vector.load %arg2[%c0_2, %c0_3, %c0_4] : memref<1x256x8xbf16, #tpu.memory_space<vmem>>, vector<1x256x8xbf16>
    %25 = vector.shape_cast %24 : vector<1x256x8xbf16> to vector<256x8xbf16>
    %cst = arith.constant 0.000000e+00 : f32
    %26 = vector.broadcast %cst : f32 to vector<256x32xf32>
    %cst_5 = arith.constant dense<0.000000e+00> : vector<256x8xf32>
    %27 = tpu.matmul %9, %25, %cst_5 {dimension_numbers = #tpu.dot_dimension_numbers<[1], [0], [0], [1], [0, 0, 1, 1], [], []>} : vector<256x256xbf16>, vector<256x8xbf16>, vector<256x8xf32> -> vector<256x8xf32>
    %28 = arith.truncf %27 : vector<256x8xf32> to vector<256x8xbf16>
    %c0_6 = arith.constant 0 : index
    %c0_7 = arith.constant 0 : index
    %c0_8 = arith.constant 0 : index
    %29 = vector.load %arg3[%c0_6, %c0_7, %c0_8] : memref<3x8x32xbf16, #tpu.memory_space<vmem>>, vector<1x8x32xbf16>
    %30 = vector.shape_cast %29 : vector<1x8x32xbf16> to vector<8x32xbf16>
    %cst_9 = arith.constant dense<0.000000e+00> : vector<256x32xf32>
    %31 = tpu.matmul %28, %30, %cst_9 {dimension_numbers = #tpu.dot_dimension_numbers<[1], [0], [0], [1], [0, 0, 1, 1], [], []>} : vector<256x8xbf16>, vector<8x32xbf16>, vector<256x32xf32> -> vector<256x32xf32>
    %32 = arith.addf %26, %31 : vector<256x32xf32>
    %cst_10 = arith.constant dense<0.000000e+00> : vector<256x8xf32>
    %33 = tpu.matmul %16, %25, %cst_10 {dimension_numbers = #tpu.dot_dimension_numbers<[1], [0], [0], [1], [0, 0, 1, 1], [], []>} : vector<256x256xbf16>, vector<256x8xbf16>, vector<256x8xf32> -> vector<256x8xf32>
    %34 = arith.truncf %33 : vector<256x8xf32> to vector<256x8xbf16>
    %c1 = arith.constant 1 : index
    %c0_11 = arith.constant 0 : index
    %c0_12 = arith.constant 0 : index
    %35 = vector.load %arg3[%c1, %c0_11, %c0_12] : memref<3x8x32xbf16, #tpu.memory_space<vmem>>, vector<1x8x32xbf16>
    %36 = vector.shape_cast %35 : vector<1x8x32xbf16> to vector<8x32xbf16>
    %cst_13 = arith.constant dense<0.000000e+00> : vector<256x32xf32>
    %37 = tpu.matmul %34, %36, %cst_13 {dimension_numbers = #tpu.dot_dimension_numbers<[1], [0], [0], [1], [0, 0, 1, 1], [], []>} : vector<256x8xbf16>, vector<8x32xbf16>, vector<256x32xf32> -> vector<256x32xf32>
    %38 = arith.addf %32, %37 : vector<256x32xf32>
    %cst_14 = arith.constant dense<0.000000e+00> : vector<256x8xf32>
    %39 = tpu.matmul %23, %25, %cst_14 {dimension_numbers = #tpu.dot_dimension_numbers<[1], [0], [0], [1], [0, 0, 1, 1], [], []>} : vector<256x256xbf16>, vector<256x8xbf16>, vector<256x8xf32> -> vector<256x8xf32>
    %40 = arith.truncf %39 : vector<256x8xf32> to vector<256x8xbf16>
    %c2 = arith.constant 2 : index
    %c0_15 = arith.constant 0 : index
    %c0_16 = arith.constant 0 : index
    %41 = vector.load %arg3[%c2, %c0_15, %c0_16] : memref<3x8x32xbf16, #tpu.memory_space<vmem>>, vector<1x8x32xbf16>
    %42 = vector.shape_cast %41 : vector<1x8x32xbf16> to vector<8x32xbf16>
    %cst_17 = arith.constant dense<0.000000e+00> : vector<256x32xf32>
    %43 = tpu.matmul %40, %42, %cst_17 {dimension_numbers = #tpu.dot_dimension_numbers<[1], [0], [0], [1], [0, 0, 1, 1], [], []>} : vector<256x8xbf16>, vector<8x32xbf16>, vector<256x32xf32> -> vector<256x32xf32>
    %44 = arith.addf %38, %43 : vector<256x32xf32>
    %c0_18 = arith.constant 0 : index
    %c0_19 = arith.constant 0 : index
    %45 = vector.load %arg4[%c0_18, %c0_19] : memref<1x32xf32, #tpu.memory_space<vmem>>, vector<1x32xf32>
    %46 = vector.broadcast %45 : vector<1x32xf32> to vector<256x32xf32>
    %47 = arith.addf %44, %46 : vector<256x32xf32>
    %cst_20 = arith.constant 0.000000e+00 : f32
    %48 = vector.broadcast %cst_20 : f32 to vector<256x32xf32>
    %49 = arith.maximumf %47, %48 : vector<256x32xf32>
    %50 = arith.truncf %49 : vector<256x32xf32> to vector<256x32xbf16>
    %cst_21 = arith.constant 0.000000e+00 : f32
    %51 = vector.broadcast %cst_21 : f32 to vector<256x128xf32>
    %cst_22 = arith.constant dense<0.000000e+00> : vector<256x32xf32>
    %52 = tpu.matmul %9, %50, %cst_22 {dimension_numbers = #tpu.dot_dimension_numbers<[1], [0], [0], [1], [0, 0, 1, 1], [], []>} : vector<256x256xbf16>, vector<256x32xbf16>, vector<256x32xf32> -> vector<256x32xf32>
    %53 = arith.truncf %52 : vector<256x32xf32> to vector<256x32xbf16>
    %c0_23 = arith.constant 0 : index
    %c0_24 = arith.constant 0 : index
    %c0_25 = arith.constant 0 : index
    %54 = vector.load %arg5[%c0_23, %c0_24, %c0_25] : memref<3x32x128xbf16, #tpu.memory_space<vmem>>, vector<1x32x128xbf16>
    %55 = vector.shape_cast %54 : vector<1x32x128xbf16> to vector<32x128xbf16>
    %cst_26 = arith.constant dense<0.000000e+00> : vector<256x128xf32>
    %56 = tpu.matmul %53, %55, %cst_26 {dimension_numbers = #tpu.dot_dimension_numbers<[1], [0], [0], [1], [0, 0, 1, 1], [], []>} : vector<256x32xbf16>, vector<32x128xbf16>, vector<256x128xf32> -> vector<256x128xf32>
    %57 = arith.addf %51, %56 : vector<256x128xf32>
    %cst_27 = arith.constant dense<0.000000e+00> : vector<256x32xf32>
    %58 = tpu.matmul %16, %50, %cst_27 {dimension_numbers = #tpu.dot_dimension_numbers<[1], [0], [0], [1], [0, 0, 1, 1], [], []>} : vector<256x256xbf16>, vector<256x32xbf16>, vector<256x32xf32> -> vector<256x32xf32>
    %59 = arith.truncf %58 : vector<256x32xf32> to vector<256x32xbf16>
    %c1_28 = arith.constant 1 : index
    %c0_29 = arith.constant 0 : index
    %c0_30 = arith.constant 0 : index
    %60 = vector.load %arg5[%c1_28, %c0_29, %c0_30] : memref<3x32x128xbf16, #tpu.memory_space<vmem>>, vector<1x32x128xbf16>
    %61 = vector.shape_cast %60 : vector<1x32x128xbf16> to vector<32x128xbf16>
    %cst_31 = arith.constant dense<0.000000e+00> : vector<256x128xf32>
    %62 = tpu.matmul %59, %61, %cst_31 {dimension_numbers = #tpu.dot_dimension_numbers<[1], [0], [0], [1], [0, 0, 1, 1], [], []>} : vector<256x32xbf16>, vector<32x128xbf16>, vector<256x128xf32> -> vector<256x128xf32>
    %63 = arith.addf %57, %62 : vector<256x128xf32>
    %cst_32 = arith.constant dense<0.000000e+00> : vector<256x32xf32>
    %64 = tpu.matmul %23, %50, %cst_32 {dimension_numbers = #tpu.dot_dimension_numbers<[1], [0], [0], [1], [0, 0, 1, 1], [], []>} : vector<256x256xbf16>, vector<256x32xbf16>, vector<256x32xf32> -> vector<256x32xf32>
    %65 = arith.truncf %64 : vector<256x32xf32> to vector<256x32xbf16>
    %c2_33 = arith.constant 2 : index
    %c0_34 = arith.constant 0 : index
    %c0_35 = arith.constant 0 : index
    %66 = vector.load %arg5[%c2_33, %c0_34, %c0_35] : memref<3x32x128xbf16, #tpu.memory_space<vmem>>, vector<1x32x128xbf16>
    %67 = vector.shape_cast %66 : vector<1x32x128xbf16> to vector<32x128xbf16>
    %cst_36 = arith.constant dense<0.000000e+00> : vector<256x128xf32>
    %68 = tpu.matmul %65, %67, %cst_36 {dimension_numbers = #tpu.dot_dimension_numbers<[1], [0], [0], [1], [0, 0, 1, 1], [], []>} : vector<256x32xbf16>, vector<32x128xbf16>, vector<256x128xf32> -> vector<256x128xf32>
    %69 = arith.addf %63, %68 : vector<256x128xf32>
    %c0_37 = arith.constant 0 : index
    %c0_38 = arith.constant 0 : index
    %70 = vector.load %arg6[%c0_37, %c0_38] : memref<1x128xf32, #tpu.memory_space<vmem>>, vector<1x128xf32>
    %71 = vector.broadcast %70 : vector<1x128xf32> to vector<256x128xf32>
    %72 = arith.addf %69, %71 : vector<256x128xf32>
    %cst_39 = arith.constant 0.000000e+00 : f32
    %73 = vector.broadcast %cst_39 : f32 to vector<256x128xf32>
    %74 = arith.maximumf %72, %73 : vector<256x128xf32>
    %75 = vector.shape_cast %74 : vector<256x128xf32> to vector<8x32x128xf32>
    %76 = tpu.iota {dimensions = array<i32: 1>} : vector<8x32x1xi32>
    %c0_i32 = arith.constant 0 : i32
    %77 = vector.broadcast %c0_i32 : i32 to vector<8x32x1xi32>
    %78 = arith.cmpi ne, %76, %77 : vector<8x32x1xi32>
    %cst_40 = arith.constant 0.000000e+00 : f32
    %79 = vector.shape_cast %78 : vector<8x32x1xi1> to vector<8x32x1xi1>
    %80 = vector.broadcast %79 : vector<8x32x1xi1> to vector<8x32x128xi1>
    %81 = vector.broadcast %cst_40 : f32 to vector<8x32x128xf32>
    %82 = arith.select %80, %75, %81 : vector<8x32x128xi1>, vector<8x32x128xf32>
    %cst_41 = arith.constant dense<0xFF800000> : vector<8x128xf32>
    %83 = vector.multi_reduction <maximumf>, %82, %cst_41 [1] : vector<8x32x128xf32> to vector<8x128xf32>
    %c0_42 = arith.constant 0 : index
    %c0_43 = arith.constant 0 : index
    %84 = vector.load %arg7[%c0_42, %c0_43] : memref<8x128xf32, #tpu.memory_space<vmem>>, vector<8x128xf32>
    tpu.vector_store %arg7[%c0_42, %c0_43], %83 {strides = array<i32>} : memref<8x128xf32, #tpu.memory_space<vmem>>, vector<8x128xf32>,
    return
  }
  func.func @transform_0(%arg0: i32) -> (i32, i32, i32) {
    %c0_i32 = arith.constant 0 : i32
    %c0_i32_0 = arith.constant 0 : i32
    %c0_i32_1 = arith.constant 0 : i32
    return %arg0, %c0_i32, %c0_i32_0 : i32, i32, i32
  }
  func.func @transform_1(%arg0: i32) -> (i32, i32, i32) {
    %c0_i32 = arith.constant 0 : i32
    %c0_i32_0 = arith.constant 0 : i32
    %c0_i32_1 = arith.constant 0 : i32
    return %arg0, %c0_i32, %c0_i32_0 : i32, i32, i32
  }
  func.func @transform_2(%arg0: i32) -> (i32, i32, i32) {
    %c0_i32 = arith.constant 0 : i32
    %c0_i32_0 = arith.constant 0 : i32
    %c0_i32_1 = arith.constant 0 : i32
    %c0_i32_2 = arith.constant 0 : i32
    return %c0_i32, %c0_i32_0, %c0_i32_1 : i32, i32, i32
  }
  func.func @transform_3(%arg0: i32) -> (i32, i32) {
    %c0_i32 = arith.constant 0 : i32
    %c0_i32_0 = arith.constant 0 : i32
    %c0_i32_1 = arith.constant 0 : i32
    return %c0_i32, %c0_i32_0 : i32, i32
  }
  func.func @transform_4(%arg0: i32) -> (i32, i32, i32) {
    %c0_i32 = arith.constant 0 : i32
    %c0_i32_0 = arith.constant 0 : i32
    %c0_i32_1 = arith.constant 0 : i32
    %c0_i32_2 = arith.constant 0 : i32
    return %c0_i32, %c0_i32_0, %c0_i32_1 : i32, i32, i32
  }
  func.func @transform_5(%arg0: i32) -> (i32, i32) {
    %c0_i32 = arith.constant 0 : i32
    %c0_i32_0 = arith.constant 0 : i32
    %c0_i32_1 = arith.constant 0 : i32
    return %c0_i32, %c0_i32_0 : i32, i32
  }
  func.func @transform_6(%arg0: i32) -> (i32, i32) {
    %c0_i32 = arith.constant 0 : i32
    %c0_i32_0 = arith.constant 0 : i32
    return %arg0, %c0_i32 : i32, i32
  }
}

</mosaic_0001>

<llo_original>
// kernel: tpu_custom_call.1
$region0: #{tpu_custom_call.1}
  #allocation0 [shape = 'u32[]', space=smem, size = 0x4, offset = 0x4, fixed_abs, tag = 'smem constant byte address 0x4 - core index']
  #allocation1 [shape = 'u32[144,128]{1,0:T(1,128)}', space=vmem, size = 0x12000, scoped, tag = 'internal scratch']
  %s0 = inlined_call_operand.vmem [shape: s32[2,256,3], index: 0, kind: input, shape index: {}]
  %s1 = inlined_call_operand.vmem [shape: bf16[2,256,8], index: 1, kind: input, shape index: {}]
  %s2 = inlined_call_operand.vmem [shape: bf16[3,8,32], index: 2, kind: input, shape index: {}]
  %s3 = inlined_call_operand.vmem [shape: f32[1,32], index: 3, kind: input, shape index: {}]
  %s4 = inlined_call_operand.vmem [shape: bf16[3,32,128], index: 4, kind: input, shape index: {}]
  %s5 = inlined_call_operand.vmem [shape: f32[1,128], index: 5, kind: input, shape index: {}]
  %s6 = inlined_call_operand.hbm [shape: f32[16,128], index: 6, kind: output, shape index: {}]
  %s7 = sld [smem:[#allocation0]]
  $region57: #{tpu_custom_call.1} parent=0
    _
  %s9 = ssub.s32 1, %s7
  %s10 = scalar_select 0, %s9, %s7
  $region1: #{tpu_custom_call.1} parent=0
    #allocation2 [shape = 'u8[8192]{0}', space=vmem, size = 0x2000, scoped, tag = 'output window, operand 0']
    #allocation3 [shape = 's32[2]{0}', space=sflag, size = 0x8, scoped, tag = 'scoped memory for tpu_custom_call.1']
    %11 = vsyncpa [#allocation3], 0
    %s12 = scalar_lea.sflag [#allocation3], 1
    %13 = vsyncpa %s12, 0
    loop: start=0, step=1, limit=4
    $region2: #{tpu_custom_call.1} parent=1 // loop_pre_header
      _
    $region3: #{tpu_custom_call.1} parent=1 // loop_header
      %s15 = sphi 0, %s19
      %p16 = scmp.ge.s32.totalorder %s15, 4
      %s25 = sphi 0, %s27
      %s28 = sphi 0, %s25
      %s29 = sphi 0, %s28
      %s45 = sphi 0, %s29
      %s51 = sphi 0, %s53
      %s54 = sphi 0, %s51
      %s55 = sphi 0, %s54
      %s71 = sphi 0, %s55
      %s75 = sphi 0, %s75
      %s77 = sphi 0, %s75
      %s78 = sphi 0, %s77
      %s92 = sphi 0, %s78
      %s96 = sphi 0, %s96
      %s98 = sphi 0, %s96
      %s99 = sphi 0, %s98
      %s113 = sphi 0, %s99
      %s117 = sphi 0, %s117
      %s119 = sphi 0, %s117
      %s120 = sphi 0, %s119
      %s134 = sphi 0, %s120
      %s138 = sphi 0, %s138
      %s140 = sphi 0, %s138
      %s141 = sphi 0, %s140
      %s155 = sphi 0, %s141
      %s161 = sphi 0, %s163
      %s164 = sphi 0, %s161
      %s165 = sphi 0, %s164
      %s181 = sphi 0, %s165
    $region4: #{tpu_custom_call.1} parent=1 // loop_header_branch
      %18 = sbr.rel (%p16) target = $region8
    $region5: #{tpu_custom_call.1} parent=1 // loop_body
      %s20 = ssub.s32 %s15, 1
      %s21 = ssub.s32 %s15, 2
      %s22 = sadd.s32 %s15, 1
      %s23 = ssub.s32 %s15, %s22
      %p24 = scmp.eq.s32.totalorder %s23, 0
      %s26 = sadd.s32 %s25, 1
      %s27 = scalar_select %p24, %s25, %s26
      %p30 = pneg %p24
      %p31 = scmp.eq.s32.totalorder %s15, 1
      %p32 = por %p30, %p31
      %p33 = scmp.ne.s32.totalorder %s25, %s28
      %p34 = scmp.eq.s32.totalorder %s15, 0
      %p35 = por %p33, %p34
      %p36 = scmp.ne.s32.totalorder %s25, %s28
      %p37 = scmp.eq.s32.totalorder %s20, 1
      %p38 = por %p36, %p37
      %p39 = scmp.ne.s32.totalorder %s28, %s29
      %p40 = scmp.eq.s32.totalorder %s20, 0
      %p41 = por %p39, %p40
      %p42 = scmp.ne.s32.totalorder %s28, %s29
      %p43 = scmp.eq.s32.totalorder %s21, 1
      %p44 = por %p42, %p43
      %p46 = scmp.ne.s32.totalorder %s29, %s45
      %p47 = scmp.eq.s32.totalorder %s21, 0
      %p48 = por %p46, %p47
      %s49 = ssub.s32 %s15, %s22
      %p50 = scmp.eq.s32.totalorder %s49, 0
      %s52 = sadd.s32 %s51, 1
      %s53 = scalar_select %p50, %s51, %s52
      %p56 = pneg %p50
      %p57 = scmp.eq.s32.totalorder %s15, 1
      %p58 = por %p56, %p57
      %p59 = scmp.ne.s32.totalorder %s51, %s54
      %p60 = scmp.eq.s32.totalorder %s15, 0
      %p61 = por %p59, %p60
      %p62 = scmp.ne.s32.totalorder %s51, %s54
      %p63 = scmp.eq.s32.totalorder %s20, 1
      %p64 = por %p62, %p63
      %p65 = scmp.ne.s32.totalorder %s54, %s55
      %p66 = scmp.eq.s32.totalorder %s20, 0
      %p67 = por %p65, %p66
      %p68 = scmp.ne.s32.totalorder %s54, %s55
      %p69 = scmp.eq.s32.totalorder %s21, 1
      %p70 = por %p68, %p69
      %p72 = scmp.ne.s32.totalorder %s55, %s71
      %p73 = scmp.eq.s32.totalorder %s21, 0
      %p74 = por %p72, %p73
      %s76 = sadd.s32 %s75, 1
      %p79 = scmp.eq.s32.totalorder %s15, 1
      %p80 = scmp.ne.s32.totalorder %s75, %s77
      %p81 = scmp.eq.s32.totalorder %s15, 0
      %p82 = por %p80, %p81
      %p83 = scmp.ne.s32.totalorder %s75, %s77
      %p84 = scmp.eq.s32.totalorder %s20, 1
      %p85 = por %p83, %p84
      %p86 = scmp.ne.s32.totalorder %s77, %s78
      %p87 = scmp.eq.s32.totalorder %s20, 0
      %p88 = por %p86, %p87
      %p89 = scmp.ne.s32.totalorder %s77, %s78
      %p90 = scmp.eq.s32.totalorder %s21, 1
      %p91 = por %p89, %p90
      %p93 = scmp.ne.s32.totalorder %s78, %s92
      %p94 = scmp.eq.s32.totalorder %s21, 0
      %p95 = por %p93, %p94
      %s97 = sadd.s32 %s96, 1
      %p100 = scmp.eq.s32.totalorder %s15, 1
      %p101 = scmp.ne.s32.totalorder %s96, %s98
      %p102 = scmp.eq.s32.totalorder %s15, 0
      %p103 = por %p101, %p102
      %p104 = scmp.ne.s32.totalorder %s96, %s98
      %p105 = scmp.eq.s32.totalorder %s20, 1
      %p106 = por %p104, %p105
      %p107 = scmp.ne.s32.totalorder %s98, %s99
      %p108 = scmp.eq.s32.totalorder %s20, 0
      %p109 = por %p107, %p108
      %p110 = scmp.ne.s32.totalorder %s98, %s99
      %p111 = scmp.eq.s32.totalorder %s21, 1
      %p112 = por %p110, %p111
      %p114 = scmp.ne.s32.totalorder %s99, %s113
      %p115 = scmp.eq.s32.totalorder %s21, 0
      %p116 = por %p114, %p115
      %s118 = sadd.s32 %s117, 1
      %p121 = scmp.eq.s32.totalorder %s15, 1
      %p122 = scmp.ne.s32.totalorder %s117, %s119
      %p123 = scmp.eq.s32.totalorder %s15, 0
      %p124 = por %p122, %p123
      %p125 = scmp.ne.s32.totalorder %s117, %s119
      %p126 = scmp.eq.s32.totalorder %s20, 1
      %p127 = por %p125, %p126
      %p128 = scmp.ne.s32.totalorder %s119, %s120
      %p129 = scmp.eq.s32.totalorder %s20, 0
      %p130 = por %p128, %p129
      %p131 = scmp.ne.s32.totalorder %s119, %s120
      %p132 = scmp.eq.s32.totalorder %s21, 1
      %p133 = por %p131, %p132
      %p135 = scmp.ne.s32.totalorder %s120, %s134
      %p136 = scmp.eq.s32.totalorder %s21, 0
      %p137 = por %p135, %p136
      %s139 = sadd.s32 %s138, 1
      %p142 = scmp.eq.s32.totalorder %s15, 1
      %p143 = scmp.ne.s32.totalorder %s138, %s140
      %p144 = scmp.eq.s32.totalorder %s15, 0
      %p145 = por %p143, %p144
      %p146 = scmp.ne.s32.totalorder %s138, %s140
      %p147 = scmp.eq.s32.totalorder %s20, 1
      %p148 = por %p146, %p147
      %p149 = scmp.ne.s32.totalorder %s140, %s141
      %p150 = scmp.eq.s32.totalorder %s20, 0
      %p151 = por %p149, %p150
      %p152 = scmp.ne.s32.totalorder %s140, %s141
      %p153 = scmp.eq.s32.totalorder %s21, 1
      %p154 = por %p152, %p153
      %p156 = scmp.ne.s32.totalorder %s141, %s155
      %p157 = scmp.eq.s32.totalorder %s21, 0
      %p158 = por %p156, %p157
      %s159 = ssub.s32 %s15, %s22
      %p160 = scmp.eq.s32.totalorder %s159, 0
      %s162 = sadd.s32 %s161, 1
      %s163 = scalar_select %p160, %s161, %s162
      %p166 = pneg %p160
      %p167 = scmp.eq.s32.totalorder %s15, 1
      %p168 = por %p166, %p167
      %p169 = scmp.ne.s32.totalorder %s161, %s164
      %p170 = scmp.eq.s32.totalorder %s15, 0
      %p171 = por %p169, %p170
      %p172 = scmp.ne.s32.totalorder %s161, %s164
      %p173 = scmp.eq.s32.totalorder %s20, 1
      %p174 = por %p172, %p173
      %p175 = scmp.ne.s32.totalorder %s164, %s165
      %p176 = scmp.eq.s32.totalorder %s20, 0
      %p177 = por %p175, %p176
      %p178 = scmp.ne.s32.totalorder %s164, %s165
      %p179 = scmp.eq.s32.totalorder %s21, 1
      %p180 = por %p178, %p179
      %p182 = scmp.ne.s32.totalorder %s165, %s181
      %p183 = scmp.eq.s32.totalorder %s21, 0
      %p184 = por %p182, %p183
      %p185 = scmp.le.s32.totalorder 1, %s15
      %p186 = scmp.lt.s32.totalorder %s15, 3
      %p187 = pnand %p185, %p186
      %p188 = pneg %p187
      // Predicated region
      $region9: #{tpu_custom_call.1} parent=5 // pred_check
        _
      $region10: #{tpu_custom_call.1} parent=5 // pred_check_branch
        %190 = sbr.rel (%p187) target = $region12
      $region11: #{tpu_custom_call.1} parent=5 // pred_region
        %s191 = ssub.s32 %s15, 1
        // Predicated region
        $region13: #{tpu_custom_call.1} parent=11 // pred_check
          %p192 = pneg %p88
        $region14: #{tpu_custom_call.1} parent=11 // pred_check_branch
          %194 = sbr.rel (%p192) target = $region16
        $region15: #{tpu_custom_call.1} parent=11 // pred_region
          _
        $region16: #{tpu_custom_call.1} parent=11 // pred_fallthru
          _
        // Predicated region
        $region17: #{tpu_custom_call.1} parent=11 // pred_check
          %p195 = pneg %p109
        $region18: #{tpu_custom_call.1} parent=11 // pred_check_branch
          %197 = sbr.rel (%p195) target = $region20
        $region19: #{tpu_custom_call.1} parent=11 // pred_region
          _
        $region20: #{tpu_custom_call.1} parent=11 // pred_fallthru
          _
        // Predicated region
        $region21: #{tpu_custom_call.1} parent=11 // pred_check
          %p198 = pneg %p130
        $region22: #{tpu_custom_call.1} parent=11 // pred_check_branch
          %200 = sbr.rel (%p198) target = $region24
        $region23: #{tpu_custom_call.1} parent=11 // pred_region
          _
        $region24: #{tpu_custom_call.1} parent=11 // pred_fallthru
          _
        // Predicated region
        $region25: #{tpu_custom_call.1} parent=11 // pred_check
          %p201 = pneg %p151
        $region26: #{tpu_custom_call.1} parent=11 // pred_check_branch
          %203 = sbr.rel (%p201) target = $region28
        $region27: #{tpu_custom_call.1} parent=11 // pred_region
          _
        $region28: #{tpu_custom_call.1} parent=11 // pred_fallthru
          _
      $region12: #{tpu_custom_call.1} parent=5 // pred_fallthru
        _
      %p204 = scmp.lt.s32.totalorder %s15, 2
      // Predicated region
      $region29: #{tpu_custom_call.1} parent=5 // pred_check
        %p205 = pneg %p204
      $region30: #{tpu_custom_call.1} parent=5 // pred_check_branch
        %207 = sbr.rel (%p205) target = $region32
      $region31: #{tpu_custom_call.1} parent=5 // pred_region
        // Predicated region
        $region33: #{tpu_custom_call.1} parent=31 // pred_check
          %p208 = pneg %p35
        $region34: #{tpu_custom_call.1} parent=31 // pred_check_branch
          %210 = sbr.rel (%p208) target = $region36
        $region35: #{tpu_custom_call.1} parent=31 // pred_region
          %p211 = scmp.lt.s32.totalorder %s15, 1
          %s212 = scalar_select %p211, %s15, 1
          %s213 = smul.addr %s212, 32
          %s214 = smul.addr %s213, 8
          %s215 = scalar_lea.vmem %s0, %s214
        $region36: #{tpu_custom_call.1} parent=31 // pred_fallthru
          _
        // Predicated region
        $region37: #{tpu_custom_call.1} parent=31 // pred_check
          %p216 = pneg %p61
        $region38: #{tpu_custom_call.1} parent=31 // pred_check_branch
          %218 = sbr.rel (%p216) target = $region40
        $region39: #{tpu_custom_call.1} parent=31 // pred_region
          %p219 = scmp.lt.s32.totalorder %s15, 1
          %s220 = scalar_select %p219, %s15, 1
          %s221 = smul.addr %s220, 32
          %s222 = smul.addr %s221, 4
          %s223 = scalar_lea.vmem %s1, %s222
        $region40: #{tpu_custom_call.1} parent=31 // pred_fallthru
          _
      $region32: #{tpu_custom_call.1} parent=5 // pred_fallthru
        _
      %p224 = scmp.le.s32.totalorder 1, %s15
      %p225 = scmp.lt.s32.totalorder %s15, 3
      %p226 = pnand %p224, %p225
      %p227 = pneg %p226
      // Predicated region
      $region41: #{tpu_custom_call.1} parent=5 // pred_check
        _
      $region42: #{tpu_custom_call.1} parent=5 // pred_check_branch
        %229 = sbr.rel (%p226) target = $region44
      $region43: #{tpu_custom_call.1} parent=5 // pred_region
        %s230 = ssub.s32 %s15, 1
        %p231 = scmp.lt.s32.totalorder %s20, 1
        %s232 = scalar_select %p231, %s20, 1
        %s233 = smul.addr %s232, 32
        %s234 = smul.addr %s233, 8
        %s235 = scalar_lea.vmem %s0, %s234
        %p236 = pneg %p41
        %p237 = pneg %p38
        %p238 = scmp.lt.s32.totalorder %s20, 1
        %s239 = scalar_select %p238, %s20, 1
        %s240 = smul.addr %s239, 32
        %s241 = smul.addr %s240, 4
        %s242 = scalar_lea.vmem %s1, %s241
        %p243 = pneg %p67
        %p244 = pneg %p64
        %p245 = pneg %p88
        %p246 = pneg %p85
        %p247 = pneg %p109
        %p248 = pneg %p106
        %p249 = pneg %p130
        %p250 = pneg %p127
        %p251 = pneg %p151
        %p252 = pneg %p148
        %p253 = pneg %p177
        %p254 = pneg %p174
        %s255 = sand.u32 %s164, 1
        %s256 = scalar_lea.sflag [#allocation3], %s255
        %s257 = sand.u32 %s164, 1
        %s258 = smul.addr %s257, 8
        %s259 = scalar_lea.vmem [#allocation2], %s258
        %p260 = scmp.lt.s32.totalorder %s20, 1
        %s261 = scalar_select %p260, %s20, 1
        %s262 = smul.addr %s261, 32
        %s263 = smul.addr %s262, 8
        %s264 = scalar_lea.vmem %s0, %s263
        %p265 = scmp.lt.s32.totalorder %s20, 1
        %s266 = scalar_select %p265, %s20, 1
        %s267 = smul.addr %s266, 32
        %s268 = smul.addr %s267, 4
        %s269 = scalar_lea.vmem %s1, %s268
        %v271 = vld [vmem:[%s264] sm:$0xff]
        %v272 = vld [vmem:[%s264 + $0x8] sm:$0xff]
        %v273 = vld [vmem:[%s264 + $0x10] sm:$0xff]
        %v274 = vld [vmem:[%s264 + $0x18] sm:$0xff]
        %v275 = vld [vmem:[%s264 + $0x20] sm:$0xff]
        %v276 = vld [vmem:[%s264 + $0x28] sm:$0xff]
        %v277 = vld [vmem:[%s264 + $0x30] sm:$0xff]
        %v278 = vld [vmem:[%s264 + $0x38] sm:$0xff]
        %v279 = vld [vmem:[%s264 + $0x40] sm:$0xff]
        %v280 = vld [vmem:[%s264 + $0x48] sm:$0xff]
        %v281 = vld [vmem:[%s264 + $0x50] sm:$0xff]
        %v282 = vld [vmem:[%s264 + $0x58] sm:$0xff]
        %v283 = vld [vmem:[%s264 + $0x60] sm:$0xff]
        %v284 = vld [vmem:[%s264 + $0x68] sm:$0xff]
        %v285 = vld [vmem:[%s264 + $0x70] sm:$0xff]
        %v286 = vld [vmem:[%s264 + $0x78] sm:$0xff]
        %v287 = vld [vmem:[%s264 + $0x80] sm:$0xff]
        %v288 = vld [vmem:[%s264 + $0x88] sm:$0xff]
        %v289 = vld [vmem:[%s264 + $0x90] sm:$0xff]
        %v290 = vld [vmem:[%s264 + $0x98] sm:$0xff]
        %v291 = vld [vmem:[%s264 + $0xa0] sm:$0xff]
        %v292 = vld [vmem:[%s264 + $0xa8] sm:$0xff]
        %v293 = vld [vmem:[%s264 + $0xb0] sm:$0xff]
        %v294 = vld [vmem:[%s264 + $0xb8] sm:$0xff]
        %v295 = vld [vmem:[%s264 + $0xc0] sm:$0xff]
        %v296 = vld [vmem:[%s264 + $0xc8] sm:$0xff]
        %v297 = vld [vmem:[%s264 + $0xd0] sm:$0xff]
        %v298 = vld [vmem:[%s264 + $0xd8] sm:$0xff]
        %v299 = vld [vmem:[%s264 + $0xe0] sm:$0xff]
        %v300 = vld [vmem:[%s264 + $0xe8] sm:$0xff]
        %v301 = vld [vmem:[%s264 + $0xf0] sm:$0xff]
        %v302 = vld [vmem:[%s264 + $0xf8] sm:$0xff]
        %v303 = vlaneseq
        %v304 = vand.u32 %v303, 127
        %v305 = vadd.s32 %v304, 128
        %306 = vset.pattern.permute.xlu0 0
        %307 = vperm.xlu0 %306, %v271
        %v308 = vpop.permute.xlu0 %307
        %309 = vset.pattern.permute.xlu0 0
        %310 = vperm.xlu0 %309, %v272
        %v311 = vpop.permute.xlu0 %310
        %312 = vset.pattern.permute.xlu0 0
        %313 = vperm.xlu0 %312, %v273
        %v314 = vpop.permute.xlu0 %313
        %315 = vset.pattern.permute.xlu0 0
        %316 = vperm.xlu0 %315, %v274
        %v317 = vpop.permute.xlu0 %316
        %318 = vset.pattern.permute.xlu0 0
        %319 = vperm.xlu0 %318, %v275
        %v320 = vpop.permute.xlu0 %319
        %321 = vset.pattern.permute.xlu0 0
        %322 = vperm.xlu0 %321, %v276
        %v323 = vpop.permute.xlu0 %322
        %324 = vset.pattern.permute.xlu0 0
        %325 = vperm.xlu0 %324, %v277
        %v326 = vpop.permute.xlu0 %325
        %327 = vset.pattern.permute.xlu0 0
        %328 = vperm.xlu0 %327, %v278
        %v329 = vpop.permute.xlu0 %328
        %330 = vset.pattern.permute.xlu0 0
        %331 = vperm.xlu0 %330, %v279
        %v332 = vpop.permute.xlu0 %331
        %333 = vset.pattern.permute.xlu0 0
        %334 = vperm.xlu0 %333, %v280
        %v335 = vpop.permute.xlu0 %334
        %336 = vset.pattern.permute.xlu0 0
        %337 = vperm.xlu0 %336, %v281
        %v338 = vpop.permute.xlu0 %337
        %339 = vset.pattern.permute.xlu0 0
        %340 = vperm.xlu0 %339, %v282
        %v341 = vpop.permute.xlu0 %340
        %342 = vset.pattern.permute.xlu0 0
        %343 = vperm.xlu0 %342, %v283
        %v344 = vpop.permute.xlu0 %343
        %345 = vset.pattern.permute.xlu0 0
        %346 = vperm.xlu0 %345, %v284
        %v347 = vpop.permute.xlu0 %346
        %348 = vset.pattern.permute.xlu0 0
        %349 = vperm.xlu0 %348, %v285
        %v350 = vpop.permute.xlu0 %349
        %351 = vset.pattern.permute.xlu0 0
        %352 = vperm.xlu0 %351, %v286
        %v353 = vpop.permute.xlu0 %352
        %354 = vset.pattern.permute.xlu0 0
        %355 = vperm.xlu0 %354, %v287
        %v356 = vpop.permute.xlu0 %355
        %357 = vset.pattern.permute.xlu0 0
        %358 = vperm.xlu0 %357, %v288
        %v359 = vpop.permute.xlu0 %358
        %360 = vset.pattern.permute.xlu0 0
        %361 = vperm.xlu0 %360, %v289
        %v362 = vpop.permute.xlu0 %361
        %363 = vset.pattern.permute.xlu0 0
        %364 = vperm.xlu0 %363, %v290
        %v365 = vpop.permute.xlu0 %364
        %366 = vset.pattern.permute.xlu0 0
        %367 = vperm.xlu0 %366, %v291
        %v368 = vpop.permute.xlu0 %367
        %369 = vset.pattern.permute.xlu0 0
        %370 = vperm.xlu0 %369, %v292
        %v371 = vpop.permute.xlu0 %370
        %372 = vset.pattern.permute.xlu0 0
        %373 = vperm.xlu0 %372, %v293
        %v374 = vpop.permute.xlu0 %373
        %375 = vset.pattern.permute.xlu0 0
        %376 = vperm.xlu0 %375, %v294
        %v377 = vpop.permute.xlu0 %376
        %378 = vset.pattern.permute.xlu0 0
        %379 = vperm.xlu0 %378, %v295
        %v380 = vpop.permute.xlu0 %379
        %381 = vset.pattern.permute.xlu0 0
        %382 = vperm.xlu0 %381, %v296
        %v383 = vpop.permute.xlu0 %382
        %384 = vset.pattern.permute.xlu0 0
        %385 = vperm.xlu0 %384, %v297
        %v386 = vpop.permute.xlu0 %385
        %387 = vset.pattern.permute.xlu0 0
        %388 = vperm.xlu0 %387, %v298
        %v389 = vpop.permute.xlu0 %388
        %390 = vset.pattern.permute.xlu0 0
        %391 = vperm.xlu0 %390, %v299
        %v392 = vpop.permute.xlu0 %391
        %393 = vset.pattern.permute.xlu0 0
        %394 = vperm.xlu0 %393, %v300
        %v395 = vpop.permute.xlu0 %394
        %396 = vset.pattern.permute.xlu0 0
        %397 = vperm.xlu0 %396, %v301
        %v398 = vpop.permute.xlu0 %397
        %399 = vset.pattern.permute.xlu0 0
        %400 = vperm.xlu0 %399, %v302
        %v401 = vpop.permute.xlu0 %400
        %vm402 = vcmp.eq.s32.totalorder %v308, %v304
        %vm403 = vcmp.eq.s32.totalorder %v308, %v305
        %vm404 = vcmp.eq.s32.totalorder %v311, %v304
        %vm405 = vcmp.eq.s32.totalorder %v311, %v305
        %vm406 = vcmp.eq.s32.totalorder %v314, %v304
        %vm407 = vcmp.eq.s32.totalorder %v314, %v305
        %vm408 = vcmp.eq.s32.totalorder %v317, %v304
        %vm409 = vcmp.eq.s32.totalorder %v317, %v305
        %vm410 = vcmp.eq.s32.totalorder %v320, %v304
        %vm411 = vcmp.eq.s32.totalorder %v320, %v305
        %vm412 = vcmp.eq.s32.totalorder %v323, %v304
        %vm413 = vcmp.eq.s32.totalorder %v323, %v305
        %vm414 = vcmp.eq.s32.totalorder %v326, %v304
        %vm415 = vcmp.eq.s32.totalorder %v326, %v305
        %vm416 = vcmp.eq.s32.totalorder %v329, %v304
        %vm417 = vcmp.eq.s32.totalorder %v329, %v305
        %vm418 = vcmp.eq.s32.totalorder %v332, %v304
        %vm419 = vcmp.eq.s32.totalorder %v332, %v305
        %vm420 = vcmp.eq.s32.totalorder %v335, %v304
        %vm421 = vcmp.eq.s32.totalorder %v335, %v305
        %vm422 = vcmp.eq.s32.totalorder %v338, %v304
        %vm423 = vcmp.eq.s32.totalorder %v338, %v305
        %vm424 = vcmp.eq.s32.totalorder %v341, %v304
        %vm425 = vcmp.eq.s32.totalorder %v341, %v305
        %vm426 = vcmp.eq.s32.totalorder %v344, %v304
        %vm427 = vcmp.eq.s32.totalorder %v344, %v305
        %vm428 = vcmp.eq.s32.totalorder %v347, %v304
        %vm429 = vcmp.eq.s32.totalorder %v347, %v305
        %vm430 = vcmp.eq.s32.totalorder %v350, %v304
        %vm431 = vcmp.eq.s32.totalorder %v350, %v305
        %vm432 = vcmp.eq.s32.totalorder %v353, %v304
        %vm433 = vcmp.eq.s32.totalorder %v353, %v305
        %vm434 = vcmp.eq.s32.totalorder %v356, %v304
        %vm435 = vcmp.eq.s32.totalorder %v356, %v305
        %vm436 = vcmp.eq.s32.totalorder %v359, %v304
        %vm437 = vcmp.eq.s32.totalorder %v359, %v305
        %vm438 = vcmp.eq.s32.totalorder %v362, %v304
        %vm439 = vcmp.eq.s32.totalorder %v362, %v305
        %vm440 = vcmp.eq.s32.totalorder %v365, %v304
        %vm441 = vcmp.eq.s32.totalorder %v365, %v305
        %vm442 = vcmp.eq.s32.totalorder %v368, %v304
        %vm443 = vcmp.eq.s32.totalorder %v368, %v305
        %vm444 = vcmp.eq.s32.totalorder %v371, %v304
        %vm445 = vcmp.eq.s32.totalorder %v371, %v305
        %vm446 = vcmp.eq.s32.totalorder %v374, %v304
        %vm447 = vcmp.eq.s32.totalorder %v374, %v305
        %vm448 = vcmp.eq.s32.totalorder %v377, %v304
        %vm449 = vcmp.eq.s32.totalorder %v377, %v305
        %vm450 = vcmp.eq.s32.totalorder %v380, %v304
        %vm451 = vcmp.eq.s32.totalorder %v380, %v305
        %vm452 = vcmp.eq.s32.totalorder %v383, %v304
        %vm453 = vcmp.eq.s32.totalorder %v383, %v305
        %vm454 = vcmp.eq.s32.totalorder %v386, %v304
        %vm455 = vcmp.eq.s32.totalorder %v386, %v305
        %vm456 = vcmp.eq.s32.totalorder %v389, %v304
        %vm457 = vcmp.eq.s32.totalorder %v389, %v305
        %vm458 = vcmp.eq.s32.totalorder %v392, %v304
        %vm459 = vcmp.eq.s32.totalorder %v392, %v305
        %vm460 = vcmp.eq.s32.totalorder %v395, %v304
        %vm461 = vcmp.eq.s32.totalorder %v395, %v305
        %vm462 = vcmp.eq.s32.totalorder %v398, %v304
        %vm463 = vcmp.eq.s32.totalorder %v398, %v305
        %vm464 = vcmp.eq.s32.totalorder %v401, %v304
        %vm465 = vcmp.eq.s32.totalorder %v401, %v305
        %v466 = vsel %vm402, 1, 0
        %v467 = vsel %vm403, 1, 0
        %v468 = vsel %vm404, 1, 0
        %v469 = vsel %vm405, 1, 0
        %v470 = vsel %vm406, 1, 0
        %v471 = vsel %vm407, 1, 0
        %v472 = vsel %vm408, 1, 0
        %v473 = vsel %vm409, 1, 0
        %v474 = vsel %vm410, 1, 0
        %v475 = vsel %vm411, 1, 0
        %v476 = vsel %vm412, 1, 0
        %v477 = vsel %vm413, 1, 0
        %v478 = vsel %vm414, 1, 0
        %v479 = vsel %vm415, 1, 0
        %v480 = vsel %vm416, 1, 0
        %v481 = vsel %vm417, 1, 0
        %v482 = vsel %vm418, 1, 0
        %v483 = vsel %vm419, 1, 0
        %v484 = vsel %vm420, 1, 0
        %v485 = vsel %vm421, 1, 0
        %v486 = vsel %vm422, 1, 0
        %v487 = vsel %vm423, 1, 0
        %v488 = vsel %vm424, 1, 0
        %v489 = vsel %vm425, 1, 0
        %v490 = vsel %vm426, 1, 0
        %v491 = vsel %vm427, 1, 0
        %v492 = vsel %vm428, 1, 0
        %v493 = vsel %vm429, 1, 0
        %v494 = vsel %vm430, 1, 0
        %v495 = vsel %vm431, 1, 0
        %v496 = vsel %vm432, 1, 0
        %v497 = vsel %vm433, 1, 0
        %v498 = vsel %vm434, 1, 0
        %v499 = vsel %vm435, 1, 0
        %v500 = vsel %vm436, 1, 0
        %v501 = vsel %vm437, 1, 0
        %v502 = vsel %vm438, 1, 0
        %v503 = vsel %vm439, 1, 0
        %v504 = vsel %vm440, 1, 0
        %v505 = vsel %vm441, 1, 0
        %v506 = vsel %vm442, 1, 0
        %v507 = vsel %vm443, 1, 0
        %v508 = vsel %vm444, 1, 0
        %v509 = vsel %vm445, 1, 0
        %v510 = vsel %vm446, 1, 0
        %v511 = vsel %vm447, 1, 0
        %v512 = vsel %vm448, 1, 0
        %v513 = vsel %vm449, 1, 0
        %v514 = vsel %vm450, 1, 0
        %v515 = vsel %vm451, 1, 0
        %v516 = vsel %vm452, 1, 0
        %v517 = vsel %vm453, 1, 0
        %v518 = vsel %vm454, 1, 0
        %v519 = vsel %vm455, 1, 0
        %v520 = vsel %vm456, 1, 0
        %v521 = vsel %vm457, 1, 0
        %v522 = vsel %vm458, 1, 0
        %v523 = vsel %vm459, 1, 0
        %v524 = vsel %vm460, 1, 0
        %v525 = vsel %vm461, 1, 0
        %v526 = vsel %vm462, 1, 0
        %v527 = vsel %vm463, 1, 0
        %v528 = vsel %vm464, 1, 0
        %v529 = vsel %vm465, 1, 0
        %v530 = vcvt.s32.f32 %v466
        %v531 = vcvt.s32.f32 %v467
        %v532 = vcvt.s32.f32 %v468
        %v533 = vcvt.s32.f32 %v469
        %v534 = vcvt.s32.f32 %v470
        %v535 = vcvt.s32.f32 %v471
        %v536 = vcvt.s32.f32 %v472
        %v537 = vcvt.s32.f32 %v473
        %v538 = vcvt.s32.f32 %v474
        %v539 = vcvt.s32.f32 %v475
        %v540 = vcvt.s32.f32 %v476
        %v541 = vcvt.s32.f32 %v477
        %v542 = vcvt.s32.f32 %v478
        %v543 = vcvt.s32.f32 %v479
        %v544 = vcvt.s32.f32 %v480
        %v545 = vcvt.s32.f32 %v481
        %v546 = vcvt.s32.f32 %v482
        %v547 = vcvt.s32.f32 %v483
        %v548 = vcvt.s32.f32 %v484
        %v549 = vcvt.s32.f32 %v485
        %v550 = vcvt.s32.f32 %v486
        %v551 = vcvt.s32.f32 %v487
        %v552 = vcvt.s32.f32 %v488
        %v553 = vcvt.s32.f32 %v489
        %v554 = vcvt.s32.f32 %v490
        %v555 = vcvt.s32.f32 %v491
        %v556 = vcvt.s32.f32 %v492
        %v557 = vcvt.s32.f32 %v493
        %v558 = vcvt.s32.f32 %v494
        %v559 = vcvt.s32.f32 %v495
        %v560 = vcvt.s32.f32 %v496
        %v561 = vcvt.s32.f32 %v497
        %v562 = vcvt.s32.f32 %v498
        %v563 = vcvt.s32.f32 %v499
        %v564 = vcvt.s32.f32 %v500
        %v565 = vcvt.s32.f32 %v501
        %v566 = vcvt.s32.f32 %v502
        %v567 = vcvt.s32.f32 %v503
        %v568 = vcvt.s32.f32 %v504
        %v569 = vcvt.s32.f32 %v505
        %v570 = vcvt.s32.f32 %v506
        %v571 = vcvt.s32.f32 %v507
        %v572 = vcvt.s32.f32 %v508
        %v573 = vcvt.s32.f32 %v509
        %v574 = vcvt.s32.f32 %v510
        %v575 = vcvt.s32.f32 %v511
        %v576 = vcvt.s32.f32 %v512
        %v577 = vcvt.s32.f32 %v513
        %v578 = vcvt.s32.f32 %v514
        %v579 = vcvt.s32.f32 %v515
        %v580 = vcvt.s32.f32 %v516
        %v581 = vcvt.s32.f32 %v517
        %v582 = vcvt.s32.f32 %v518
        %v583 = vcvt.s32.f32 %v519
        %v584 = vcvt.s32.f32 %v520
        %v585 = vcvt.s32.f32 %v521
        %v586 = vcvt.s32.f32 %v522
        %v587 = vcvt.s32.f32 %v523
        %v588 = vcvt.s32.f32 %v524
        %v589 = vcvt.s32.f32 %v525
        %v590 = vcvt.s32.f32 %v526
        %v591 = vcvt.s32.f32 %v527
        %v592 = vcvt.s32.f32 %v528
        %v593 = vcvt.s32.f32 %v529
        %v594 = vpack.c.bf16 %v532, %v530
        %v595 = vpack.c.bf16 %v533, %v531
        %v596 = vpack.c.bf16 %v536, %v534
        %v597 = vpack.c.bf16 %v537, %v535
        %v598 = vpack.c.bf16 %v540, %v538
        %v599 = vpack.c.bf16 %v541, %v539
        %v600 = vpack.c.bf16 %v544, %v542
        %v601 = vpack.c.bf16 %v545, %v543
        %v602 = vpack.c.bf16 %v548, %v546
        %v603 = vpack.c.bf16 %v549, %v547
        %v604 = vpack.c.bf16 %v552, %v550
        %v605 = vpack.c.bf16 %v553, %v551
        %v606 = vpack.c.bf16 %v556, %v554
        %v607 = vpack.c.bf16 %v557, %v555
        %v608 = vpack.c.bf16 %v560, %v558
        %v609 = vpack.c.bf16 %v561, %v559
        %v610 = vpack.c.bf16 %v564, %v562
        %v611 = vpack.c.bf16 %v565, %v563
        %v612 = vpack.c.bf16 %v568, %v566
        %v613 = vpack.c.bf16 %v569, %v567
        %v614 = vpack.c.bf16 %v572, %v570
        %v615 = vpack.c.bf16 %v573, %v571
        %v616 = vpack.c.bf16 %v576, %v574
        %v617 = vpack.c.bf16 %v577, %v575
        %v618 = vpack.c.bf16 %v580, %v578
        %v619 = vpack.c.bf16 %v581, %v579
        %v620 = vpack.c.bf16 %v584, %v582
        %v621 = vpack.c.bf16 %v585, %v583
        %v622 = vpack.c.bf16 %v588, %v586
        %v623 = vpack.c.bf16 %v589, %v587
        %v624 = vpack.c.bf16 %v592, %v590
        %v625 = vpack.c.bf16 %v593, %v591
        %626 = vset.pattern.permute.xlu0 1
        %627 = vperm.xlu0 %626, %v271
        %v628 = vpop.permute.xlu0 %627
        %629 = vset.pattern.permute.xlu0 1
        %630 = vperm.xlu0 %629, %v272
        %v631 = vpop.permute.xlu0 %630
        %632 = vset.pattern.permute.xlu0 1
        %633 = vperm.xlu0 %632, %v273
        %v634 = vpop.permute.xlu0 %633
        %635 = vset.pattern.permute.xlu0 1
        %636 = vperm.xlu0 %635, %v274
        %v637 = vpop.permute.xlu0 %636
        %638 = vset.pattern.permute.xlu0 1
        %639 = vperm.xlu0 %638, %v275
        %v640 = vpop.permute.xlu0 %639
        %641 = vset.pattern.permute.xlu0 1
        %642 = vperm.xlu0 %641, %v276
        %v643 = vpop.permute.xlu0 %642
        %644 = vset.pattern.permute.xlu0 1
        %645 = vperm.xlu0 %644, %v277
        %v646 = vpop.permute.xlu0 %645
        %647 = vset.pattern.permute.xlu0 1
        %648 = vperm.xlu0 %647, %v278
        %v649 = vpop.permute.xlu0 %648
        %650 = vset.pattern.permute.xlu0 1
        %651 = vperm.xlu0 %650, %v279
        %v652 = vpop.permute.xlu0 %651
        %653 = vset.pattern.permute.xlu0 1
        %654 = vperm.xlu0 %653, %v280
        %v655 = vpop.permute.xlu0 %654
        %656 = vset.pattern.permute.xlu0 1
        %657 = vperm.xlu0 %656, %v281
        %v658 = vpop.permute.xlu0 %657
        %659 = vset.pattern.permute.xlu0 1
        %660 = vperm.xlu0 %659, %v282
        %v661 = vpop.permute.xlu0 %660
        %662 = vset.pattern.permute.xlu0 1
        %663 = vperm.xlu0 %662, %v283
        %v664 = vpop.permute.xlu0 %663
        %665 = vset.pattern.permute.xlu0 1
        %666 = vperm.xlu0 %665, %v284
        %v667 = vpop.permute.xlu0 %666
        %668 = vset.pattern.permute.xlu0 1
        %669 = vperm.xlu0 %668, %v285
        %v670 = vpop.permute.xlu0 %669
        %671 = vset.pattern.permute.xlu0 1
        %672 = vperm.xlu0 %671, %v286
        %v673 = vpop.permute.xlu0 %672
        %674 = vset.pattern.permute.xlu0 1
        %675 = vperm.xlu0 %674, %v287
        %v676 = vpop.permute.xlu0 %675
        %677 = vset.pattern.permute.xlu0 1
        %678 = vperm.xlu0 %677, %v288
        %v679 = vpop.permute.xlu0 %678
        %680 = vset.pattern.permute.xlu0 1
        %681 = vperm.xlu0 %680, %v289
        %v682 = vpop.permute.xlu0 %681
        %683 = vset.pattern.permute.xlu0 1
        %684 = vperm.xlu0 %683, %v290
        %v685 = vpop.permute.xlu0 %684
        %686 = vset.pattern.permute.xlu0 1
        %687 = vperm.xlu0 %686, %v291
        %v688 = vpop.permute.xlu0 %687
        %689 = vset.pattern.permute.xlu0 1
        %690 = vperm.xlu0 %689, %v292
        %v691 = vpop.permute.xlu0 %690
        %692 = vset.pattern.permute.xlu0 1
        %693 = vperm.xlu0 %692, %v293
        %v694 = vpop.permute.xlu0 %693
        %695 = vset.pattern.permute.xlu0 1
        %696 = vperm.xlu0 %695, %v294
        %v697 = vpop.permute.xlu0 %696
        %698 = vset.pattern.permute.xlu0 1
        %699 = vperm.xlu0 %698, %v295
        %v700 = vpop.permute.xlu0 %699
        %701 = vset.pattern.permute.xlu0 1
        %702 = vperm.xlu0 %701, %v296
        %v703 = vpop.permute.xlu0 %702
        %704 = vset.pattern.permute.xlu0 1
        %705 = vperm.xlu0 %704, %v297
        %v706 = vpop.permute.xlu0 %705
        %707 = vset.pattern.permute.xlu0 1
        %708 = vperm.xlu0 %707, %v298
        %v709 = vpop.permute.xlu0 %708
        %710 = vset.pattern.permute.xlu0 1
        %711 = vperm.xlu0 %710, %v299
        %v712 = vpop.permute.xlu0 %711
        %713 = vset.pattern.permute.xlu0 1
        %714 = vperm.xlu0 %713, %v300
        %v715 = vpop.permute.xlu0 %714
        %716 = vset.pattern.permute.xlu0 1
        %717 = vperm.xlu0 %716, %v301
        %v718 = vpop.permute.xlu0 %717
        %719 = vset.pattern.permute.xlu0 1
        %720 = vperm.xlu0 %719, %v302
        %v721 = vpop.permute.xlu0 %720
        %vm722 = vcmp.eq.s32.totalorder %v628, %v304
        %vm723 = vcmp.eq.s32.totalorder %v628, %v305
        %vm724 = vcmp.eq.s32.totalorder %v631, %v304
        %vm725 = vcmp.eq.s32.totalorder %v631, %v305
        %vm726 = vcmp.eq.s32.totalorder %v634, %v304
        %vm727 = vcmp.eq.s32.totalorder %v634, %v305
        %vm728 = vcmp.eq.s32.totalorder %v637, %v304
        %vm729 = vcmp.eq.s32.totalorder %v637, %v305
        %vm730 = vcmp.eq.s32.totalorder %v640, %v304
        %vm731 = vcmp.eq.s32.totalorder %v640, %v305
        %vm732 = vcmp.eq.s32.totalorder %v643, %v304
        %vm733 = vcmp.eq.s32.totalorder %v643, %v305
        %vm734 = vcmp.eq.s32.totalorder %v646, %v304
        %vm735 = vcmp.eq.s32.totalorder %v646, %v305
        %vm736 = vcmp.eq.s32.totalorder %v649, %v304
        %vm737 = vcmp.eq.s32.totalorder %v649, %v305
        %vm738 = vcmp.eq.s32.totalorder %v652, %v304
        %vm739 = vcmp.eq.s32.totalorder %v652, %v305
        %vm740 = vcmp.eq.s32.totalorder %v655, %v304
        %vm741 = vcmp.eq.s32.totalorder %v655, %v305
        %vm742 = vcmp.eq.s32.totalorder %v658, %v304
        %vm743 = vcmp.eq.s32.totalorder %v658, %v305
        %vm744 = vcmp.eq.s32.totalorder %v661, %v304
        %vm745 = vcmp.eq.s32.totalorder %v661, %v305
        %vm746 = vcmp.eq.s32.totalorder %v664, %v304
        %vm747 = vcmp.eq.s32.totalorder %v664, %v305
        %vm748 = vcmp.eq.s32.totalorder %v667, %v304
        %vm749 = vcmp.eq.s32.totalorder %v667, %v305
        %vm750 = vcmp.eq.s32.totalorder %v670, %v304
        %vm751 = vcmp.eq.s32.totalorder %v670, %v305
        %vm752 = vcmp.eq.s32.totalorder %v673, %v304
        %vm753 = vcmp.eq.s32.totalorder %v673, %v305
        %vm754 = vcmp.eq.s32.totalorder %v676, %v304
        %vm755 = vcmp.eq.s32.totalorder %v676, %v305
        %vm756 = vcmp.eq.s32.totalorder %v679, %v304
        %vm757 = vcmp.eq.s32.totalorder %v679, %v305
        %vm758 = vcmp.eq.s32.totalorder %v682, %v304
        %vm759 = vcmp.eq.s32.totalorder %v682, %v305
        %vm760 = vcmp.eq.s32.totalorder %v685, %v304
        %vm761 = vcmp.eq.s32.totalorder %v685, %v305
        %vm762 = vcmp.eq.s32.totalorder %v688, %v304
        %vm763 = vcmp.eq.s32.totalorder %v688, %v305
        %vm764 = vcmp.eq.s32.totalorder %v691, %v304
        %vm765 = vcmp.eq.s32.totalorder %v691, %v305
        %vm766 = vcmp.eq.s32.totalorder %v694, %v304
        %vm767 = vcmp.eq.s32.totalorder %v694, %v305
        %vm768 = vcmp.eq.s32.totalorder %v697, %v304
        %vm769 = vcmp.eq.s32.totalorder %v697, %v305
        %vm770 = vcmp.eq.s32.totalorder %v700, %v304
        %vm771 = vcmp.eq.s32.totalorder %v700, %v305
        %vm772 = vcmp.eq.s32.totalorder %v703, %v304
        %vm773 = vcmp.eq.s32.totalorder %v703, %v305
        %vm774 = vcmp.eq.s32.totalorder %v706, %v304
        %vm775 = vcmp.eq.s32.totalorder %v706, %v305
        %vm776 = vcmp.eq.s32.totalorder %v709, %v304
        %vm777 = vcmp.eq.s32.totalorder %v709, %v305
        %vm778 = vcmp.eq.s32.totalorder %v712, %v304
        %vm779 = vcmp.eq.s32.totalorder %v712, %v305
        %vm780 = vcmp.eq.s32.totalorder %v715, %v304
        %vm781 = vcmp.eq.s32.totalorder %v715, %v305
        %vm782 = vcmp.eq.s32.totalorder %v718, %v304
        %vm783 = vcmp.eq.s32.totalorder %v718, %v305
        %vm784 = vcmp.eq.s32.totalorder %v721, %v304
        %vm785 = vcmp.eq.s32.totalorder %v721, %v305
        %v786 = vsel %vm722, 1, 0
        %v787 = vsel %vm723, 1, 0
        %v788 = vsel %vm724, 1, 0
        %v789 = vsel %vm725, 1, 0
        %v790 = vsel %vm726, 1, 0
        %v791 = vsel %vm727, 1, 0
        %v792 = vsel %vm728, 1, 0
        %v793 = vsel %vm729, 1, 0
        %v794 = vsel %vm730, 1, 0
        %v795 = vsel %vm731, 1, 0
        %v796 = vsel %vm732, 1, 0
        %v797 = vsel %vm733, 1, 0
        %v798 = vsel %vm734, 1, 0
        %v799 = vsel %vm735, 1, 0
        %v800 = vsel %vm736, 1, 0
        %v801 = vsel %vm737, 1, 0
        %v802 = vsel %vm738, 1, 0
        %v803 = vsel %vm739, 1, 0
        %v804 = vsel %vm740, 1, 0
        %v805 = vsel %vm741, 1, 0
        %v806 = vsel %vm742, 1, 0
        %v807 = vsel %vm743, 1, 0
        %v808 = vsel %vm744, 1, 0
        %v809 = vsel %vm745, 1, 0
        %v810 = vsel %vm746, 1, 0
        %v811 = vsel %vm747, 1, 0
        %v812 = vsel %vm748, 1, 0
        %v813 = vsel %vm749, 1, 0
        %v814 = vsel %vm750, 1, 0
        %v815 = vsel %vm751, 1, 0
        %v816 = vsel %vm752, 1, 0
        %v817 = vsel %vm753, 1, 0
        %v818 = vsel %vm754, 1, 0
        %v819 = vsel %vm755, 1, 0
        %v820 = vsel %vm756, 1, 0
        %v821 = vsel %vm757, 1, 0
        %v822 = vsel %vm758, 1, 0
        %v823 = vsel %vm759, 1, 0
        %v824 = vsel %vm760, 1, 0
        %v825 = vsel %vm761, 1, 0
        %v826 = vsel %vm762, 1, 0
        %v827 = vsel %vm763, 1, 0
        %v828 = vsel %vm764, 1, 0
        %v829 = vsel %vm765, 1, 0
        %v830 = vsel %vm766, 1, 0
        %v831 = vsel %vm767, 1, 0
        %v832 = vsel %vm768, 1, 0
        %v833 = vsel %vm769, 1, 0
        %v834 = vsel %vm770, 1, 0
        %v835 = vsel %vm771, 1, 0
        %v836 = vsel %vm772, 1, 0
        %v837 = vsel %vm773, 1, 0
        %v838 = vsel %vm774, 1, 0
        %v839 = vsel %vm775, 1, 0
        %v840 = vsel %vm776, 1, 0
        %v841 = vsel %vm777, 1, 0
        %v842 = vsel %vm778, 1, 0
        %v843 = vsel %vm779, 1, 0
        %v844 = vsel %vm780, 1, 0
        %v845 = vsel %vm781, 1, 0
        %v846 = vsel %vm782, 1, 0
        %v847 = vsel %vm783, 1, 0
        %v848 = vsel %vm784, 1, 0
        %v849 = vsel %vm785, 1, 0
        %v850 = vcvt.s32.f32 %v786
        %v851 = vcvt.s32.f32 %v787
        %v852 = vcvt.s32.f32 %v788
        %v853 = vcvt.s32.f32 %v789
        %v854 = vcvt.s32.f32 %v790
        %v855 = vcvt.s32.f32 %v791
        %v856 = vcvt.s32.f32 %v792
        %v857 = vcvt.s32.f32 %v793
        %v858 = vcvt.s32.f32 %v794
        %v859 = vcvt.s32.f32 %v795
        %v860 = vcvt.s32.f32 %v796
        %v861 = vcvt.s32.f32 %v797
        %v862 = vcvt.s32.f32 %v798
        %v863 = vcvt.s32.f32 %v799
        %v864 = vcvt.s32.f32 %v800
        %v865 = vcvt.s32.f32 %v801
        %v866 = vcvt.s32.f32 %v802
        %v867 = vcvt.s32.f32 %v803
        %v868 = vcvt.s32.f32 %v804
        %v869 = vcvt.s32.f32 %v805
        %v870 = vcvt.s32.f32 %v806
        %v871 = vcvt.s32.f32 %v807
        %v872 = vcvt.s32.f32 %v808
        %v873 = vcvt.s32.f32 %v809
        %v874 = vcvt.s32.f32 %v810
        %v875 = vcvt.s32.f32 %v811
        %v876 = vcvt.s32.f32 %v812
        %v877 = vcvt.s32.f32 %v813
        %v878 = vcvt.s32.f32 %v814
        %v879 = vcvt.s32.f32 %v815
        %v880 = vcvt.s32.f32 %v816
        %v881 = vcvt.s32.f32 %v817
        %v882 = vcvt.s32.f32 %v818
        %v883 = vcvt.s32.f32 %v819
        %v884 = vcvt.s32.f32 %v820
        %v885 = vcvt.s32.f32 %v821
        %v886 = vcvt.s32.f32 %v822
        %v887 = vcvt.s32.f32 %v823
        %v888 = vcvt.s32.f32 %v824
        %v889 = vcvt.s32.f32 %v825
        %v890 = vcvt.s32.f32 %v826
        %v891 = vcvt.s32.f32 %v827
        %v892 = vcvt.s32.f32 %v828
        %v893 = vcvt.s32.f32 %v829
        %v894 = vcvt.s32.f32 %v830
        %v895 = vcvt.s32.f32 %v831
        %v896 = vcvt.s32.f32 %v832
        %v897 = vcvt.s32.f32 %v833
        %v898 = vcvt.s32.f32 %v834
        %v899 = vcvt.s32.f32 %v835
        %v900 = vcvt.s32.f32 %v836
        %v901 = vcvt.s32.f32 %v837
        %v902 = vcvt.s32.f32 %v838
        %v903 = vcvt.s32.f32 %v839
        %v904 = vcvt.s32.f32 %v840
        %v905 = vcvt.s32.f32 %v841
        %v906 = vcvt.s32.f32 %v842
        %v907 = vcvt.s32.f32 %v843
        %v908 = vcvt.s32.f32 %v844
        %v909 = vcvt.s32.f32 %v845
        %v910 = vcvt.s32.f32 %v846
        %v911 = vcvt.s32.f32 %v847
        %v912 = vcvt.s32.f32 %v848
        %v913 = vcvt.s32.f32 %v849
        %v914 = vpack.c.bf16 %v852, %v850
        %v915 = vpack.c.bf16 %v853, %v851
        %v916 = vpack.c.bf16 %v856, %v854
        %v917 = vpack.c.bf16 %v857, %v855
        %v918 = vpack.c.bf16 %v860, %v858
        %v919 = vpack.c.bf16 %v861, %v859
        %v920 = vpack.c.bf16 %v864, %v862
        %v921 = vpack.c.bf16 %v865, %v863
        %v922 = vpack.c.bf16 %v868, %v866
        %v923 = vpack.c.bf16 %v869, %v867
        %v924 = vpack.c.bf16 %v872, %v870
        %v925 = vpack.c.bf16 %v873, %v871
        %v926 = vpack.c.bf16 %v876, %v874
        %v927 = vpack.c.bf16 %v877, %v875
        %v928 = vpack.c.bf16 %v880, %v878
        %v929 = vpack.c.bf16 %v881, %v879
        %v930 = vpack.c.bf16 %v884, %v882
        %v931 = vpack.c.bf16 %v885, %v883
        %v932 = vpack.c.bf16 %v888, %v886
        %v933 = vpack.c.bf16 %v889, %v887
        %v934 = vpack.c.bf16 %v892, %v890
        %v935 = vpack.c.bf16 %v893, %v891
        %v936 = vpack.c.bf16 %v896, %v894
        %v937 = vpack.c.bf16 %v897, %v895
        %v938 = vpack.c.bf16 %v900, %v898
        %v939 = vpack.c.bf16 %v901, %v899
        %v940 = vpack.c.bf16 %v904, %v902
        %v941 = vpack.c.bf16 %v905, %v903
        %v942 = vpack.c.bf16 %v908, %v906
        %v943 = vpack.c.bf16 %v909, %v907
        %v944 = vpack.c.bf16 %v912, %v910
        %v945 = vpack.c.bf16 %v913, %v911
        %946 = vset.pattern.permute.xlu0 2
        %947 = vperm.xlu0 %946, %v271
        %v948 = vpop.permute.xlu0 %947
        %949 = vset.pattern.permute.xlu0 2
        %950 = vperm.xlu0 %949, %v272
        %v951 = vpop.permute.xlu0 %950
        %952 = vset.pattern.permute.xlu0 2
        %953 = vperm.xlu0 %952, %v273
        %v954 = vpop.permute.xlu0 %953
        %955 = vset.pattern.permute.xlu0 2
        %956 = vperm.xlu0 %955, %v274
        %v957 = vpop.permute.xlu0 %956
        %958 = vset.pattern.permute.xlu0 2
        %959 = vperm.xlu0 %958, %v275
        %v960 = vpop.permute.xlu0 %959
        %961 = vset.pattern.permute.xlu0 2
        %962 = vperm.xlu0 %961, %v276
        %v963 = vpop.permute.xlu0 %962
        %964 = vset.pattern.permute.xlu0 2
        %965 = vperm.xlu0 %964, %v277
        %v966 = vpop.permute.xlu0 %965
        %967 = vset.pattern.permute.xlu0 2
        %968 = vperm.xlu0 %967, %v278
        %v969 = vpop.permute.xlu0 %968
        %970 = vset.pattern.permute.xlu0 2
        %971 = vperm.xlu0 %970, %v279
        %v972 = vpop.permute.xlu0 %971
        %973 = vset.pattern.permute.xlu0 2
        %974 = vperm.xlu0 %973, %v280
        %v975 = vpop.permute.xlu0 %974
        %976 = vset.pattern.permute.xlu0 2
        %977 = vperm.xlu0 %976, %v281
        %v978 = vpop.permute.xlu0 %977
        %979 = vset.pattern.permute.xlu0 2
        %980 = vperm.xlu0 %979, %v282
        %v981 = vpop.permute.xlu0 %980
        %982 = vset.pattern.permute.xlu0 2
        %983 = vperm.xlu0 %982, %v283
        %v984 = vpop.permute.xlu0 %983
        %985 = vset.pattern.permute.xlu0 2
        %986 = vperm.xlu0 %985, %v284
        %v987 = vpop.permute.xlu0 %986
        %988 = vset.pattern.permute.xlu0 2
        %989 = vperm.xlu0 %988, %v285
        %v990 = vpop.permute.xlu0 %989
        %991 = vset.pattern.permute.xlu0 2
        %992 = vperm.xlu0 %991, %v286
        %v993 = vpop.permute.xlu0 %992
        %994 = vset.pattern.permute.xlu0 2
        %995 = vperm.xlu0 %994, %v287
        %v996 = vpop.permute.xlu0 %995
        %997 = vset.pattern.permute.xlu0 2
        %998 = vperm.xlu0 %997, %v288
        %v999 = vpop.permute.xlu0 %998
        %1000 = vset.pattern.permute.xlu0 2
        %1001 = vperm.xlu0 %1000, %v289
        %v1002 = vpop.permute.xlu0 %1001
        %1003 = vset.pattern.permute.xlu0 2
        %1004 = vperm.xlu0 %1003, %v290
        %v1005 = vpop.permute.xlu0 %1004
        %1006 = vset.pattern.permute.xlu0 2
        %1007 = vperm.xlu0 %1006, %v291
        %v1008 = vpop.permute.xlu0 %1007
        %1009 = vset.pattern.permute.xlu0 2
        %1010 = vperm.xlu0 %1009, %v292
        %v1011 = vpop.permute.xlu0 %1010
        %1012 = vset.pattern.permute.xlu0 2
        %1013 = vperm.xlu0 %1012, %v293
        %v1014 = vpop.permute.xlu0 %1013
        %1015 = vset.pattern.permute.xlu0 2
        %1016 = vperm.xlu0 %1015, %v294
        %v1017 = vpop.permute.xlu0 %1016
        %1018 = vset.pattern.permute.xlu0 2
        %1019 = vperm.xlu0 %1018, %v295
        %v1020 = vpop.permute.xlu0 %1019
        %1021 = vset.pattern.permute.xlu0 2
        %1022 = vperm.xlu0 %1021, %v296
        %v1023 = vpop.permute.xlu0 %1022
        %1024 = vset.pattern.permute.xlu0 2
        %1025 = vperm.xlu0 %1024, %v297
        %v1026 = vpop.permute.xlu0 %1025
        %1027 = vset.pattern.permute.xlu0 2
        %1028 = vperm.xlu0 %1027, %v298
        %v1029 = vpop.permute.xlu0 %1028
        %1030 = vset.pattern.permute.xlu0 2
        %1031 = vperm.xlu0 %1030, %v299
        %v1032 = vpop.permute.xlu0 %1031
        %1033 = vset.pattern.permute.xlu0 2
        %1034 = vperm.xlu0 %1033, %v300
        %v1035 = vpop.permute.xlu0 %1034
        %1036 = vset.pattern.permute.xlu0 2
        %1037 = vperm.xlu0 %1036, %v301
        %v1038 = vpop.permute.xlu0 %1037
        %1039 = vset.pattern.permute.xlu0 2
        %1040 = vperm.xlu0 %1039, %v302
        %v1041 = vpop.permute.xlu0 %1040
        %vm1042 = vcmp.eq.s32.totalorder %v948, %v304
        %vm1043 = vcmp.eq.s32.totalorder %v948, %v305
        %vm1044 = vcmp.eq.s32.totalorder %v951, %v304
        %vm1045 = vcmp.eq.s32.totalorder %v951, %v305
        %vm1046 = vcmp.eq.s32.totalorder %v954, %v304
        %vm1047 = vcmp.eq.s32.totalorder %v954, %v305
        %vm1048 = vcmp.eq.s32.totalorder %v957, %v304
        %vm1049 = vcmp.eq.s32.totalorder %v957, %v305
        %vm1050 = vcmp.eq.s32.totalorder %v960, %v304
        %vm1051 = vcmp.eq.s32.totalorder %v960, %v305
        %vm1052 = vcmp.eq.s32.totalorder %v963, %v304
        %vm1053 = vcmp.eq.s32.totalorder %v963, %v305
        %vm1054 = vcmp.eq.s32.totalorder %v966, %v304
        %vm1055 = vcmp.eq.s32.totalorder %v966, %v305
        %vm1056 = vcmp.eq.s32.totalorder %v969, %v304
        %vm1057 = vcmp.eq.s32.totalorder %v969, %v305
        %vm1058 = vcmp.eq.s32.totalorder %v972, %v304
        %vm1059 = vcmp.eq.s32.totalorder %v972, %v305
        %vm1060 = vcmp.eq.s32.totalorder %v975, %v304
        %vm1061 = vcmp.eq.s32.totalorder %v975, %v305
        %vm1062 = vcmp.eq.s32.totalorder %v978, %v304
        %vm1063 = vcmp.eq.s32.totalorder %v978, %v305
        %vm1064 = vcmp.eq.s32.totalorder %v981, %v304
        %vm1065 = vcmp.eq.s32.totalorder %v981, %v305
        %vm1066 = vcmp.eq.s32.totalorder %v984, %v304
        %vm1067 = vcmp.eq.s32.totalorder %v984, %v305
        %vm1068 = vcmp.eq.s32.totalorder %v987, %v304
        %vm1069 = vcmp.eq.s32.totalorder %v987, %v305
        %vm1070 = vcmp.eq.s32.totalorder %v990, %v304
        %vm1071 = vcmp.eq.s32.totalorder %v990, %v305
        %vm1072 = vcmp.eq.s32.totalorder %v993, %v304
        %vm1073 = vcmp.eq.s32.totalorder %v993, %v305
        %vm1074 = vcmp.eq.s32.totalorder %v996, %v304
        %vm1075 = vcmp.eq.s32.totalorder %v996, %v305
        %vm1076 = vcmp.eq.s32.totalorder %v999, %v304
        %vm1077 = vcmp.eq.s32.totalorder %v999, %v305
        %vm1078 = vcmp.eq.s32.totalorder %v1002, %v304
        %vm1079 = vcmp.eq.s32.totalorder %v1002, %v305
        %vm1080 = vcmp.eq.s32.totalorder %v1005, %v304
        %vm1081 = vcmp.eq.s32.totalorder %v1005, %v305
        %vm1082 = vcmp.eq.s32.totalorder %v1008, %v304
        %vm1083 = vcmp.eq.s32.totalorder %v1008, %v305
        %vm1084 = vcmp.eq.s32.totalorder %v1011, %v304
        %vm1085 = vcmp.eq.s32.totalorder %v1011, %v305
        %vm1086 = vcmp.eq.s32.totalorder %v1014, %v304
        %vm1087 = vcmp.eq.s32.totalorder %v1014, %v305
        %vm1088 = vcmp.eq.s32.totalorder %v1017, %v304
        %vm1089 = vcmp.eq.s32.totalorder %v1017, %v305
        %vm1090 = vcmp.eq.s32.totalorder %v1020, %v304
        %vm1091 = vcmp.eq.s32.totalorder %v1020, %v305
        %vm1092 = vcmp.eq.s32.totalorder %v1023, %v304
        %vm1093 = vcmp.eq.s32.totalorder %v1023, %v305
        %vm1094 = vcmp.eq.s32.totalorder %v1026, %v304
        %vm1095 = vcmp.eq.s32.totalorder %v1026, %v305
        %vm1096 = vcmp.eq.s32.totalorder %v1029, %v304
        %vm1097 = vcmp.eq.s32.totalorder %v1029, %v305
        %vm1098 = vcmp.eq.s32.totalorder %v1032, %v304
        %vm1099 = vcmp.eq.s32.totalorder %v1032, %v305
        %vm1100 = vcmp.eq.s32.totalorder %v1035, %v304
        %vm1101 = vcmp.eq.s32.totalorder %v1035, %v305
        %vm1102 = vcmp.eq.s32.totalorder %v1038, %v304
        %vm1103 = vcmp.eq.s32.totalorder %v1038, %v305
        %vm1104 = vcmp.eq.s32.totalorder %v1041, %v304
        %vm1105 = vcmp.eq.s32.totalorder %v1041, %v305
        %v1106 = vsel %vm1042, 1, 0
        %v1107 = vsel %vm1043, 1, 0
        %v1108 = vsel %vm1044, 1, 0
        %v1109 = vsel %vm1045, 1, 0
        %v1110 = vsel %vm1046, 1, 0
        %v1111 = vsel %vm1047, 1, 0
        %v1112 = vsel %vm1048, 1, 0
        %v1113 = vsel %vm1049, 1, 0
        %v1114 = vsel %vm1050, 1, 0
        %v1115 = vsel %vm1051, 1, 0
        %v1116 = vsel %vm1052, 1, 0
        %v1117 = vsel %vm1053, 1, 0
        %v1118 = vsel %vm1054, 1, 0
        %v1119 = vsel %vm1055, 1, 0
        %v1120 = vsel %vm1056, 1, 0
        %v1121 = vsel %vm1057, 1, 0
        %v1122 = vsel %vm1058, 1, 0
        %v1123 = vsel %vm1059, 1, 0
        %v1124 = vsel %vm1060, 1, 0
        %v1125 = vsel %vm1061, 1, 0
        %v1126 = vsel %vm1062, 1, 0
        %v1127 = vsel %vm1063, 1, 0
        %v1128 = vsel %vm1064, 1, 0
        %v1129 = vsel %vm1065, 1, 0
        %v1130 = vsel %vm1066, 1, 0
        %v1131 = vsel %vm1067, 1, 0
        %v1132 = vsel %vm1068, 1, 0
        %v1133 = vsel %vm1069, 1, 0
        %v1134 = vsel %vm1070, 1, 0
        %v1135 = vsel %vm1071, 1, 0
        %v1136 = vsel %vm1072, 1, 0
        %v1137 = vsel %vm1073, 1, 0
        %v1138 = vsel %vm1074, 1, 0
        %v1139 = vsel %vm1075, 1, 0
        %v1140 = vsel %vm1076, 1, 0
        %v1141 = vsel %vm1077, 1, 0
        %v1142 = vsel %vm1078, 1, 0
        %v1143 = vsel %vm1079, 1, 0
        %v1144 = vsel %vm1080, 1, 0
        %v1145 = vsel %vm1081, 1, 0
        %v1146 = vsel %vm1082, 1, 0
        %v1147 = vsel %vm1083, 1, 0
        %v1148 = vsel %vm1084, 1, 0
        %v1149 = vsel %vm1085, 1, 0
        %v1150 = vsel %vm1086, 1, 0
        %v1151 = vsel %vm1087, 1, 0
        %v1152 = vsel %vm1088, 1, 0
        %v1153 = vsel %vm1089, 1, 0
        %v1154 = vsel %vm1090, 1, 0
        %v1155 = vsel %vm1091, 1, 0
        %v1156 = vsel %vm1092, 1, 0
        %v1157 = vsel %vm1093, 1, 0
        %v1158 = vsel %vm1094, 1, 0
        %v1159 = vsel %vm1095, 1, 0
        %v1160 = vsel %vm1096, 1, 0
        %v1161 = vsel %vm1097, 1, 0
        %v1162 = vsel %vm1098, 1, 0
        %v1163 = vsel %vm1099, 1, 0
        %v1164 = vsel %vm1100, 1, 0
        %v1165 = vsel %vm1101, 1, 0
        %v1166 = vsel %vm1102, 1, 0
        %v1167 = vsel %vm1103, 1, 0
        %v1168 = vsel %vm1104, 1, 0
        %v1169 = vsel %vm1105, 1, 0
        %v1170 = vcvt.s32.f32 %v1106
        %v1171 = vcvt.s32.f32 %v1107
        %v1172 = vcvt.s32.f32 %v1108
        %v1173 = vcvt.s32.f32 %v1109
        %v1174 = vcvt.s32.f32 %v1110
        %v1175 = vcvt.s32.f32 %v1111
        %v1176 = vcvt.s32.f32 %v1112
        %v1177 = vcvt.s32.f32 %v1113
        %v1178 = vcvt.s32.f32 %v1114
        %v1179 = vcvt.s32.f32 %v1115
        %v1180 = vcvt.s32.f32 %v1116
        %v1181 = vcvt.s32.f32 %v1117
        %v1182 = vcvt.s32.f32 %v1118
        %v1183 = vcvt.s32.f32 %v1119
        %v1184 = vcvt.s32.f32 %v1120
        %v1185 = vcvt.s32.f32 %v1121
        %v1186 = vcvt.s32.f32 %v1122
        %v1187 = vcvt.s32.f32 %v1123
        %v1188 = vcvt.s32.f32 %v1124
        %v1189 = vcvt.s32.f32 %v1125
        %v1190 = vcvt.s32.f32 %v1126
        %v1191 = vcvt.s32.f32 %v1127
        %v1192 = vcvt.s32.f32 %v1128
        %v1193 = vcvt.s32.f32 %v1129
        %v1194 = vcvt.s32.f32 %v1130
        %v1195 = vcvt.s32.f32 %v1131
        %v1196 = vcvt.s32.f32 %v1132
        %v1197 = vcvt.s32.f32 %v1133
        %v1198 = vcvt.s32.f32 %v1134
        %v1199 = vcvt.s32.f32 %v1135
        %v1200 = vcvt.s32.f32 %v1136
        %v1201 = vcvt.s32.f32 %v1137
        %v1202 = vcvt.s32.f32 %v1138
        %v1203 = vcvt.s32.f32 %v1139
        %v1204 = vcvt.s32.f32 %v1140
        %v1205 = vcvt.s32.f32 %v1141
        %v1206 = vcvt.s32.f32 %v1142
        %v1207 = vcvt.s32.f32 %v1143
        %v1208 = vcvt.s32.f32 %v1144
        %v1209 = vcvt.s32.f32 %v1145
        %v1210 = vcvt.s32.f32 %v1146
        %v1211 = vcvt.s32.f32 %v1147
        %v1212 = vcvt.s32.f32 %v1148
        %v1213 = vcvt.s32.f32 %v1149
        %v1214 = vcvt.s32.f32 %v1150
        %v1215 = vcvt.s32.f32 %v1151
        %v1216 = vcvt.s32.f32 %v1152
        %v1217 = vcvt.s32.f32 %v1153
        %v1218 = vcvt.s32.f32 %v1154
        %v1219 = vcvt.s32.f32 %v1155
        %v1220 = vcvt.s32.f32 %v1156
        %v1221 = vcvt.s32.f32 %v1157
        %v1222 = vcvt.s32.f32 %v1158
        %v1223 = vcvt.s32.f32 %v1159
        %v1224 = vcvt.s32.f32 %v1160
        %v1225 = vcvt.s32.f32 %v1161
        %v1226 = vcvt.s32.f32 %v1162
        %v1227 = vcvt.s32.f32 %v1163
        %v1228 = vcvt.s32.f32 %v1164
        %v1229 = vcvt.s32.f32 %v1165
        %v1230 = vcvt.s32.f32 %v1166
        %v1231 = vcvt.s32.f32 %v1167
        %v1232 = vcvt.s32.f32 %v1168
        %v1233 = vcvt.s32.f32 %v1169
        %v1234 = vpack.c.bf16 %v1172, %v1170
        %v1235 = vpack.c.bf16 %v1173, %v1171
        %v1236 = vpack.c.bf16 %v1176, %v1174
        %v1237 = vpack.c.bf16 %v1177, %v1175
        %v1238 = vpack.c.bf16 %v1180, %v1178
        %v1239 = vpack.c.bf16 %v1181, %v1179
        %v1240 = vpack.c.bf16 %v1184, %v1182
        %v1241 = vpack.c.bf16 %v1185, %v1183
        %v1242 = vpack.c.bf16 %v1188, %v1186
        %v1243 = vpack.c.bf16 %v1189, %v1187
        %v1244 = vpack.c.bf16 %v1192, %v1190
        %v1245 = vpack.c.bf16 %v1193, %v1191
        %v1246 = vpack.c.bf16 %v1196, %v1194
        %v1247 = vpack.c.bf16 %v1197, %v1195
        %v1248 = vpack.c.bf16 %v1200, %v1198
        %v1249 = vpack.c.bf16 %v1201, %v1199
        %v1250 = vpack.c.bf16 %v1204, %v1202
        %v1251 = vpack.c.bf16 %v1205, %v1203
        %v1252 = vpack.c.bf16 %v1208, %v1206
        %v1253 = vpack.c.bf16 %v1209, %v1207
        %v1254 = vpack.c.bf16 %v1212, %v1210
        %v1255 = vpack.c.bf16 %v1213, %v1211
        %v1256 = vpack.c.bf16 %v1216, %v1214
        %v1257 = vpack.c.bf16 %v1217, %v1215
        %v1258 = vpack.c.bf16 %v1220, %v1218
        %v1259 = vpack.c.bf16 %v1221, %v1219
        %v1260 = vpack.c.bf16 %v1224, %v1222
        %v1261 = vpack.c.bf16 %v1225, %v1223
        %v1262 = vpack.c.bf16 %v1228, %v1226
        %v1263 = vpack.c.bf16 %v1229, %v1227
        %v1264 = vpack.c.bf16 %v1232, %v1230
        %v1265 = vpack.c.bf16 %v1233, %v1231
        %v1266 = vld [vmem:[%s269] sm:$0xf]
        %v1267 = vld [vmem:[%s269 + $0x4] sm:$0xf]
        %v1268 = vld [vmem:[%s269 + $0x8] sm:$0xf]
        %v1269 = vld [vmem:[%s269 + $0xc] sm:$0xf]
        %v1270 = vld [vmem:[%s269 + $0x10] sm:$0xf]
        %v1271 = vld [vmem:[%s269 + $0x14] sm:$0xf]
        %v1272 = vld [vmem:[%s269 + $0x18] sm:$0xf]
        %v1273 = vld [vmem:[%s269 + $0x1c] sm:$0xf]
        %v1274 = vld [vmem:[%s269 + $0x20] sm:$0xf]
        %v1275 = vld [vmem:[%s269 + $0x24] sm:$0xf]
        %v1276 = vld [vmem:[%s269 + $0x28] sm:$0xf]
        %v1277 = vld [vmem:[%s269 + $0x2c] sm:$0xf]
        %v1278 = vld [vmem:[%s269 + $0x30] sm:$0xf]
        %v1279 = vld [vmem:[%s269 + $0x34] sm:$0xf]
        %v1280 = vld [vmem:[%s269 + $0x38] sm:$0xf]
        %v1281 = vld [vmem:[%s269 + $0x3c] sm:$0xf]
        %v1282 = vld [vmem:[%s269 + $0x40] sm:$0xf]
        %v1283 = vld [vmem:[%s269 + $0x44] sm:$0xf]
        %v1284 = vld [vmem:[%s269 + $0x48] sm:$0xf]
        %v1285 = vld [vmem:[%s269 + $0x4c] sm:$0xf]
        %v1286 = vld [vmem:[%s269 + $0x50] sm:$0xf]
        %v1287 = vld [vmem:[%s269 + $0x54] sm:$0xf]
        %v1288 = vld [vmem:[%s269 + $0x58] sm:$0xf]
        %v1289 = vld [vmem:[%s269 + $0x5c] sm:$0xf]
        %v1290 = vld [vmem:[%s269 + $0x60] sm:$0xf]
        %v1291 = vld [vmem:[%s269 + $0x64] sm:$0xf]
        %v1292 = vld [vmem:[%s269 + $0x68] sm:$0xf]
        %v1293 = vld [vmem:[%s269 + $0x6c] sm:$0xf]
        %v1294 = vld [vmem:[%s269 + $0x70] sm:$0xf]
        %v1295 = vld [vmem:[%s269 + $0x74] sm:$0xf]
        %v1296 = vld [vmem:[%s269 + $0x78] sm:$0xf]
        %v1297 = vld [vmem:[%s269 + $0x7c] sm:$0xf]
        %v1330 = vunpack.c.l.b16 %v1266
        %v1331 = vunpack.c.l.b16 %v1267
        %v1332 = vunpack.c.l.b16 %v1268
        %v1333 = vunpack.c.l.b16 %v1269
        %v1334 = vunpack.c.l.b16 %v1270
        %v1335 = vunpack.c.l.b16 %v1271
        %v1336 = vunpack.c.l.b16 %v1272
        %v1337 = vunpack.c.l.b16 %v1273
        %v1338 = vunpack.c.l.b16 %v1274
        %v1339 = vunpack.c.l.b16 %v1275
        %v1340 = vunpack.c.l.b16 %v1276
        %v1341 = vunpack.c.l.b16 %v1277
        %v1342 = vunpack.c.l.b16 %v1278
        %v1343 = vunpack.c.l.b16 %v1279
        %v1344 = vunpack.c.l.b16 %v1280
        %v1345 = vunpack.c.l.b16 %v1281
        %v1346 = vunpack.c.l.b16 %v1282
        %v1347 = vunpack.c.l.b16 %v1283
        %v1348 = vunpack.c.l.b16 %v1284
        %v1349 = vunpack.c.l.b16 %v1285
        %v1350 = vunpack.c.l.b16 %v1286
        %v1351 = vunpack.c.l.b16 %v1287
        %v1352 = vunpack.c.l.b16 %v1288
        %v1353 = vunpack.c.l.b16 %v1289
        %v1354 = vunpack.c.l.b16 %v1290
        %v1355 = vunpack.c.l.b16 %v1291
        %v1356 = vunpack.c.l.b16 %v1292
        %v1357 = vunpack.c.l.b16 %v1293
        %v1358 = vunpack.c.l.b16 %v1294
        %v1359 = vunpack.c.l.b16 %v1295
        %v1360 = vunpack.c.l.b16 %v1296
        %v1361 = vunpack.c.l.b16 %v1297
        %v1362 = vpack.c.b16 %v1331, %v1330
        %v1363 = vpack.c.b16 %v1333, %v1332
        %v1364 = vpack.c.b16 %v1335, %v1334
        %v1365 = vpack.c.b16 %v1337, %v1336
        %v1366 = vpack.c.b16 %v1339, %v1338
        %v1367 = vpack.c.b16 %v1341, %v1340
        %v1368 = vpack.c.b16 %v1343, %v1342
        %v1369 = vpack.c.b16 %v1345, %v1344
        %v1370 = vpack.c.b16 %v1347, %v1346
        %v1371 = vpack.c.b16 %v1349, %v1348
        %v1372 = vpack.c.b16 %v1351, %v1350
        %v1373 = vpack.c.b16 %v1353, %v1352
        %v1374 = vpack.c.b16 %v1355, %v1354
        %v1375 = vpack.c.b16 %v1357, %v1356
        %v1376 = vpack.c.b16 %v1359, %v1358
        %v1377 = vpack.c.b16 %v1361, %v1360
        %1394 = vmatprep.subr.bf16.mxu0 0
        %1395 = vmatpush1.bf16.msra.mxu0 %v1369
        %1396 = vmatprep.subr.bf16.mxu0 0
        %1397 = vmatpush1.bf16.msra.mxu0 %v1368
        %1398 = vmatprep.subr.bf16.mxu0 0
        %1399 = vmatpush1.bf16.msra.mxu0 %v1367
        %1400 = vmatprep.subr.bf16.mxu0 0
        %1401 = vmatpush1.bf16.msra.mxu0 %v1366
        %1402 = vmatprep.subr.bf16.mxu0 0
        %1403 = vmatpush1.bf16.msra.mxu0 %v1365
        %1404 = vmatprep.subr.bf16.mxu0 0
        %1405 = vmatpush1.bf16.msra.mxu0 %v1364
        %1406 = vmatprep.subr.bf16.mxu0 0
        %1407 = vmatpush1.bf16.msra.mxu0 %v1363
        %1408 = vmatprep.subr.bf16.mxu0 0
        %1409 = vmatpush1.bf16.msra.mxu0 %v1362
        %1410 = vmatprep.subr.bf16.mxu0 0
        %1411 = vmatpush2.bf16.msra.mxu0 %v1377
        %1412 = vmatprep.subr.bf16.mxu0 0
        %1413 = vmatpush2.bf16.msra.mxu0 %v1376
        %1414 = vmatprep.subr.bf16.mxu0 0
        %1415 = vmatpush2.bf16.msra.mxu0 %v1375
        %1416 = vmatprep.subr.bf16.mxu0 0
        %1417 = vmatpush2.bf16.msra.mxu0 %v1374
        %1418 = vmatprep.subr.bf16.mxu0 0
        %1419 = vmatpush2.bf16.msra.mxu0 %v1373
        %1420 = vmatprep.subr.bf16.mxu0 0
        %1421 = vmatpush2.bf16.msra.mxu0 %v1372
        %1422 = vmatprep.subr.bf16.mxu0 0
        %1423 = vmatpush2.bf16.msra.mxu0 %v1371
        %1424 = vmatprep.subr.bf16.mxu0 0
        %1425 = vmatpush2.bf16.msra.mxu0 %v1370
        %1426 = vmatprep.mubr.bf16.mxu0 %v595
        %1427 = vmatmul.mubr.bf16.gmra.mxu0 %v594
        %v1428 = vpop.f32.mrf.mxu0
        %v1429 = vadd.f32 0.0, %v1428
        %v1430 = vpop.f32.mrf.mxu0
        %v1431 = vpop.f32.mrf.mxu0
        %v1432 = vadd.f32 0.0, %v1431
        %v1433 = vpop.f32.mrf.mxu0
        %1434 = vmatprep.mubr.bf16.mxu0 %v597
        %1435 = vmatmul.mubr.bf16.gmra.mxu0 %v596
        %v1436 = vpop.f32.mrf.mxu0
        %v1437 = vadd.f32 0.0, %v1436
        %v1438 = vpop.f32.mrf.mxu0
        %v1439 = vpop.f32.mrf.mxu0
        %v1440 = vadd.f32 0.0, %v1439
        %v1441 = vpop.f32.mrf.mxu0
        %1442 = vmatprep.mubr.bf16.mxu0 %v599
        %1443 = vmatmul.mubr.bf16.gmra.mxu0 %v598
        %v1444 = vpop.f32.mrf.mxu0
        %v1445 = vadd.f32 0.0, %v1444
        %v1446 = vpop.f32.mrf.mxu0
        %v1447 = vpop.f32.mrf.mxu0
        %v1448 = vadd.f32 0.0, %v1447
        %v1449 = vpop.f32.mrf.mxu0
        %1450 = vmatprep.mubr.bf16.mxu0 %v601
        %1451 = vmatmul.mubr.bf16.gmra.mxu0 %v600
        %v1452 = vpop.f32.mrf.mxu0
        %v1453 = vadd.f32 0.0, %v1452
        %v1454 = vpop.f32.mrf.mxu0
        %v1455 = vpop.f32.mrf.mxu0
        %v1456 = vadd.f32 0.0, %v1455
        %v1457 = vpop.f32.mrf.mxu0
        %1458 = vmatprep.mubr.bf16.mxu0 %v603
        %1459 = vmatmul.mubr.bf16.gmra.mxu0 %v602
        %v1460 = vpop.f32.mrf.mxu0
        %v1461 = vadd.f32 0.0, %v1460
        %v1462 = vpop.f32.mrf.mxu0
        %v1463 = vpop.f32.mrf.mxu0
        %v1464 = vadd.f32 0.0, %v1463
        %v1465 = vpop.f32.mrf.mxu0
        %1466 = vmatprep.mubr.bf16.mxu0 %v605
        %1467 = vmatmul.mubr.bf16.gmra.mxu0 %v604
        %v1468 = vpop.f32.mrf.mxu0
        %v1469 = vadd.f32 0.0, %v1468
        %v1470 = vpop.f32.mrf.mxu0
        %v1471 = vpop.f32.mrf.mxu0
        %v1472 = vadd.f32 0.0, %v1471
        %v1473 = vpop.f32.mrf.mxu0
        %1474 = vmatprep.mubr.bf16.mxu0 %v607
        %1475 = vmatmul.mubr.bf16.gmra.mxu0 %v606
        %v1476 = vpop.f32.mrf.mxu0
        %v1477 = vadd.f32 0.0, %v1476
        %v1478 = vpop.f32.mrf.mxu0
        %v1479 = vpop.f32.mrf.mxu0
        %v1480 = vadd.f32 0.0, %v1479
        %v1481 = vpop.f32.mrf.mxu0
        %1482 = vmatprep.mubr.bf16.mxu0 %v609
        %1483 = vmatmul.mubr.bf16.gmra.mxu0 %v608
        %v1484 = vpop.f32.mrf.mxu0
        %v1485 = vadd.f32 0.0, %v1484
        %v1486 = vpop.f32.mrf.mxu0
        %v1487 = vpop.f32.mrf.mxu0
        %v1488 = vadd.f32 0.0, %v1487
        %v1489 = vpop.f32.mrf.mxu0
        %1490 = vmatprep.mubr.bf16.mxu0 %v611
        %1491 = vmatmul.mubr.bf16.gmra.mxu0 %v610
        %v1492 = vpop.f32.mrf.mxu0
        %v1493 = vadd.f32 0.0, %v1492
        %v1494 = vpop.f32.mrf.mxu0
        %v1495 = vpop.f32.mrf.mxu0
        %v1496 = vadd.f32 0.0, %v1495
        %v1497 = vpop.f32.mrf.mxu0
        %1498 = vmatprep.mubr.bf16.mxu0 %v613
        %1499 = vmatmul.mubr.bf16.gmra.mxu0 %v612
        %v1500 = vpop.f32.mrf.mxu0
        %v1501 = vadd.f32 0.0, %v1500
        %v1502 = vpop.f32.mrf.mxu0
        %v1503 = vpop.f32.mrf.mxu0
        %v1504 = vadd.f32 0.0, %v1503
        %v1505 = vpop.f32.mrf.mxu0
        %1506 = vmatprep.mubr.bf16.mxu0 %v615
        %1507 = vmatmul.mubr.bf16.gmra.mxu0 %v614
        %v1508 = vpop.f32.mrf.mxu0
        %v1509 = vadd.f32 0.0, %v1508
        %v1510 = vpop.f32.mrf.mxu0
        %v1511 = vpop.f32.mrf.mxu0
        %v1512 = vadd.f32 0.0, %v1511
        %v1513 = vpop.f32.mrf.mxu0
        %1514 = vmatprep.mubr.bf16.mxu0 %v617
        %1515 = vmatmul.mubr.bf16.gmra.mxu0 %v616
        %v1516 = vpop.f32.mrf.mxu0
        %v1517 = vadd.f32 0.0, %v1516
        %v1518 = vpop.f32.mrf.mxu0
        %v1519 = vpop.f32.mrf.mxu0
        %v1520 = vadd.f32 0.0, %v1519
        %v1521 = vpop.f32.mrf.mxu0
        %1522 = vmatprep.mubr.bf16.mxu0 %v619
        %1523 = vmatmul.mubr.bf16.gmra.mxu0 %v618
        %v1524 = vpop.f32.mrf.mxu0
        %v1525 = vadd.f32 0.0, %v1524
        %v1526 = vpop.f32.mrf.mxu0
        %v1527 = vpop.f32.mrf.mxu0
        %v1528 = vadd.f32 0.0, %v1527
        %v1529 = vpop.f32.mrf.mxu0
        %1530 = vmatprep.mubr.bf16.mxu0 %v621
        %1531 = vmatmul.mubr.bf16.gmra.mxu0 %v620
        %v1532 = vpop.f32.mrf.mxu0
        %v1533 = vadd.f32 0.0, %v1532
        %v1534 = vpop.f32.mrf.mxu0
        %v1535 = vpop.f32.mrf.mxu0
        %v1536 = vadd.f32 0.0, %v1535
        %v1537 = vpop.f32.mrf.mxu0
        %1538 = vmatprep.mubr.bf16.mxu0 %v623
        %1539 = vmatmul.mubr.bf16.gmra.mxu0 %v622
        %v1540 = vpop.f32.mrf.mxu0
        %v1541 = vadd.f32 0.0, %v1540
        %v1542 = vpop.f32.mrf.mxu0
        %v1543 = vpop.f32.mrf.mxu0
        %v1544 = vadd.f32 0.0, %v1543
        %v1545 = vpop.f32.mrf.mxu0
        %1546 = vmatprep.mubr.bf16.mxu0 %v625
        %1547 = vmatmul.mubr.bf16.gmra.mxu0 %v624
        %v1548 = vpop.f32.mrf.mxu0
        %v1549 = vadd.f32 0.0, %v1548
        %v1550 = vpop.f32.mrf.mxu0
        %v1551 = vpop.f32.mrf.mxu0
        %v1552 = vadd.f32 0.0, %v1551
        %v1553 = vpop.f32.mrf.mxu0
        %1554 = vdwg.mxu0
        %v1555 = vpack.c.bf16 %v1432, %v1429
        %v1556 = vpack.c.bf16 %v1440, %v1437
        %v1557 = vpack.c.bf16 %v1448, %v1445
        %v1558 = vpack.c.bf16 %v1456, %v1453
        %v1559 = vpack.c.bf16 %v1464, %v1461
        %v1560 = vpack.c.bf16 %v1472, %v1469
        %v1561 = vpack.c.bf16 %v1480, %v1477
        %v1562 = vpack.c.bf16 %v1488, %v1485
        %v1563 = vpack.c.bf16 %v1496, %v1493
        %v1564 = vpack.c.bf16 %v1504, %v1501
        %v1565 = vpack.c.bf16 %v1512, %v1509
        %v1566 = vpack.c.bf16 %v1520, %v1517
        %v1567 = vpack.c.bf16 %v1528, %v1525
        %v1568 = vpack.c.bf16 %v1536, %v1533
        %v1569 = vpack.c.bf16 %v1544, %v1541
        %v1570 = vpack.c.bf16 %v1552, %v1549
        %v1571 = vld [vmem:[%s2] sm:$0xf]
        %1572 = vmatprep.subr.bf16.mxu0 0
        %1573 = vmatpush1.bf16.msra.mxu0 %v1369
        %1574 = vmatprep.subr.bf16.mxu0 0
        %1575 = vmatpush1.bf16.msra.mxu0 %v1368
        %1576 = vmatprep.subr.bf16.mxu0 0
        %1577 = vmatpush1.bf16.msra.mxu0 %v1367
        %1578 = vmatprep.subr.bf16.mxu0 0
        %1579 = vmatpush1.bf16.msra.mxu0 %v1366
        %1580 = vmatprep.subr.bf16.mxu0 0
        %1581 = vmatpush1.bf16.msra.mxu0 %v1365
        %1582 = vmatprep.subr.bf16.mxu0 0
        %1583 = vmatpush1.bf16.msra.mxu0 %v1364
        %1584 = vmatprep.subr.bf16.mxu0 0
        %1585 = vmatpush1.bf16.msra.mxu0 %v1363
        %1586 = vmatprep.subr.bf16.mxu0 0
        %1587 = vmatpush1.bf16.msra.mxu0 %v1362
        %1588 = vmatprep.subr.bf16.mxu0 0
        %1589 = vmatpush2.bf16.msra.mxu0 %v1377
        %1590 = vmatprep.subr.bf16.mxu0 0
        %1591 = vmatpush2.bf16.msra.mxu0 %v1376
        %1592 = vmatprep.subr.bf16.mxu0 0
        %1593 = vmatpush2.bf16.msra.mxu0 %v1375
        %1594 = vmatprep.subr.bf16.mxu0 0
        %1595 = vmatpush2.bf16.msra.mxu0 %v1374
        %1596 = vmatprep.subr.bf16.mxu0 0
        %1597 = vmatpush2.bf16.msra.mxu0 %v1373
        %1598 = vmatprep.subr.bf16.mxu0 0
        %1599 = vmatpush2.bf16.msra.mxu0 %v1372
        %1600 = vmatprep.subr.bf16.mxu0 0
        %1601 = vmatpush2.bf16.msra.mxu0 %v1371
        %1602 = vmatprep.subr.bf16.mxu0 0
        %1603 = vmatpush2.bf16.msra.mxu0 %v1370
        %1604 = vmatprep.mubr.bf16.mxu0 %v915
        %1605 = vmatmul.mubr.bf16.gmra.mxu0 %v914
        %v1606 = vpop.f32.mrf.mxu0
        %v1607 = vadd.f32 0.0, %v1606
        %v1608 = vpop.f32.mrf.mxu0
        %v1609 = vpop.f32.mrf.mxu0
        %v1610 = vadd.f32 0.0, %v1609
        %v1611 = vpop.f32.mrf.mxu0
        %1612 = vmatprep.mubr.bf16.mxu0 %v917
        %1613 = vmatmul.mubr.bf16.gmra.mxu0 %v916
        %v1614 = vpop.f32.mrf.mxu0
        %v1615 = vadd.f32 0.0, %v1614
        %v1616 = vpop.f32.mrf.mxu0
        %v1617 = vpop.f32.mrf.mxu0
        %v1618 = vadd.f32 0.0, %v1617
        %v1619 = vpop.f32.mrf.mxu0
        %1620 = vmatprep.mubr.bf16.mxu0 %v919
        %1621 = vmatmul.mubr.bf16.gmra.mxu0 %v918
        %v1622 = vpop.f32.mrf.mxu0
        %v1623 = vadd.f32 0.0, %v1622
        %v1624 = vpop.f32.mrf.mxu0
        %v1625 = vpop.f32.mrf.mxu0
        %v1626 = vadd.f32 0.0, %v1625
        %v1627 = vpop.f32.mrf.mxu0
        %1628 = vmatprep.mubr.bf16.mxu0 %v921
        %1629 = vmatmul.mubr.bf16.gmra.mxu0 %v920
        %v1630 = vpop.f32.mrf.mxu0
        %v1631 = vadd.f32 0.0, %v1630
        %v1632 = vpop.f32.mrf.mxu0
        %v1633 = vpop.f32.mrf.mxu0
        %v1634 = vadd.f32 0.0, %v1633
        %v1635 = vpop.f32.mrf.mxu0
        %1636 = vmatprep.mubr.bf16.mxu0 %v923
        %1637 = vmatmul.mubr.bf16.gmra.mxu0 %v922
        %v1638 = vpop.f32.mrf.mxu0
        %v1639 = vadd.f32 0.0, %v1638
        %v1640 = vpop.f32.mrf.mxu0
        %v1641 = vpop.f32.mrf.mxu0
        %v1642 = vadd.f32 0.0, %v1641
        %v1643 = vpop.f32.mrf.mxu0
        %1644 = vmatprep.mubr.bf16.mxu0 %v925
        %1645 = vmatmul.mubr.bf16.gmra.mxu0 %v924
        %v1646 = vpop.f32.mrf.mxu0
        %v1647 = vadd.f32 0.0, %v1646
        %v1648 = vpop.f32.mrf.mxu0
        %v1649 = vpop.f32.mrf.mxu0
        %v1650 = vadd.f32 0.0, %v1649
        %v1651 = vpop.f32.mrf.mxu0
        %1652 = vmatprep.mubr.bf16.mxu0 %v927
        %1653 = vmatmul.mubr.bf16.gmra.mxu0 %v926
        %v1654 = vpop.f32.mrf.mxu0
        %v1655 = vadd.f32 0.0, %v1654
        %v1656 = vpop.f32.mrf.mxu0
        %v1657 = vpop.f32.mrf.mxu0
        %v1658 = vadd.f32 0.0, %v1657
        %v1659 = vpop.f32.mrf.mxu0
        %1660 = vmatprep.mubr.bf16.mxu0 %v929
        %1661 = vmatmul.mubr.bf16.gmra.mxu0 %v928
        %v1662 = vpop.f32.mrf.mxu0
        %v1663 = vadd.f32 0.0, %v1662
        %v1664 = vpop.f32.mrf.mxu0
        %v1665 = vpop.f32.mrf.mxu0
        %v1666 = vadd.f32 0.0, %v1665
        %v1667 = vpop.f32.mrf.mxu0
        %1668 = vmatprep.mubr.bf16.mxu0 %v931
        %1669 = vmatmul.mubr.bf16.gmra.mxu0 %v930
        %v1670 = vpop.f32.mrf.mxu0
        %v1671 = vadd.f32 0.0, %v1670
        %v1672 = vpop.f32.mrf.mxu0
        %v1673 = vpop.f32.mrf.mxu0
        %v1674 = vadd.f32 0.0, %v1673
        %v1675 = vpop.f32.mrf.mxu0
        %1676 = vmatprep.mubr.bf16.mxu0 %v933
        %1677 = vmatmul.mubr.bf16.gmra.mxu0 %v932
        %v1678 = vpop.f32.mrf.mxu0
        %v1679 = vadd.f32 0.0, %v1678
        %v1680 = vpop.f32.mrf.mxu0
        %v1681 = vpop.f32.mrf.mxu0
        %v1682 = vadd.f32 0.0, %v1681
        %v1683 = vpop.f32.mrf.mxu0
        %1684 = vmatprep.mubr.bf16.mxu0 %v935
        %1685 = vmatmul.mubr.bf16.gmra.mxu0 %v934
        %v1686 = vpop.f32.mrf.mxu0
        %v1687 = vadd.f32 0.0, %v1686
        %v1688 = vpop.f32.mrf.mxu0
        %v1689 = vpop.f32.mrf.mxu0
        %v1690 = vadd.f32 0.0, %v1689
        %v1691 = vpop.f32.mrf.mxu0
        %1692 = vmatprep.mubr.bf16.mxu0 %v937
        %1693 = vmatmul.mubr.bf16.gmra.mxu0 %v936
        %v1694 = vpop.f32.mrf.mxu0
        %v1695 = vadd.f32 0.0, %v1694
        %v1696 = vpop.f32.mrf.mxu0
        %v1697 = vpop.f32.mrf.mxu0
        %v1698 = vadd.f32 0.0, %v1697
        %v1699 = vpop.f32.mrf.mxu0
        %1700 = vmatprep.mubr.bf16.mxu0 %v939
        %1701 = vmatmul.mubr.bf16.gmra.mxu0 %v938
        %v1702 = vpop.f32.mrf.mxu0
        %v1703 = vadd.f32 0.0, %v1702
        %v1704 = vpop.f32.mrf.mxu0
        %v1705 = vpop.f32.mrf.mxu0
        %v1706 = vadd.f32 0.0, %v1705
        %v1707 = vpop.f32.mrf.mxu0
        %1708 = vmatprep.mubr.bf16.mxu0 %v941
        %1709 = vmatmul.mubr.bf16.gmra.mxu0 %v940
        %v1710 = vpop.f32.mrf.mxu0
        %v1711 = vadd.f32 0.0, %v1710
        %v1712 = vpop.f32.mrf.mxu0
        %v1713 = vpop.f32.mrf.mxu0
        %v1714 = vadd.f32 0.0, %v1713
        %v1715 = vpop.f32.mrf.mxu0
        %1716 = vmatprep.mubr.bf16.mxu0 %v943
        %1717 = vmatmul.mubr.bf16.gmra.mxu0 %v942
        %v1718 = vpop.f32.mrf.mxu0
        %v1719 = vadd.f32 0.0, %v1718
        %v1720 = vpop.f32.mrf.mxu0
        %v1721 = vpop.f32.mrf.mxu0
        %v1722 = vadd.f32 0.0, %v1721
        %v1723 = vpop.f32.mrf.mxu0
        %1724 = vmatprep.mubr.bf16.mxu0 %v945
        %1725 = vmatmul.mubr.bf16.gmra.mxu0 %v944
        %v1726 = vpop.f32.mrf.mxu0
        %v1727 = vadd.f32 0.0, %v1726
        %v1728 = vpop.f32.mrf.mxu0
        %v1729 = vpop.f32.mrf.mxu0
        %v1730 = vadd.f32 0.0, %v1729
        %v1731 = vpop.f32.mrf.mxu0
        %1732 = vdwg.mxu0
        %v1733 = vpack.c.bf16 %v1610, %v1607
        %v1734 = vpack.c.bf16 %v1618, %v1615
        %v1735 = vpack.c.bf16 %v1626, %v1623
        %v1736 = vpack.c.bf16 %v1634, %v1631
        %v1737 = vpack.c.bf16 %v1642, %v1639
        %v1738 = vpack.c.bf16 %v1650, %v1647
        %v1739 = vpack.c.bf16 %v1658, %v1655
        %v1740 = vpack.c.bf16 %v1666, %v1663
        %v1741 = vpack.c.bf16 %v1674, %v1671
        %v1742 = vpack.c.bf16 %v1682, %v1679
        %v1743 = vpack.c.bf16 %v1690, %v1687
        %v1744 = vpack.c.bf16 %v1698, %v1695
        %v1745 = vpack.c.bf16 %v1706, %v1703
        %v1746 = vpack.c.bf16 %v1714, %v1711
        %v1747 = vpack.c.bf16 %v1722, %v1719
        %v1748 = vpack.c.bf16 %v1730, %v1727
        %s1749 = scalar_lea.vmem %s2, 4
        %v1750 = vld [vmem:[%s1749] sm:$0xf]
        %vm1751 = vcmask 64512
        %v1753 = vsel %vm1751, %v1733, 0
        %v1756 = vsel %vm1751, %v1734, 0
        %v1759 = vsel %vm1751, %v1735, 0
        %v1762 = vsel %vm1751, %v1736, 0
        %v1765 = vsel %vm1751, %v1737, 0
        %v1768 = vsel %vm1751, %v1738, 0
        %v1771 = vsel %vm1751, %v1739, 0
        %v1774 = vsel %vm1751, %v1740, 0
        %v1777 = vsel %vm1751, %v1741, 0
        %v1780 = vsel %vm1751, %v1742, 0
        %v1783 = vsel %vm1751, %v1743, 0
        %v1786 = vsel %vm1751, %v1744, 0
        %v1789 = vsel %vm1751, %v1745, 0
        %v1792 = vsel %vm1751, %v1746, 0
        %v1795 = vsel %vm1751, %v1747, 0
        %v1798 = vsel %vm1751, %v1748, 0
        %vm1800 = vcmask 1043456
        %v1802 = vsel %vm1800, %v1750, 0
        %1804 = vmatprep.subr.bf16.mxu0 0
        %1805 = vmatpush1.bf16.msra.mxu0 0
        %1806 = vmatprep.subr.bf16.mxu0 0
        %1807 = vmatpush1.bf16.msra.mxu0 0
        %1808 = vmatprep.subr.bf16.mxu0 0
        %1809 = vmatpush1.bf16.msra.mxu0 0
        %1810 = vmatprep.subr.bf16.mxu0 0
        %1811 = vmatpush1.bf16.msra.mxu0 0
        %1812 = vmatprep.subr.bf16.mxu0 0
        %1813 = vmatpush1.bf16.msra.mxu0 0
        %1814 = vmatprep.subr.bf16.mxu0 0
        %1815 = vmatpush1.bf16.msra.mxu0 0
        %1816 = vmatprep.subr.bf16.mxu0 0
        %1817 = vmatpush1.bf16.msra.mxu0 0
        %1818 = vmatprep.subr.bf16.mxu0 0
        %1819 = vmatpush1.bf16.msra.mxu0 %v1802
        %1820 = vmatprep.subr.bf16.mxu0 0
        %1821 = vmatpush2.bf16.msra.mxu0 0
        %1822 = vmatprep.subr.bf16.mxu0 0
        %1823 = vmatpush2.bf16.msra.mxu0 0
        %1824 = vmatprep.subr.bf16.mxu0 0
        %1825 = vmatpush2.bf16.msra.mxu0 0
        %1826 = vmatprep.subr.bf16.mxu0 0
        %1827 = vmatpush2.bf16.msra.mxu0 0
        %1828 = vmatprep.subr.bf16.mxu0 0
        %1829 = vmatpush2.bf16.msra.mxu0 0
        %1830 = vmatprep.subr.bf16.mxu0 0
        %1831 = vmatpush2.bf16.msra.mxu0 0
        %1832 = vmatprep.subr.bf16.mxu0 0
        %1833 = vmatpush2.bf16.msra.mxu0 0
        %1834 = vmatprep.subr.bf16.mxu0 0
        %1835 = vmatpush2.bf16.msra.mxu0 0
        %1836 = vmatprep.mubr.bf16.mxu0 0
        %1837 = vmatmul.mubr.bf16.gmra.mxu0 %v1753
        %v1838 = vpop.f32.mrf.mxu0
        %v1839 = vadd.f32 0.0, %v1838
        %v1840 = vpop.f32.mrf.mxu0
        %v1841 = vpop.f32.mrf.mxu0
        %v1842 = vadd.f32 0.0, %v1841
        %v1843 = vpop.f32.mrf.mxu0
        %1844 = vmatprep.mubr.bf16.mxu0 0
        %1845 = vmatmul.mubr.bf16.gmra.mxu0 %v1756
        %v1846 = vpop.f32.mrf.mxu0
        %v1847 = vadd.f32 0.0, %v1846
        %v1848 = vpop.f32.mrf.mxu0
        %v1849 = vpop.f32.mrf.mxu0
        %v1850 = vadd.f32 0.0, %v1849
        %v1851 = vpop.f32.mrf.mxu0
        %1852 = vmatprep.mubr.bf16.mxu0 0
        %1853 = vmatmul.mubr.bf16.gmra.mxu0 %v1759
        %v1854 = vpop.f32.mrf.mxu0
        %v1855 = vadd.f32 0.0, %v1854
        %v1856 = vpop.f32.mrf.mxu0
        %v1857 = vpop.f32.mrf.mxu0
        %v1858 = vadd.f32 0.0, %v1857
        %v1859 = vpop.f32.mrf.mxu0
        %1860 = vmatprep.mubr.bf16.mxu0 0
        %1861 = vmatmul.mubr.bf16.gmra.mxu0 %v1762
        %v1862 = vpop.f32.mrf.mxu0
        %v1863 = vadd.f32 0.0, %v1862
        %v1864 = vpop.f32.mrf.mxu0
        %v1865 = vpop.f32.mrf.mxu0
        %v1866 = vadd.f32 0.0, %v1865
        %v1867 = vpop.f32.mrf.mxu0
        %1868 = vmatprep.mubr.bf16.mxu0 0
        %1869 = vmatmul.mubr.bf16.gmra.mxu0 %v1765
        %v1870 = vpop.f32.mrf.mxu0
        %v1871 = vadd.f32 0.0, %v1870
        %v1872 = vpop.f32.mrf.mxu0
        %v1873 = vpop.f32.mrf.mxu0
        %v1874 = vadd.f32 0.0, %v1873
        %v1875 = vpop.f32.mrf.mxu0
        %1876 = vmatprep.mubr.bf16.mxu0 0
        %1877 = vmatmul.mubr.bf16.gmra.mxu0 %v1768
        %v1878 = vpop.f32.mrf.mxu0
        %v1879 = vadd.f32 0.0, %v1878
        %v1880 = vpop.f32.mrf.mxu0
        %v1881 = vpop.f32.mrf.mxu0
        %v1882 = vadd.f32 0.0, %v1881
        %v1883 = vpop.f32.mrf.mxu0
        %1884 = vmatprep.mubr.bf16.mxu0 0
        %1885 = vmatmul.mubr.bf16.gmra.mxu0 %v1771
        %v1886 = vpop.f32.mrf.mxu0
        %v1887 = vadd.f32 0.0, %v1886
        %v1888 = vpop.f32.mrf.mxu0
        %v1889 = vpop.f32.mrf.mxu0
        %v1890 = vadd.f32 0.0, %v1889
        %v1891 = vpop.f32.mrf.mxu0
        %1892 = vmatprep.mubr.bf16.mxu0 0
        %1893 = vmatmul.mubr.bf16.gmra.mxu0 %v1774
        %v1894 = vpop.f32.mrf.mxu0
        %v1895 = vadd.f32 0.0, %v1894
        %v1896 = vpop.f32.mrf.mxu0
        %v1897 = vpop.f32.mrf.mxu0
        %v1898 = vadd.f32 0.0, %v1897
        %v1899 = vpop.f32.mrf.mxu0
        %1900 = vmatprep.mubr.bf16.mxu0 0
        %1901 = vmatmul.mubr.bf16.gmra.mxu0 %v1777
        %v1902 = vpop.f32.mrf.mxu0
        %v1903 = vadd.f32 0.0, %v1902
        %v1904 = vpop.f32.mrf.mxu0
        %v1905 = vpop.f32.mrf.mxu0
        %v1906 = vadd.f32 0.0, %v1905
        %v1907 = vpop.f32.mrf.mxu0
        %1908 = vmatprep.mubr.bf16.mxu0 0
        %1909 = vmatmul.mubr.bf16.gmra.mxu0 %v1780
        %v1910 = vpop.f32.mrf.mxu0
        %v1911 = vadd.f32 0.0, %v1910
        %v1912 = vpop.f32.mrf.mxu0
        %v1913 = vpop.f32.mrf.mxu0
        %v1914 = vadd.f32 0.0, %v1913
        %v1915 = vpop.f32.mrf.mxu0
        %1916 = vmatprep.mubr.bf16.mxu0 0
        %1917 = vmatmul.mubr.bf16.gmra.mxu0 %v1783
        %v1918 = vpop.f32.mrf.mxu0
        %v1919 = vadd.f32 0.0, %v1918
        %v1920 = vpop.f32.mrf.mxu0
        %v1921 = vpop.f32.mrf.mxu0
        %v1922 = vadd.f32 0.0, %v1921
        %v1923 = vpop.f32.mrf.mxu0
        %1924 = vmatprep.mubr.bf16.mxu0 0
        %1925 = vmatmul.mubr.bf16.gmra.mxu0 %v1786
        %v1926 = vpop.f32.mrf.mxu0
        %v1927 = vadd.f32 0.0, %v1926
        %v1928 = vpop.f32.mrf.mxu0
        %v1929 = vpop.f32.mrf.mxu0
        %v1930 = vadd.f32 0.0, %v1929
        %v1931 = vpop.f32.mrf.mxu0
        %1932 = vmatprep.mubr.bf16.mxu0 0
        %1933 = vmatmul.mubr.bf16.gmra.mxu0 %v1789
        %v1934 = vpop.f32.mrf.mxu0
        %v1935 = vadd.f32 0.0, %v1934
        %v1936 = vpop.f32.mrf.mxu0
        %v1937 = vpop.f32.mrf.mxu0
        %v1938 = vadd.f32 0.0, %v1937
        %v1939 = vpop.f32.mrf.mxu0
        %1940 = vmatprep.mubr.bf16.mxu0 0
        %1941 = vmatmul.mubr.bf16.gmra.mxu0 %v1792
        %v1942 = vpop.f32.mrf.mxu0
        %v1943 = vadd.f32 0.0, %v1942
        %v1944 = vpop.f32.mrf.mxu0
        %v1945 = vpop.f32.mrf.mxu0
        %v1946 = vadd.f32 0.0, %v1945
        %v1947 = vpop.f32.mrf.mxu0
        %1948 = vmatprep.mubr.bf16.mxu0 0
        %1949 = vmatmul.mubr.bf16.gmra.mxu0 %v1795
        %v1950 = vpop.f32.mrf.mxu0
        %v1951 = vadd.f32 0.0, %v1950
        %v1952 = vpop.f32.mrf.mxu0
        %v1953 = vpop.f32.mrf.mxu0
        %v1954 = vadd.f32 0.0, %v1953
        %v1955 = vpop.f32.mrf.mxu0
        %1956 = vmatprep.mubr.bf16.mxu0 0
        %1957 = vmatmul.mubr.bf16.gmra.mxu0 %v1798
        %v1958 = vpop.f32.mrf.mxu0
        %v1959 = vadd.f32 0.0, %v1958
        %v1960 = vpop.f32.mrf.mxu0
        %v1961 = vpop.f32.mrf.mxu0
        %v1962 = vadd.f32 0.0, %v1961
        %v1963 = vpop.f32.mrf.mxu0
        %1964 = vdwg.mxu0
        %v1966 = vsel %vm1751, %v1555, 0
        %v1969 = vsel %vm1751, %v1556, 0
        %v1972 = vsel %vm1751, %v1557, 0
        %v1975 = vsel %vm1751, %v1558, 0
        %v1978 = vsel %vm1751, %v1559, 0
        %v1981 = vsel %vm1751, %v1560, 0
        %v1984 = vsel %vm1751, %v1561, 0
        %v1987 = vsel %vm1751, %v1562, 0
        %v1990 = vsel %vm1751, %v1563, 0
        %v1993 = vsel %vm1751, %v1564, 0
        %v1996 = vsel %vm1751, %v1565, 0
        %v1999 = vsel %vm1751, %v1566, 0
        %v2002 = vsel %vm1751, %v1567, 0
        %v2005 = vsel %vm1751, %v1568, 0
        %v2008 = vsel %vm1751, %v1569, 0
        %v2011 = vsel %vm1751, %v1570, 0
        %v2014 = vsel %vm1800, %v1571, 0
        %2016 = vmatprep.subr.bf16.mxu0 0
        %2017 = vmatpush1.bf16.msra.mxu0 0
        %2018 = vmatprep.subr.bf16.mxu0 0
        %2019 = vmatpush1.bf16.msra.mxu0 0
        %2020 = vmatprep.subr.bf16.mxu0 0
        %2021 = vmatpush1.bf16.msra.mxu0 0
        %2022 = vmatprep.subr.bf16.mxu0 0
        %2023 = vmatpush1.bf16.msra.mxu0 0
        %2024 = vmatprep.subr.bf16.mxu0 0
        %2025 = vmatpush1.bf16.msra.mxu0 0
        %2026 = vmatprep.subr.bf16.mxu0 0
        %2027 = vmatpush1.bf16.msra.mxu0 0
        %2028 = vmatprep.subr.bf16.mxu0 0
        %2029 = vmatpush1.bf16.msra.mxu0 0
        %2030 = vmatprep.subr.bf16.mxu0 0
        %2031 = vmatpush1.bf16.msra.mxu0 %v2014
        %2032 = vmatprep.subr.bf16.mxu0 0
        %2033 = vmatpush2.bf16.msra.mxu0 0
        %2034 = vmatprep.subr.bf16.mxu0 0
        %2035 = vmatpush2.bf16.msra.mxu0 0
        %2036 = vmatprep.subr.bf16.mxu0 0
        %2037 = vmatpush2.bf16.msra.mxu0 0
        %2038 = vmatprep.subr.bf16.mxu0 0
        %2039 = vmatpush2.bf16.msra.mxu0 0
        %2040 = vmatprep.subr.bf16.mxu0 0
        %2041 = vmatpush2.bf16.msra.mxu0 0
        %2042 = vmatprep.subr.bf16.mxu0 0
        %2043 = vmatpush2.bf16.msra.mxu0 0
        %2044 = vmatprep.subr.bf16.mxu0 0
        %2045 = vmatpush2.bf16.msra.mxu0 0
        %2046 = vmatprep.subr.bf16.mxu0 0
        %2047 = vmatpush2.bf16.msra.mxu0 0
        %2048 = vmatprep.mubr.bf16.mxu0 0
        %2049 = vmatmul.mubr.bf16.gmra.mxu0 %v1966
        %v2050 = vpop.f32.mrf.mxu0
        %v2051 = vadd.f32 %v1839, %v2050
        %v2052 = vpop.f32.mrf.mxu0
        %v2053 = vpop.f32.mrf.mxu0
        %v2054 = vadd.f32 %v1842, %v2053
        %v2055 = vpop.f32.mrf.mxu0
        %2056 = vmatprep.mubr.bf16.mxu0 0
        %2057 = vmatmul.mubr.bf16.gmra.mxu0 %v1969
        %v2058 = vpop.f32.mrf.mxu0
        %v2059 = vadd.f32 %v1847, %v2058
        %v2060 = vpop.f32.mrf.mxu0
        %v2061 = vpop.f32.mrf.mxu0
        %v2062 = vadd.f32 %v1850, %v2061
        %v2063 = vpop.f32.mrf.mxu0
        %2064 = vmatprep.mubr.bf16.mxu0 0
        %2065 = vmatmul.mubr.bf16.gmra.mxu0 %v1972
        %v2066 = vpop.f32.mrf.mxu0
        %v2067 = vadd.f32 %v1855, %v2066
        %v2068 = vpop.f32.mrf.mxu0
        %v2069 = vpop.f32.mrf.mxu0
        %v2070 = vadd.f32 %v1858, %v2069
        %v2071 = vpop.f32.mrf.mxu0
        %2072 = vmatprep.mubr.bf16.mxu0 0
        %2073 = vmatmul.mubr.bf16.gmra.mxu0 %v1975
        %v2074 = vpop.f32.mrf.mxu0
        %v2075 = vadd.f32 %v1863, %v2074
        %v2076 = vpop.f32.mrf.mxu0
        %v2077 = vpop.f32.mrf.mxu0
        %v2078 = vadd.f32 %v1866, %v2077
        %v2079 = vpop.f32.mrf.mxu0
        %2080 = vmatprep.mubr.bf16.mxu0 0
        %2081 = vmatmul.mubr.bf16.gmra.mxu0 %v1978
        %v2082 = vpop.f32.mrf.mxu0
        %v2083 = vadd.f32 %v1871, %v2082
        %v2084 = vpop.f32.mrf.mxu0
        %v2085 = vpop.f32.mrf.mxu0
        %v2086 = vadd.f32 %v1874, %v2085
        %v2087 = vpop.f32.mrf.mxu0
        %2088 = vmatprep.mubr.bf16.mxu0 0
        %2089 = vmatmul.mubr.bf16.gmra.mxu0 %v1981
        %v2090 = vpop.f32.mrf.mxu0
        %v2091 = vadd.f32 %v1879, %v2090
        %v2092 = vpop.f32.mrf.mxu0
        %v2093 = vpop.f32.mrf.mxu0
        %v2094 = vadd.f32 %v1882, %v2093
        %v2095 = vpop.f32.mrf.mxu0
        %2096 = vmatprep.mubr.bf16.mxu0 0
        %2097 = vmatmul.mubr.bf16.gmra.mxu0 %v1984
        %v2098 = vpop.f32.mrf.mxu0
        %v2099 = vadd.f32 %v1887, %v2098
        %v2100 = vpop.f32.mrf.mxu0
        %v2101 = vpop.f32.mrf.mxu0
        %v2102 = vadd.f32 %v1890, %v2101
        %v2103 = vpop.f32.mrf.mxu0
        %2104 = vmatprep.mubr.bf16.mxu0 0
        %2105 = vmatmul.mubr.bf16.gmra.mxu0 %v1987
        %v2106 = vpop.f32.mrf.mxu0
        %v2107 = vadd.f32 %v1895, %v2106
        %v2108 = vpop.f32.mrf.mxu0
        %v2109 = vpop.f32.mrf.mxu0
        %v2110 = vadd.f32 %v1898, %v2109
        %v2111 = vpop.f32.mrf.mxu0
        %2112 = vmatprep.mubr.bf16.mxu0 0
        %2113 = vmatmul.mubr.bf16.gmra.mxu0 %v1990
        %v2114 = vpop.f32.mrf.mxu0
        %v2115 = vadd.f32 %v1903, %v2114
        %v2116 = vpop.f32.mrf.mxu0
        %v2117 = vpop.f32.mrf.mxu0
        %v2118 = vadd.f32 %v1906, %v2117
        %v2119 = vpop.f32.mrf.mxu0
        %2120 = vmatprep.mubr.bf16.mxu0 0
        %2121 = vmatmul.mubr.bf16.gmra.mxu0 %v1993
        %v2122 = vpop.f32.mrf.mxu0
        %v2123 = vadd.f32 %v1911, %v2122
        %v2124 = vpop.f32.mrf.mxu0
        %v2125 = vpop.f32.mrf.mxu0
        %v2126 = vadd.f32 %v1914, %v2125
        %v2127 = vpop.f32.mrf.mxu0
        %2128 = vmatprep.mubr.bf16.mxu0 0
        %2129 = vmatmul.mubr.bf16.gmra.mxu0 %v1996
        %v2130 = vpop.f32.mrf.mxu0
        %v2131 = vadd.f32 %v1919, %v2130
        %v2132 = vpop.f32.mrf.mxu0
        %v2133 = vpop.f32.mrf.mxu0
        %v2134 = vadd.f32 %v1922, %v2133
        %v2135 = vpop.f32.mrf.mxu0
        %2136 = vmatprep.mubr.bf16.mxu0 0
        %2137 = vmatmul.mubr.bf16.gmra.mxu0 %v1999
        %v2138 = vpop.f32.mrf.mxu0
        %v2139 = vadd.f32 %v1927, %v2138
        %v2140 = vpop.f32.mrf.mxu0
        %v2141 = vpop.f32.mrf.mxu0
        %v2142 = vadd.f32 %v1930, %v2141
        %v2143 = vpop.f32.mrf.mxu0
        %2144 = vmatprep.mubr.bf16.mxu0 0
        %2145 = vmatmul.mubr.bf16.gmra.mxu0 %v2002
        %v2146 = vpop.f32.mrf.mxu0
        %v2147 = vadd.f32 %v1935, %v2146
        %v2148 = vpop.f32.mrf.mxu0
        %v2149 = vpop.f32.mrf.mxu0
        %v2150 = vadd.f32 %v1938, %v2149
        %v2151 = vpop.f32.mrf.mxu0
        %2152 = vmatprep.mubr.bf16.mxu0 0
        %2153 = vmatmul.mubr.bf16.gmra.mxu0 %v2005
        %v2154 = vpop.f32.mrf.mxu0
        %v2155 = vadd.f32 %v1943, %v2154
        %v2156 = vpop.f32.mrf.mxu0
        %v2157 = vpop.f32.mrf.mxu0
        %v2158 = vadd.f32 %v1946, %v2157
        %v2159 = vpop.f32.mrf.mxu0
        %2160 = vmatprep.mubr.bf16.mxu0 0
        %2161 = vmatmul.mubr.bf16.gmra.mxu0 %v2008
        %v2162 = vpop.f32.mrf.mxu0
        %v2163 = vadd.f32 %v1951, %v2162
        %v2164 = vpop.f32.mrf.mxu0
        %v2165 = vpop.f32.mrf.mxu0
        %v2166 = vadd.f32 %v1954, %v2165
        %v2167 = vpop.f32.mrf.mxu0
        %2168 = vmatprep.mubr.bf16.mxu0 0
        %2169 = vmatmul.mubr.bf16.gmra.mxu0 %v2011
        %v2170 = vpop.f32.mrf.mxu0
        %v2171 = vadd.f32 %v1959, %v2170
        %v2172 = vpop.f32.mrf.mxu0
        %v2173 = vpop.f32.mrf.mxu0
        %v2174 = vadd.f32 %v1962, %v2173
        %v2175 = vpop.f32.mrf.mxu0
        %2176 = vdwg.mxu0
        %2177 = vmatprep.subr.bf16.mxu0 0
        %2178 = vmatpush1.bf16.msra.mxu0 %v1369
        %2179 = vmatprep.subr.bf16.mxu0 0
        %2180 = vmatpush1.bf16.msra.mxu0 %v1368
        %2181 = vmatprep.subr.bf16.mxu0 0
        %2182 = vmatpush1.bf16.msra.mxu0 %v1367
        %2183 = vmatprep.subr.bf16.mxu0 0
        %2184 = vmatpush1.bf16.msra.mxu0 %v1366
        %2185 = vmatprep.subr.bf16.mxu0 0
        %2186 = vmatpush1.bf16.msra.mxu0 %v1365
        %2187 = vmatprep.subr.bf16.mxu0 0
        %2188 = vmatpush1.bf16.msra.mxu0 %v1364
        %2189 = vmatprep.subr.bf16.mxu0 0
        %2190 = vmatpush1.bf16.msra.mxu0 %v1363
        %2191 = vmatprep.subr.bf16.mxu0 0
        %2192 = vmatpush1.bf16.msra.mxu0 %v1362
        %2193 = vmatprep.subr.bf16.mxu0 0
        %2194 = vmatpush2.bf16.msra.mxu0 %v1377
        %2195 = vmatprep.subr.bf16.mxu0 0
        %2196 = vmatpush2.bf16.msra.mxu0 %v1376
        %2197 = vmatprep.subr.bf16.mxu0 0
        %2198 = vmatpush2.bf16.msra.mxu0 %v1375
        %2199 = vmatprep.subr.bf16.mxu0 0
        %2200 = vmatpush2.bf16.msra.mxu0 %v1374
        %2201 = vmatprep.subr.bf16.mxu0 0
        %2202 = vmatpush2.bf16.msra.mxu0 %v1373
        %2203 = vmatprep.subr.bf16.mxu0 0
        %2204 = vmatpush2.bf16.msra.mxu0 %v1372
        %2205 = vmatprep.subr.bf16.mxu0 0
        %2206 = vmatpush2.bf16.msra.mxu0 %v1371
        %2207 = vmatprep.subr.bf16.mxu0 0
        %2208 = vmatpush2.bf16.msra.mxu0 %v1370
        %2209 = vmatprep.mubr.bf16.mxu0 %v1235
        %2210 = vmatmul.mubr.bf16.gmra.mxu0 %v1234
        %v2211 = vpop.f32.mrf.mxu0
        %v2212 = vadd.f32 0.0, %v2211
        %v2213 = vpop.f32.mrf.mxu0
        %v2214 = vpop.f32.mrf.mxu0
        %v2215 = vadd.f32 0.0, %v2214
        %v2216 = vpop.f32.mrf.mxu0
        %2217 = vmatprep.mubr.bf16.mxu0 %v1237
        %2218 = vmatmul.mubr.bf16.gmra.mxu0 %v1236
        %v2219 = vpop.f32.mrf.mxu0
        %v2220 = vadd.f32 0.0, %v2219
        %v2221 = vpop.f32.mrf.mxu0
        %v2222 = vpop.f32.mrf.mxu0
        %v2223 = vadd.f32 0.0, %v2222
        %v2224 = vpop.f32.mrf.mxu0
        %2225 = vmatprep.mubr.bf16.mxu0 %v1239
        %2226 = vmatmul.mubr.bf16.gmra.mxu0 %v1238
        %v2227 = vpop.f32.mrf.mxu0
        %v2228 = vadd.f32 0.0, %v2227
        %v2229 = vpop.f32.mrf.mxu0
        %v2230 = vpop.f32.mrf.mxu0
        %v2231 = vadd.f32 0.0, %v2230
        %v2232 = vpop.f32.mrf.mxu0
        %2233 = vmatprep.mubr.bf16.mxu0 %v1241
        %2234 = vmatmul.mubr.bf16.gmra.mxu0 %v1240
        %v2235 = vpop.f32.mrf.mxu0
        %v2236 = vadd.f32 0.0, %v2235
        %v2237 = vpop.f32.mrf.mxu0
        %v2238 = vpop.f32.mrf.mxu0
        %v2239 = vadd.f32 0.0, %v2238
        %v2240 = vpop.f32.mrf.mxu0
        %2241 = vmatprep.mubr.bf16.mxu0 %v1243
        %2242 = vmatmul.mubr.bf16.gmra.mxu0 %v1242
        %v2243 = vpop.f32.mrf.mxu0
        %v2244 = vadd.f32 0.0, %v2243
        %v2245 = vpop.f32.mrf.mxu0
        %v2246 = vpop.f32.mrf.mxu0
        %v2247 = vadd.f32 0.0, %v2246
        %v2248 = vpop.f32.mrf.mxu0
        %2249 = vmatprep.mubr.bf16.mxu0 %v1245
        %2250 = vmatmul.mubr.bf16.gmra.mxu0 %v1244
        %v2251 = vpop.f32.mrf.mxu0
        %v2252 = vadd.f32 0.0, %v2251
        %v2253 = vpop.f32.mrf.mxu0
        %v2254 = vpop.f32.mrf.mxu0
        %v2255 = vadd.f32 0.0, %v2254
        %v2256 = vpop.f32.mrf.mxu0
        %2257 = vmatprep.mubr.bf16.mxu0 %v1247
        %2258 = vmatmul.mubr.bf16.gmra.mxu0 %v1246
        %v2259 = vpop.f32.mrf.mxu0
        %v2260 = vadd.f32 0.0, %v2259
        %v2261 = vpop.f32.mrf.mxu0
        %v2262 = vpop.f32.mrf.mxu0
        %v2263 = vadd.f32 0.0, %v2262
        %v2264 = vpop.f32.mrf.mxu0
        %2265 = vmatprep.mubr.bf16.mxu0 %v1249
        %2266 = vmatmul.mubr.bf16.gmra.mxu0 %v1248
        %v2267 = vpop.f32.mrf.mxu0
        %v2268 = vadd.f32 0.0, %v2267
        %v2269 = vpop.f32.mrf.mxu0
        %v2270 = vpop.f32.mrf.mxu0
        %v2271 = vadd.f32 0.0, %v2270
        %v2272 = vpop.f32.mrf.mxu0
        %2273 = vmatprep.mubr.bf16.mxu0 %v1251
        %2274 = vmatmul.mubr.bf16.gmra.mxu0 %v1250
        %v2275 = vpop.f32.mrf.mxu0
        %v2276 = vadd.f32 0.0, %v2275
        %v2277 = vpop.f32.mrf.mxu0
        %v2278 = vpop.f32.mrf.mxu0
        %v2279 = vadd.f32 0.0, %v2278
        %v2280 = vpop.f32.mrf.mxu0
        %2281 = vmatprep.mubr.bf16.mxu0 %v1253
        %2282 = vmatmul.mubr.bf16.gmra.mxu0 %v1252
        %v2283 = vpop.f32.mrf.mxu0
        %v2284 = vadd.f32 0.0, %v2283
        %v2285 = vpop.f32.mrf.mxu0
        %v2286 = vpop.f32.mrf.mxu0
        %v2287 = vadd.f32 0.0, %v2286
        %v2288 = vpop.f32.mrf.mxu0
        %2289 = vmatprep.mubr.bf16.mxu0 %v1255
        %2290 = vmatmul.mubr.bf16.gmra.mxu0 %v1254
        %v2291 = vpop.f32.mrf.mxu0
        %v2292 = vadd.f32 0.0, %v2291
        %v2293 = vpop.f32.mrf.mxu0
        %v2294 = vpop.f32.mrf.mxu0
        %v2295 = vadd.f32 0.0, %v2294
        %v2296 = vpop.f32.mrf.mxu0
        %2297 = vmatprep.mubr.bf16.mxu0 %v1257
        %2298 = vmatmul.mubr.bf16.gmra.mxu0 %v1256
        %v2299 = vpop.f32.mrf.mxu0
        %v2300 = vadd.f32 0.0, %v2299
        %v2301 = vpop.f32.mrf.mxu0
        %v2302 = vpop.f32.mrf.mxu0
        %v2303 = vadd.f32 0.0, %v2302
        %v2304 = vpop.f32.mrf.mxu0
        %2305 = vmatprep.mubr.bf16.mxu0 %v1259
        %2306 = vmatmul.mubr.bf16.gmra.mxu0 %v1258
        %v2307 = vpop.f32.mrf.mxu0
        %v2308 = vadd.f32 0.0, %v2307
        %v2309 = vpop.f32.mrf.mxu0
        %v2310 = vpop.f32.mrf.mxu0
        %v2311 = vadd.f32 0.0, %v2310
        %v2312 = vpop.f32.mrf.mxu0
        %2313 = vmatprep.mubr.bf16.mxu0 %v1261
        %2314 = vmatmul.mubr.bf16.gmra.mxu0 %v1260
        %v2315 = vpop.f32.mrf.mxu0
        %v2316 = vadd.f32 0.0, %v2315
        %v2317 = vpop.f32.mrf.mxu0
        %v2318 = vpop.f32.mrf.mxu0
        %v2319 = vadd.f32 0.0, %v2318
        %v2320 = vpop.f32.mrf.mxu0
        %2321 = vmatprep.mubr.bf16.mxu0 %v1263
        %2322 = vmatmul.mubr.bf16.gmra.mxu0 %v1262
        %v2323 = vpop.f32.mrf.mxu0
        %v2324 = vadd.f32 0.0, %v2323
        %v2325 = vpop.f32.mrf.mxu0
        %v2326 = vpop.f32.mrf.mxu0
        %v2327 = vadd.f32 0.0, %v2326
        %v2328 = vpop.f32.mrf.mxu0
        %2329 = vmatprep.mubr.bf16.mxu0 %v1265
        %2330 = vmatmul.mubr.bf16.gmra.mxu0 %v1264
        %v2331 = vpop.f32.mrf.mxu0
        %v2332 = vadd.f32 0.0, %v2331
        %v2333 = vpop.f32.mrf.mxu0
        %v2334 = vpop.f32.mrf.mxu0
        %v2335 = vadd.f32 0.0, %v2334
        %v2336 = vpop.f32.mrf.mxu0
        %2337 = vdwg.mxu0
        %v2338 = vpack.c.bf16 %v2215, %v2212
        %v2339 = vpack.c.bf16 %v2223, %v2220
        %v2340 = vpack.c.bf16 %v2231, %v2228
        %v2341 = vpack.c.bf16 %v2239, %v2236
        %v2342 = vpack.c.bf16 %v2247, %v2244
        %v2343 = vpack.c.bf16 %v2255, %v2252
        %v2344 = vpack.c.bf16 %v2263, %v2260
        %v2345 = vpack.c.bf16 %v2271, %v2268
        %v2346 = vpack.c.bf16 %v2279, %v2276
        %v2347 = vpack.c.bf16 %v2287, %v2284
        %v2348 = vpack.c.bf16 %v2295, %v2292
        %v2349 = vpack.c.bf16 %v2303, %v2300
        %v2350 = vpack.c.bf16 %v2311, %v2308
        %v2351 = vpack.c.bf16 %v2319, %v2316
        %v2352 = vpack.c.bf16 %v2327, %v2324
        %v2353 = vpack.c.bf16 %v2335, %v2332
        %s2354 = scalar_lea.vmem %s2, 8
        %v2355 = vld [vmem:[%s2354] sm:$0xf]
        %v2357 = vsel %vm1751, %v2338, 0
        %v2360 = vsel %vm1751, %v2339, 0
        %v2363 = vsel %vm1751, %v2340, 0
        %v2366 = vsel %vm1751, %v2341, 0
        %v2369 = vsel %vm1751, %v2342, 0
        %v2372 = vsel %vm1751, %v2343, 0
        %v2375 = vsel %vm1751, %v2344, 0
        %v2378 = vsel %vm1751, %v2345, 0
        %v2381 = vsel %vm1751, %v2346, 0
        %v2384 = vsel %vm1751, %v2347, 0
        %v2387 = vsel %vm1751, %v2348, 0
        %v2390 = vsel %vm1751, %v2349, 0
        %v2393 = vsel %vm1751, %v2350, 0
        %v2396 = vsel %vm1751, %v2351, 0
        %v2399 = vsel %vm1751, %v2352, 0
        %v2402 = vsel %vm1751, %v2353, 0
        %v2405 = vsel %vm1800, %v2355, 0
        %2407 = vmatprep.subr.bf16.mxu0 0
        %2408 = vmatpush1.bf16.msra.mxu0 0
        %2409 = vmatprep.subr.bf16.mxu0 0
        %2410 = vmatpush1.bf16.msra.mxu0 0
        %2411 = vmatprep.subr.bf16.mxu0 0
        %2412 = vmatpush1.bf16.msra.mxu0 0
        %2413 = vmatprep.subr.bf16.mxu0 0
        %2414 = vmatpush1.bf16.msra.mxu0 0
        %2415 = vmatprep.subr.bf16.mxu0 0
        %2416 = vmatpush1.bf16.msra.mxu0 0
        %2417 = vmatprep.subr.bf16.mxu0 0
        %2418 = vmatpush1.bf16.msra.mxu0 0
        %2419 = vmatprep.subr.bf16.mxu0 0
        %2420 = vmatpush1.bf16.msra.mxu0 0
        %2421 = vmatprep.subr.bf16.mxu0 0
        %2422 = vmatpush1.bf16.msra.mxu0 %v2405
        %2423 = vmatprep.subr.bf16.mxu0 0
        %2424 = vmatpush2.bf16.msra.mxu0 0
        %2425 = vmatprep.subr.bf16.mxu0 0
        %2426 = vmatpush2.bf16.msra.mxu0 0
        %2427 = vmatprep.subr.bf16.mxu0 0
        %2428 = vmatpush2.bf16.msra.mxu0 0
        %2429 = vmatprep.subr.bf16.mxu0 0
        %2430 = vmatpush2.bf16.msra.mxu0 0
        %2431 = vmatprep.subr.bf16.mxu0 0
        %2432 = vmatpush2.bf16.msra.mxu0 0
        %2433 = vmatprep.subr.bf16.mxu0 0
        %2434 = vmatpush2.bf16.msra.mxu0 0
        %2435 = vmatprep.subr.bf16.mxu0 0
        %2436 = vmatpush2.bf16.msra.mxu0 0
        %2437 = vmatprep.subr.bf16.mxu0 0
        %2438 = vmatpush2.bf16.msra.mxu0 0
        %2439 = vmatprep.mubr.bf16.mxu0 0
        %2440 = vmatmul.mubr.bf16.gmra.mxu0 %v2357
        %v2441 = vpop.f32.mrf.mxu0
        %v2442 = vadd.f32 0.0, %v2441
        %v2443 = vpop.f32.mrf.mxu0
        %v2444 = vpop.f32.mrf.mxu0
        %v2445 = vadd.f32 0.0, %v2444
        %v2446 = vpop.f32.mrf.mxu0
        %2447 = vmatprep.mubr.bf16.mxu0 0
        %2448 = vmatmul.mubr.bf16.gmra.mxu0 %v2360
        %v2449 = vpop.f32.mrf.mxu0
        %v2450 = vadd.f32 0.0, %v2449
        %v2451 = vpop.f32.mrf.mxu0
        %v2452 = vpop.f32.mrf.mxu0
        %v2453 = vadd.f32 0.0, %v2452
        %v2454 = vpop.f32.mrf.mxu0
        %2455 = vmatprep.mubr.bf16.mxu0 0
        %2456 = vmatmul.mubr.bf16.gmra.mxu0 %v2363
        %v2457 = vpop.f32.mrf.mxu0
        %v2458 = vadd.f32 0.0, %v2457
        %v2459 = vpop.f32.mrf.mxu0
        %v2460 = vpop.f32.mrf.mxu0
        %v2461 = vadd.f32 0.0, %v2460
        %v2462 = vpop.f32.mrf.mxu0
        %2463 = vmatprep.mubr.bf16.mxu0 0
        %2464 = vmatmul.mubr.bf16.gmra.mxu0 %v2366
        %v2465 = vpop.f32.mrf.mxu0
        %v2466 = vadd.f32 0.0, %v2465
        %v2467 = vpop.f32.mrf.mxu0
        %v2468 = vpop.f32.mrf.mxu0
        %v2469 = vadd.f32 0.0, %v2468
        %v2470 = vpop.f32.mrf.mxu0
        %2471 = vmatprep.mubr.bf16.mxu0 0
        %2472 = vmatmul.mubr.bf16.gmra.mxu0 %v2369
        %v2473 = vpop.f32.mrf.mxu0
        %v2474 = vadd.f32 0.0, %v2473
        %v2475 = vpop.f32.mrf.mxu0
        %v2476 = vpop.f32.mrf.mxu0
        %v2477 = vadd.f32 0.0, %v2476
        %v2478 = vpop.f32.mrf.mxu0
        %2479 = vmatprep.mubr.bf16.mxu0 0
        %2480 = vmatmul.mubr.bf16.gmra.mxu0 %v2372
        %v2481 = vpop.f32.mrf.mxu0
        %v2482 = vadd.f32 0.0, %v2481
        %v2483 = vpop.f32.mrf.mxu0
        %v2484 = vpop.f32.mrf.mxu0
        %v2485 = vadd.f32 0.0, %v2484
        %v2486 = vpop.f32.mrf.mxu0
        %2487 = vmatprep.mubr.bf16.mxu0 0
        %2488 = vmatmul.mubr.bf16.gmra.mxu0 %v2375
        %v2489 = vpop.f32.mrf.mxu0
        %v2490 = vadd.f32 0.0, %v2489
        %v2491 = vpop.f32.mrf.mxu0
        %v2492 = vpop.f32.mrf.mxu0
        %v2493 = vadd.f32 0.0, %v2492
        %v2494 = vpop.f32.mrf.mxu0
        %2495 = vmatprep.mubr.bf16.mxu0 0
        %2496 = vmatmul.mubr.bf16.gmra.mxu0 %v2378
        %v2497 = vpop.f32.mrf.mxu0
        %v2498 = vadd.f32 0.0, %v2497
        %v2499 = vpop.f32.mrf.mxu0
        %v2500 = vpop.f32.mrf.mxu0
        %v2501 = vadd.f32 0.0, %v2500
        %v2502 = vpop.f32.mrf.mxu0
        %2503 = vmatprep.mubr.bf16.mxu0 0
        %2504 = vmatmul.mubr.bf16.gmra.mxu0 %v2381
        %v2505 = vpop.f32.mrf.mxu0
        %v2506 = vadd.f32 0.0, %v2505
        %v2507 = vpop.f32.mrf.mxu0
        %v2508 = vpop.f32.mrf.mxu0
        %v2509 = vadd.f32 0.0, %v2508
        %v2510 = vpop.f32.mrf.mxu0
        %2511 = vmatprep.mubr.bf16.mxu0 0
        %2512 = vmatmul.mubr.bf16.gmra.mxu0 %v2384
        %v2513 = vpop.f32.mrf.mxu0
        %v2514 = vadd.f32 0.0, %v2513
        %v2515 = vpop.f32.mrf.mxu0
        %v2516 = vpop.f32.mrf.mxu0
        %v2517 = vadd.f32 0.0, %v2516
        %v2518 = vpop.f32.mrf.mxu0
        %2519 = vmatprep.mubr.bf16.mxu0 0
        %2520 = vmatmul.mubr.bf16.gmra.mxu0 %v2387
        %v2521 = vpop.f32.mrf.mxu0
        %v2522 = vadd.f32 0.0, %v2521
        %v2523 = vpop.f32.mrf.mxu0
        %v2524 = vpop.f32.mrf.mxu0
        %v2525 = vadd.f32 0.0, %v2524
        %v2526 = vpop.f32.mrf.mxu0
        %2527 = vmatprep.mubr.bf16.mxu0 0
        %2528 = vmatmul.mubr.bf16.gmra.mxu0 %v2390
        %v2529 = vpop.f32.mrf.mxu0
        %v2530 = vadd.f32 0.0, %v2529
        %v2531 = vpop.f32.mrf.mxu0
        %v2532 = vpop.f32.mrf.mxu0
        %v2533 = vadd.f32 0.0, %v2532
        %v2534 = vpop.f32.mrf.mxu0
        %2535 = vmatprep.mubr.bf16.mxu0 0
        %2536 = vmatmul.mubr.bf16.gmra.mxu0 %v2393
        %v2537 = vpop.f32.mrf.mxu0
        %v2538 = vadd.f32 0.0, %v2537
        %v2539 = vpop.f32.mrf.mxu0
        %v2540 = vpop.f32.mrf.mxu0
        %v2541 = vadd.f32 0.0, %v2540
        %v2542 = vpop.f32.mrf.mxu0
        %2543 = vmatprep.mubr.bf16.mxu0 0
        %2544 = vmatmul.mubr.bf16.gmra.mxu0 %v2396
        %v2545 = vpop.f32.mrf.mxu0
        %v2546 = vadd.f32 0.0, %v2545
        %v2547 = vpop.f32.mrf.mxu0
        %v2548 = vpop.f32.mrf.mxu0
        %v2549 = vadd.f32 0.0, %v2548
        %v2550 = vpop.f32.mrf.mxu0
        %2551 = vmatprep.mubr.bf16.mxu0 0
        %2552 = vmatmul.mubr.bf16.gmra.mxu0 %v2399
        %v2553 = vpop.f32.mrf.mxu0
        %v2554 = vadd.f32 0.0, %v2553
        %v2555 = vpop.f32.mrf.mxu0
        %v2556 = vpop.f32.mrf.mxu0
        %v2557 = vadd.f32 0.0, %v2556
        %v2558 = vpop.f32.mrf.mxu0
        %2559 = vmatprep.mubr.bf16.mxu0 0
        %2560 = vmatmul.mubr.bf16.gmra.mxu0 %v2402
        %v2561 = vpop.f32.mrf.mxu0
        %v2562 = vadd.f32 0.0, %v2561
        %v2563 = vpop.f32.mrf.mxu0
        %v2564 = vpop.f32.mrf.mxu0
        %v2565 = vadd.f32 0.0, %v2564
        %v2566 = vpop.f32.mrf.mxu0
        %2567 = vdwg.mxu0
        %v2568 = vadd.f32 %v2051, %v2442
        %v2569 = vadd.f32 %v2054, %v2445
        %v2570 = vadd.f32 %v2059, %v2450
        %v2571 = vadd.f32 %v2062, %v2453
        %v2572 = vadd.f32 %v2067, %v2458
        %v2573 = vadd.f32 %v2070, %v2461
        %v2574 = vadd.f32 %v2075, %v2466
        %v2575 = vadd.f32 %v2078, %v2469
        %v2576 = vadd.f32 %v2083, %v2474
        %v2577 = vadd.f32 %v2086, %v2477
        %v2578 = vadd.f32 %v2091, %v2482
        %v2579 = vadd.f32 %v2094, %v2485
        %v2580 = vadd.f32 %v2099, %v2490
        %v2581 = vadd.f32 %v2102, %v2493
        %v2582 = vadd.f32 %v2107, %v2498
        %v2583 = vadd.f32 %v2110, %v2501
        %v2584 = vadd.f32 %v2115, %v2506
        %v2585 = vadd.f32 %v2118, %v2509
        %v2586 = vadd.f32 %v2123, %v2514
        %v2587 = vadd.f32 %v2126, %v2517
        %v2588 = vadd.f32 %v2131, %v2522
        %v2589 = vadd.f32 %v2134, %v2525
        %v2590 = vadd.f32 %v2139, %v2530
        %v2591 = vadd.f32 %v2142, %v2533
        %v2592 = vadd.f32 %v2147, %v2538
        %v2593 = vadd.f32 %v2150, %v2541
        %v2594 = vadd.f32 %v2155, %v2546
        %v2595 = vadd.f32 %v2158, %v2549
        %v2596 = vadd.f32 %v2163, %v2554
        %v2597 = vadd.f32 %v2166, %v2557
        %v2598 = vadd.f32 %v2171, %v2562
        %v2599 = vadd.f32 %v2174, %v2565
        %v2600 = vld [vmem:[%s3] sm:$0x1]
        %v2602 = vlaneseq
        %v2603 = vshrl.u32 %v2602, 7
        %v2604 = vsub.s32 0, %v2603
        %v2605 = vrot.slane %v2600, %v2604
        %v2607 = vadd.f32 %v2568, %v2605
        %v2608 = vadd.f32 %v2569, %v2605
        %v2609 = vadd.f32 %v2570, %v2605
        %v2610 = vadd.f32 %v2571, %v2605
        %v2611 = vadd.f32 %v2572, %v2605
        %v2612 = vadd.f32 %v2573, %v2605
        %v2613 = vadd.f32 %v2574, %v2605
        %v2614 = vadd.f32 %v2575, %v2605
        %v2615 = vadd.f32 %v2576, %v2605
        %v2616 = vadd.f32 %v2577, %v2605
        %v2617 = vadd.f32 %v2578, %v2605
        %v2618 = vadd.f32 %v2579, %v2605
        %v2619 = vadd.f32 %v2580, %v2605
        %v2620 = vadd.f32 %v2581, %v2605
        %v2621 = vadd.f32 %v2582, %v2605
        %v2622 = vadd.f32 %v2583, %v2605
        %v2623 = vadd.f32 %v2584, %v2605
        %v2624 = vadd.f32 %v2585, %v2605
        %v2625 = vadd.f32 %v2586, %v2605
        %v2626 = vadd.f32 %v2587, %v2605
        %v2627 = vadd.f32 %v2588, %v2605
        %v2628 = vadd.f32 %v2589, %v2605
        %v2629 = vadd.f32 %v2590, %v2605
        %v2630 = vadd.f32 %v2591, %v2605
        %v2631 = vadd.f32 %v2592, %v2605
        %v2632 = vadd.f32 %v2593, %v2605
        %v2633 = vadd.f32 %v2594, %v2605
        %v2634 = vadd.f32 %v2595, %v2605
        %v2635 = vadd.f32 %v2596, %v2605
        %v2636 = vadd.f32 %v2597, %v2605
        %v2637 = vadd.f32 %v2598, %v2605
        %v2638 = vadd.f32 %v2599, %v2605
        %v2639 = vmax.f32 %v2607, 0.0
        %v2640 = vmax.f32 %v2608, 0.0
        %v2641 = vmax.f32 %v2609, 0.0
        %v2642 = vmax.f32 %v2610, 0.0
        %v2643 = vmax.f32 %v2611, 0.0
        %v2644 = vmax.f32 %v2612, 0.0
        %v2645 = vmax.f32 %v2613, 0.0
        %v2646 = vmax.f32 %v2614, 0.0
        %v2647 = vmax.f32 %v2615, 0.0
        %v2648 = vmax.f32 %v2616, 0.0
        %v2649 = vmax.f32 %v2617, 0.0
        %v2650 = vmax.f32 %v2618, 0.0
        %v2651 = vmax.f32 %v2619, 0.0
        %v2652 = vmax.f32 %v2620, 0.0
        %v2653 = vmax.f32 %v2621, 0.0
        %v2654 = vmax.f32 %v2622, 0.0
        %v2655 = vmax.f32 %v2623, 0.0
        %v2656 = vmax.f32 %v2624, 0.0
        %v2657 = vmax.f32 %v2625, 0.0
        %v2658 = vmax.f32 %v2626, 0.0
        %v2659 = vmax.f32 %v2627, 0.0
        %v2660 = vmax.f32 %v2628, 0.0
        %v2661 = vmax.f32 %v2629, 0.0
        %v2662 = vmax.f32 %v2630, 0.0
        %v2663 = vmax.f32 %v2631, 0.0
        %v2664 = vmax.f32 %v2632, 0.0
        %v2665 = vmax.f32 %v2633, 0.0
        %v2666 = vmax.f32 %v2634, 0.0
        %v2667 = vmax.f32 %v2635, 0.0
        %v2668 = vmax.f32 %v2636, 0.0
        %v2669 = vmax.f32 %v2637, 0.0
        %v2670 = vmax.f32 %v2638, 0.0
        %v2671 = vpack.c.bf16 %v2640, %v2639
        %v2672 = vpack.c.bf16 %v2642, %v2641
        %v2673 = vpack.c.bf16 %v2644, %v2643
        %v2674 = vpack.c.bf16 %v2646, %v2645
        %v2675 = vpack.c.bf16 %v2648, %v2647
        %v2676 = vpack.c.bf16 %v2650, %v2649
        %v2677 = vpack.c.bf16 %v2652, %v2651
        %v2678 = vpack.c.bf16 %v2654, %v2653
        %v2679 = vpack.c.bf16 %v2656, %v2655
        %v2680 = vpack.c.bf16 %v2658, %v2657
        %v2681 = vpack.c.bf16 %v2660, %v2659
        %v2682 = vpack.c.bf16 %v2662, %v2661
        %v2683 = vpack.c.bf16 %v2664, %v2663
        %v2684 = vpack.c.bf16 %v2666, %v2665
        %v2685 = vpack.c.bf16 %v2668, %v2667
        %v2686 = vpack.c.bf16 %v2670, %v2669
        %2687 = vmatprep.subr.bf16.mxu0 0
        %2688 = vmatpush1.bf16.msra.mxu0 %v2678
        %2689 = vmatprep.subr.bf16.mxu0 0
        %2690 = vmatpush1.bf16.msra.mxu0 %v2677
        %2691 = vmatprep.subr.bf16.mxu0 0
        %2692 = vmatpush1.bf16.msra.mxu0 %v2676
        %2693 = vmatprep.subr.bf16.mxu0 0
        %2694 = vmatpush1.bf16.msra.mxu0 %v2675
        %2695 = vmatprep.subr.bf16.mxu0 0
        %2696 = vmatpush1.bf16.msra.mxu0 %v2674
        %2697 = vmatprep.subr.bf16.mxu0 0
        %2698 = vmatpush1.bf16.msra.mxu0 %v2673
        %2699 = vmatprep.subr.bf16.mxu0 0
        %2700 = vmatpush1.bf16.msra.mxu0 %v2672
        %2701 = vmatprep.subr.bf16.mxu0 0
        %2702 = vmatpush1.bf16.msra.mxu0 %v2671
        %2703 = vmatprep.subr.bf16.mxu0 0
        %2704 = vmatpush2.bf16.msra.mxu0 %v2686
        %2705 = vmatprep.subr.bf16.mxu0 0
        %2706 = vmatpush2.bf16.msra.mxu0 %v2685
        %2707 = vmatprep.subr.bf16.mxu0 0
        %2708 = vmatpush2.bf16.msra.mxu0 %v2684
        %2709 = vmatprep.subr.bf16.mxu0 0
        %2710 = vmatpush2.bf16.msra.mxu0 %v2683
        %2711 = vmatprep.subr.bf16.mxu0 0
        %2712 = vmatpush2.bf16.msra.mxu0 %v2682
        %2713 = vmatprep.subr.bf16.mxu0 0
        %2714 = vmatpush2.bf16.msra.mxu0 %v2681
        %2715 = vmatprep.subr.bf16.mxu0 0
        %2716 = vmatpush2.bf16.msra.mxu0 %v2680
        %2717 = vmatprep.subr.bf16.mxu0 0
        %2718 = vmatpush2.bf16.msra.mxu0 %v2679
        %2719 = vmatprep.mubr.bf16.mxu0 %v595
        %2720 = vmatmul.mubr.bf16.gmra.mxu0 %v594
        %v2721 = vpop.f32.mrf.mxu0
        %v2722 = vadd.f32 0.0, %v2721
        %v2723 = vpop.f32.mrf.mxu0
        %v2724 = vpop.f32.mrf.mxu0
        %v2725 = vadd.f32 0.0, %v2724
        %v2726 = vpop.f32.mrf.mxu0
        %2727 = vmatprep.mubr.bf16.mxu0 %v597
        %2728 = vmatmul.mubr.bf16.gmra.mxu0 %v596
        %v2729 = vpop.f32.mrf.mxu0
        %v2730 = vadd.f32 0.0, %v2729
        %v2731 = vpop.f32.mrf.mxu0
        %v2732 = vpop.f32.mrf.mxu0
        %v2733 = vadd.f32 0.0, %v2732
        %v2734 = vpop.f32.mrf.mxu0
        %2735 = vmatprep.mubr.bf16.mxu0 %v599
        %2736 = vmatmul.mubr.bf16.gmra.mxu0 %v598
        %v2737 = vpop.f32.mrf.mxu0
        %v2738 = vadd.f32 0.0, %v2737
        %v2739 = vpop.f32.mrf.mxu0
        %v2740 = vpop.f32.mrf.mxu0
        %v2741 = vadd.f32 0.0, %v2740
        %v2742 = vpop.f32.mrf.mxu0
        %2743 = vmatprep.mubr.bf16.mxu0 %v601
        %2744 = vmatmul.mubr.bf16.gmra.mxu0 %v600
        %v2745 = vpop.f32.mrf.mxu0
        %v2746 = vadd.f32 0.0, %v2745
        %v2747 = vpop.f32.mrf.mxu0
        %v2748 = vpop.f32.mrf.mxu0
        %v2749 = vadd.f32 0.0, %v2748
        %v2750 = vpop.f32.mrf.mxu0
        %2751 = vmatprep.mubr.bf16.mxu0 %v603
        %2752 = vmatmul.mubr.bf16.gmra.mxu0 %v602
        %v2753 = vpop.f32.mrf.mxu0
        %v2754 = vadd.f32 0.0, %v2753
        %v2755 = vpop.f32.mrf.mxu0
        %v2756 = vpop.f32.mrf.mxu0
        %v2757 = vadd.f32 0.0, %v2756
        %v2758 = vpop.f32.mrf.mxu0
        %2759 = vmatprep.mubr.bf16.mxu0 %v605
        %2760 = vmatmul.mubr.bf16.gmra.mxu0 %v604
        %v2761 = vpop.f32.mrf.mxu0
        %v2762 = vadd.f32 0.0, %v2761
        %v2763 = vpop.f32.mrf.mxu0
        %v2764 = vpop.f32.mrf.mxu0
        %v2765 = vadd.f32 0.0, %v2764
        %v2766 = vpop.f32.mrf.mxu0
        %2767 = vmatprep.mubr.bf16.mxu0 %v607
        %2768 = vmatmul.mubr.bf16.gmra.mxu0 %v606
        %v2769 = vpop.f32.mrf.mxu0
        %v2770 = vadd.f32 0.0, %v2769
        %v2771 = vpop.f32.mrf.mxu0
        %v2772 = vpop.f32.mrf.mxu0
        %v2773 = vadd.f32 0.0, %v2772
        %v2774 = vpop.f32.mrf.mxu0
        %2775 = vmatprep.mubr.bf16.mxu0 %v609
        %2776 = vmatmul.mubr.bf16.gmra.mxu0 %v608
        %v2777 = vpop.f32.mrf.mxu0
        %v2778 = vadd.f32 0.0, %v2777
        %v2779 = vpop.f32.mrf.mxu0
        %v2780 = vpop.f32.mrf.mxu0
        %v2781 = vadd.f32 0.0, %v2780
        %v2782 = vpop.f32.mrf.mxu0
        %2783 = vmatprep.mubr.bf16.mxu0 %v611
        %2784 = vmatmul.mubr.bf16.gmra.mxu0 %v610
        %v2785 = vpop.f32.mrf.mxu0
        %v2786 = vadd.f32 0.0, %v2785
        %v2787 = vpop.f32.mrf.mxu0
        %v2788 = vpop.f32.mrf.mxu0
        %v2789 = vadd.f32 0.0, %v2788
        %v2790 = vpop.f32.mrf.mxu0
        %2791 = vmatprep.mubr.bf16.mxu0 %v613
        %2792 = vmatmul.mubr.bf16.gmra.mxu0 %v612
        %v2793 = vpop.f32.mrf.mxu0
        %v2794 = vadd.f32 0.0, %v2793
        %v2795 = vpop.f32.mrf.mxu0
        %v2796 = vpop.f32.mrf.mxu0
        %v2797 = vadd.f32 0.0, %v2796
        %v2798 = vpop.f32.mrf.mxu0
        %2799 = vmatprep.mubr.bf16.mxu0 %v615
        %2800 = vmatmul.mubr.bf16.gmra.mxu0 %v614
        %v2801 = vpop.f32.mrf.mxu0
        %v2802 = vadd.f32 0.0, %v2801
        %v2803 = vpop.f32.mrf.mxu0
        %v2804 = vpop.f32.mrf.mxu0
        %v2805 = vadd.f32 0.0, %v2804
        %v2806 = vpop.f32.mrf.mxu0
        %2807 = vmatprep.mubr.bf16.mxu0 %v617
        %2808 = vmatmul.mubr.bf16.gmra.mxu0 %v616
        %v2809 = vpop.f32.mrf.mxu0
        %v2810 = vadd.f32 0.0, %v2809
        %v2811 = vpop.f32.mrf.mxu0
        %v2812 = vpop.f32.mrf.mxu0
        %v2813 = vadd.f32 0.0, %v2812
        %v2814 = vpop.f32.mrf.mxu0
        %2815 = vmatprep.mubr.bf16.mxu0 %v619
        %2816 = vmatmul.mubr.bf16.gmra.mxu0 %v618
        %v2817 = vpop.f32.mrf.mxu0
        %v2818 = vadd.f32 0.0, %v2817
        %v2819 = vpop.f32.mrf.mxu0
        %v2820 = vpop.f32.mrf.mxu0
        %v2821 = vadd.f32 0.0, %v2820
        %v2822 = vpop.f32.mrf.mxu0
        %2823 = vmatprep.mubr.bf16.mxu0 %v621
        %2824 = vmatmul.mubr.bf16.gmra.mxu0 %v620
        %v2825 = vpop.f32.mrf.mxu0
        %v2826 = vadd.f32 0.0, %v2825
        %v2827 = vpop.f32.mrf.mxu0
        %v2828 = vpop.f32.mrf.mxu0
        %v2829 = vadd.f32 0.0, %v2828
        %v2830 = vpop.f32.mrf.mxu0
        %2831 = vmatprep.mubr.bf16.mxu0 %v623
        %2832 = vmatmul.mubr.bf16.gmra.mxu0 %v622
        %v2833 = vpop.f32.mrf.mxu0
        %v2834 = vadd.f32 0.0, %v2833
        %v2835 = vpop.f32.mrf.mxu0
        %v2836 = vpop.f32.mrf.mxu0
        %v2837 = vadd.f32 0.0, %v2836
        %v2838 = vpop.f32.mrf.mxu0
        %2839 = vmatprep.mubr.bf16.mxu0 %v625
        %2840 = vmatmul.mubr.bf16.gmra.mxu0 %v624
        %v2841 = vpop.f32.mrf.mxu0
        %v2842 = vadd.f32 0.0, %v2841
        %v2843 = vpop.f32.mrf.mxu0
        %v2844 = vpop.f32.mrf.mxu0
        %v2845 = vadd.f32 0.0, %v2844
        %v2846 = vpop.f32.mrf.mxu0
        %2847 = vdwg.mxu0
        %v2848 = vpack.c.bf16 %v2725, %v2722
        %v2849 = vpack.c.bf16 %v2733, %v2730
        %v2850 = vpack.c.bf16 %v2741, %v2738
        %v2851 = vpack.c.bf16 %v2749, %v2746
        %v2852 = vpack.c.bf16 %v2757, %v2754
        %v2853 = vpack.c.bf16 %v2765, %v2762
        %v2854 = vpack.c.bf16 %v2773, %v2770
        %v2855 = vpack.c.bf16 %v2781, %v2778
        %v2856 = vpack.c.bf16 %v2789, %v2786
        %v2857 = vpack.c.bf16 %v2797, %v2794
        %v2858 = vpack.c.bf16 %v2805, %v2802
        %v2859 = vpack.c.bf16 %v2813, %v2810
        %v2860 = vpack.c.bf16 %v2821, %v2818
        %v2861 = vpack.c.bf16 %v2829, %v2826
        %v2862 = vpack.c.bf16 %v2837, %v2834
        %v2863 = vpack.c.bf16 %v2845, %v2842
        %v2864 = vld [vmem:[%s4] sm:$0xf]
        %v2865 = vld [vmem:[%s4 + $0x4] sm:$0xf]
        %v2866 = vld [vmem:[%s4 + $0x8] sm:$0xf]
        %v2867 = vld [vmem:[%s4 + $0xc] sm:$0xf]
        %2868 = vmatprep.subr.bf16.mxu0 0
        %2869 = vmatpush1.bf16.msra.mxu0 %v2678
        %2870 = vmatprep.subr.bf16.mxu0 0
        %2871 = vmatpush1.bf16.msra.mxu0 %v2677
        %2872 = vmatprep.subr.bf16.mxu0 0
        %2873 = vmatpush1.bf16.msra.mxu0 %v2676
        %2874 = vmatprep.subr.bf16.mxu0 0
        %2875 = vmatpush1.bf16.msra.mxu0 %v2675
        %2876 = vmatprep.subr.bf16.mxu0 0
        %2877 = vmatpush1.bf16.msra.mxu0 %v2674
        %2878 = vmatprep.subr.bf16.mxu0 0
        %2879 = vmatpush1.bf16.msra.mxu0 %v2673
        %2880 = vmatprep.subr.bf16.mxu0 0
        %2881 = vmatpush1.bf16.msra.mxu0 %v2672
        %2882 = vmatprep.subr.bf16.mxu0 0
        %2883 = vmatpush1.bf16.msra.mxu0 %v2671
        %2884 = vmatprep.subr.bf16.mxu0 0
        %2885 = vmatpush2.bf16.msra.mxu0 %v2686
        %2886 = vmatprep.subr.bf16.mxu0 0
        %2887 = vmatpush2.bf16.msra.mxu0 %v2685
        %2888 = vmatprep.subr.bf16.mxu0 0
        %2889 = vmatpush2.bf16.msra.mxu0 %v2684
        %2890 = vmatprep.subr.bf16.mxu0 0
        %2891 = vmatpush2.bf16.msra.mxu0 %v2683
        %2892 = vmatprep.subr.bf16.mxu0 0
        %2893 = vmatpush2.bf16.msra.mxu0 %v2682
        %2894 = vmatprep.subr.bf16.mxu0 0
        %2895 = vmatpush2.bf16.msra.mxu0 %v2681
        %2896 = vmatprep.subr.bf16.mxu0 0
        %2897 = vmatpush2.bf16.msra.mxu0 %v2680
        %2898 = vmatprep.subr.bf16.mxu0 0
        %2899 = vmatpush2.bf16.msra.mxu0 %v2679
        %2900 = vmatprep.mubr.bf16.mxu0 %v915
        %2901 = vmatmul.mubr.bf16.gmra.mxu0 %v914
        %v2902 = vpop.f32.mrf.mxu0
        %v2903 = vadd.f32 0.0, %v2902
        %v2904 = vpop.f32.mrf.mxu0
        %v2905 = vpop.f32.mrf.mxu0
        %v2906 = vadd.f32 0.0, %v2905
        %v2907 = vpop.f32.mrf.mxu0
        %2908 = vmatprep.mubr.bf16.mxu0 %v917
        %2909 = vmatmul.mubr.bf16.gmra.mxu0 %v916
        %v2910 = vpop.f32.mrf.mxu0
        %v2911 = vadd.f32 0.0, %v2910
        %v2912 = vpop.f32.mrf.mxu0
        %v2913 = vpop.f32.mrf.mxu0
        %v2914 = vadd.f32 0.0, %v2913
        %v2915 = vpop.f32.mrf.mxu0
        %2916 = vmatprep.mubr.bf16.mxu0 %v919
        %2917 = vmatmul.mubr.bf16.gmra.mxu0 %v918
        %v2918 = vpop.f32.mrf.mxu0
        %v2919 = vadd.f32 0.0, %v2918
        %v2920 = vpop.f32.mrf.mxu0
        %v2921 = vpop.f32.mrf.mxu0
        %v2922 = vadd.f32 0.0, %v2921
        %v2923 = vpop.f32.mrf.mxu0
        %2924 = vmatprep.mubr.bf16.mxu0 %v921
        %2925 = vmatmul.mubr.bf16.gmra.mxu0 %v920
        %v2926 = vpop.f32.mrf.mxu0
        %v2927 = vadd.f32 0.0, %v2926
        %v2928 = vpop.f32.mrf.mxu0
        %v2929 = vpop.f32.mrf.mxu0
        %v2930 = vadd.f32 0.0, %v2929
        %v2931 = vpop.f32.mrf.mxu0
        %2932 = vmatprep.mubr.bf16.mxu0 %v923
        %2933 = vmatmul.mubr.bf16.gmra.mxu0 %v922
        %v2934 = vpop.f32.mrf.mxu0
        %v2935 = vadd.f32 0.0, %v2934
        %v2936 = vpop.f32.mrf.mxu0
        %v2937 = vpop.f32.mrf.mxu0
        %v2938 = vadd.f32 0.0, %v2937
        %v2939 = vpop.f32.mrf.mxu0
        %2940 = vmatprep.mubr.bf16.mxu0 %v925
        %2941 = vmatmul.mubr.bf16.gmra.mxu0 %v924
        %v2942 = vpop.f32.mrf.mxu0
        %v2943 = vadd.f32 0.0, %v2942
        %v2944 = vpop.f32.mrf.mxu0
        %v2945 = vpop.f32.mrf.mxu0
        %v2946 = vadd.f32 0.0, %v2945
        %v2947 = vpop.f32.mrf.mxu0
        %2948 = vmatprep.mubr.bf16.mxu0 %v927
        %2949 = vmatmul.mubr.bf16.gmra.mxu0 %v926
        %v2950 = vpop.f32.mrf.mxu0
        %v2951 = vadd.f32 0.0, %v2950
        %v2952 = vpop.f32.mrf.mxu0
        %v2953 = vpop.f32.mrf.mxu0
        %v2954 = vadd.f32 0.0, %v2953
        %v2955 = vpop.f32.mrf.mxu0
        %2956 = vmatprep.mubr.bf16.mxu0 %v929
        %2957 = vmatmul.mubr.bf16.gmra.mxu0 %v928
        %v2958 = vpop.f32.mrf.mxu0
        %v2959 = vadd.f32 0.0, %v2958
        %v2960 = vpop.f32.mrf.mxu0
        %v2961 = vpop.f32.mrf.mxu0
        %v2962 = vadd.f32 0.0, %v2961
        %v2963 = vpop.f32.mrf.mxu0
        %2964 = vmatprep.mubr.bf16.mxu0 %v931
        %2965 = vmatmul.mubr.bf16.gmra.mxu0 %v930
        %v2966 = vpop.f32.mrf.mxu0
        %v2967 = vadd.f32 0.0, %v2966
        %v2968 = vpop.f32.mrf.mxu0
        %v2969 = vpop.f32.mrf.mxu0
        %v2970 = vadd.f32 0.0, %v2969
        %v2971 = vpop.f32.mrf.mxu0
        %2972 = vmatprep.mubr.bf16.mxu0 %v933
        %2973 = vmatmul.mubr.bf16.gmra.mxu0 %v932
        %v2974 = vpop.f32.mrf.mxu0
        %v2975 = vadd.f32 0.0, %v2974
        %v2976 = vpop.f32.mrf.mxu0
        %v2977 = vpop.f32.mrf.mxu0
        %v2978 = vadd.f32 0.0, %v2977
        %v2979 = vpop.f32.mrf.mxu0
        %2980 = vmatprep.mubr.bf16.mxu0 %v935
        %2981 = vmatmul.mubr.bf16.gmra.mxu0 %v934
        %v2982 = vpop.f32.mrf.mxu0
        %v2983 = vadd.f32 0.0, %v2982
        %v2984 = vpop.f32.mrf.mxu0
        %v2985 = vpop.f32.mrf.mxu0
        %v2986 = vadd.f32 0.0, %v2985
        %v2987 = vpop.f32.mrf.mxu0
        %2988 = vmatprep.mubr.bf16.mxu0 %v937
        %2989 = vmatmul.mubr.bf16.gmra.mxu0 %v936
        %v2990 = vpop.f32.mrf.mxu0
        %v2991 = vadd.f32 0.0, %v2990
        %v2992 = vpop.f32.mrf.mxu0
        %v2993 = vpop.f32.mrf.mxu0
        %v2994 = vadd.f32 0.0, %v2993
        %v2995 = vpop.f32.mrf.mxu0
        %2996 = vmatprep.mubr.bf16.mxu0 %v939
        %2997 = vmatmul.mubr.bf16.gmra.mxu0 %v938
        %v2998 = vpop.f32.mrf.mxu0
        %v2999 = vadd.f32 0.0, %v2998
        %v3000 = vpop.f32.mrf.mxu0
        %v3001 = vpop.f32.mrf.mxu0
        %v3002 = vadd.f32 0.0, %v3001
        %v3003 = vpop.f32.mrf.mxu0
        %3004 = vmatprep.mubr.bf16.mxu0 %v941
        %3005 = vmatmul.mubr.bf16.gmra.mxu0 %v940
        %v3006 = vpop.f32.mrf.mxu0
        %v3007 = vadd.f32 0.0, %v3006
        %v3008 = vpop.f32.mrf.mxu0
        %v3009 = vpop.f32.mrf.mxu0
        %v3010 = vadd.f32 0.0, %v3009
        %v3011 = vpop.f32.mrf.mxu0
        %3012 = vmatprep.mubr.bf16.mxu0 %v943
        %3013 = vmatmul.mubr.bf16.gmra.mxu0 %v942
        %v3014 = vpop.f32.mrf.mxu0
        %v3015 = vadd.f32 0.0, %v3014
        %v3016 = vpop.f32.mrf.mxu0
        %v3017 = vpop.f32.mrf.mxu0
        %v3018 = vadd.f32 0.0, %v3017
        %v3019 = vpop.f32.mrf.mxu0
        %3020 = vmatprep.mubr.bf16.mxu0 %v945
        %3021 = vmatmul.mubr.bf16.gmra.mxu0 %v944
        %v3022 = vpop.f32.mrf.mxu0
        %v3023 = vadd.f32 0.0, %v3022
        %v3024 = vpop.f32.mrf.mxu0
        %v3025 = vpop.f32.mrf.mxu0
        %v3026 = vadd.f32 0.0, %v3025
        %v3027 = vpop.f32.mrf.mxu0
        %3028 = vdwg.mxu0
        %v3029 = vpack.c.bf16 %v2906, %v2903
        %v3030 = vpack.c.bf16 %v2914, %v2911
        %v3031 = vpack.c.bf16 %v2922, %v2919
        %v3032 = vpack.c.bf16 %v2930, %v2927
        %v3033 = vpack.c.bf16 %v2938, %v2935
        %v3034 = vpack.c.bf16 %v2946, %v2943
        %v3035 = vpack.c.bf16 %v2954, %v2951
        %v3036 = vpack.c.bf16 %v2962, %v2959
        %v3037 = vpack.c.bf16 %v2970, %v2967
        %v3038 = vpack.c.bf16 %v2978, %v2975
        %v3039 = vpack.c.bf16 %v2986, %v2983
        %v3040 = vpack.c.bf16 %v2994, %v2991
        %v3041 = vpack.c.bf16 %v3002, %v2999
        %v3042 = vpack.c.bf16 %v3010, %v3007
        %v3043 = vpack.c.bf16 %v3018, %v3015
        %v3044 = vpack.c.bf16 %v3026, %v3023
        %s3045 = scalar_lea.vmem %s4, 16
        %v3046 = vld [vmem:[%s3045] sm:$0xf]
        %v3047 = vld [vmem:[%s3045 + $0x4] sm:$0xf]
        %v3048 = vld [vmem:[%s3045 + $0x8] sm:$0xf]
        %v3049 = vld [vmem:[%s3045 + $0xc] sm:$0xf]
        %v3054 = vunpack.c.l.b16 %v3046
        %v3055 = vunpack.c.l.b16 %v3047
        %v3056 = vunpack.c.l.b16 %v3048
        %v3057 = vunpack.c.l.b16 %v3049
        %v3058 = vpack.c.b16 %v3055, %v3054
        %v3059 = vpack.c.b16 %v3057, %v3056
        %vm3062 = vcmask 261120
        %v3064 = vsel %vm3062, %v3029, 0
        %v3067 = vsel %vm3062, %v3030, 0
        %v3070 = vsel %vm3062, %v3031, 0
        %v3073 = vsel %vm3062, %v3032, 0
        %v3076 = vsel %vm3062, %v3033, 0
        %v3079 = vsel %vm3062, %v3034, 0
        %v3082 = vsel %vm3062, %v3035, 0
        %v3085 = vsel %vm3062, %v3036, 0
        %v3088 = vsel %vm3062, %v3037, 0
        %v3091 = vsel %vm3062, %v3038, 0
        %v3094 = vsel %vm3062, %v3039, 0
        %v3097 = vsel %vm3062, %v3040, 0
        %v3100 = vsel %vm3062, %v3041, 0
        %v3103 = vsel %vm3062, %v3042, 0
        %v3106 = vsel %vm3062, %v3043, 0
        %v3109 = vsel %vm3062, %v3044, 0
        %3111 = vmatprep.subr.bf16.mxu0 0
        %3112 = vmatpush1.bf16.msra.mxu0 0
        %3113 = vmatprep.subr.bf16.mxu0 0
        %3114 = vmatpush1.bf16.msra.mxu0 0
        %3115 = vmatprep.subr.bf16.mxu0 0
        %3116 = vmatpush1.bf16.msra.mxu0 0
        %3117 = vmatprep.subr.bf16.mxu0 0
        %3118 = vmatpush1.bf16.msra.mxu0 0
        %3119 = vmatprep.subr.bf16.mxu0 0
        %3120 = vmatpush1.bf16.msra.mxu0 0
        %3121 = vmatprep.subr.bf16.mxu0 0
        %3122 = vmatpush1.bf16.msra.mxu0 0
        %3123 = vmatprep.subr.bf16.mxu0 0
        %3124 = vmatpush1.bf16.msra.mxu0 %v3059
        %3125 = vmatprep.subr.bf16.mxu0 0
        %3126 = vmatpush1.bf16.msra.mxu0 %v3058
        %3127 = vmatprep.subr.bf16.mxu0 0
        %3128 = vmatpush2.bf16.msra.mxu0 0
        %3129 = vmatprep.subr.bf16.mxu0 0
        %3130 = vmatpush2.bf16.msra.mxu0 0
        %3131 = vmatprep.subr.bf16.mxu0 0
        %3132 = vmatpush2.bf16.msra.mxu0 0
        %3133 = vmatprep.subr.bf16.mxu0 0
        %3134 = vmatpush2.bf16.msra.mxu0 0
        %3135 = vmatprep.subr.bf16.mxu0 0
        %3136 = vmatpush2.bf16.msra.mxu0 0
        %3137 = vmatprep.subr.bf16.mxu0 0
        %3138 = vmatpush2.bf16.msra.mxu0 0
        %3139 = vmatprep.subr.bf16.mxu0 0
        %3140 = vmatpush2.bf16.msra.mxu0 0
        %3141 = vmatprep.subr.bf16.mxu0 0
        %3142 = vmatpush2.bf16.msra.mxu0 0
        %3143 = vmatprep.mubr.bf16.mxu0 0
        %3144 = vmatmul.mubr.bf16.gmra.mxu0 %v3064
        %v3145 = vpop.f32.mrf.mxu0
        %v3146 = vadd.f32 0.0, %v3145
        %v3147 = vpop.f32.mrf.mxu0
        %v3148 = vpop.f32.mrf.mxu0
        %v3149 = vadd.f32 0.0, %v3148
        %v3150 = vpop.f32.mrf.mxu0
        %3151 = vmatprep.mubr.bf16.mxu0 0
        %3152 = vmatmul.mubr.bf16.gmra.mxu0 %v3067
        %v3153 = vpop.f32.mrf.mxu0
        %v3154 = vadd.f32 0.0, %v3153
        %v3155 = vpop.f32.mrf.mxu0
        %v3156 = vpop.f32.mrf.mxu0
        %v3157 = vadd.f32 0.0, %v3156
        %v3158 = vpop.f32.mrf.mxu0
        %3159 = vmatprep.mubr.bf16.mxu0 0
        %3160 = vmatmul.mubr.bf16.gmra.mxu0 %v3070
        %v3161 = vpop.f32.mrf.mxu0
        %v3162 = vadd.f32 0.0, %v3161
        %v3163 = vpop.f32.mrf.mxu0
        %v3164 = vpop.f32.mrf.mxu0
        %v3165 = vadd.f32 0.0, %v3164
        %v3166 = vpop.f32.mrf.mxu0
        %3167 = vmatprep.mubr.bf16.mxu0 0
        %3168 = vmatmul.mubr.bf16.gmra.mxu0 %v3073
        %v3169 = vpop.f32.mrf.mxu0
        %v3170 = vadd.f32 0.0, %v3169
        %v3171 = vpop.f32.mrf.mxu0
        %v3172 = vpop.f32.mrf.mxu0
        %v3173 = vadd.f32 0.0, %v3172
        %v3174 = vpop.f32.mrf.mxu0
        %3175 = vmatprep.mubr.bf16.mxu0 0
        %3176 = vmatmul.mubr.bf16.gmra.mxu0 %v3076
        %v3177 = vpop.f32.mrf.mxu0
        %v3178 = vadd.f32 0.0, %v3177
        %v3179 = vpop.f32.mrf.mxu0
        %v3180 = vpop.f32.mrf.mxu0
        %v3181 = vadd.f32 0.0, %v3180
        %v3182 = vpop.f32.mrf.mxu0
        %3183 = vmatprep.mubr.bf16.mxu0 0
        %3184 = vmatmul.mubr.bf16.gmra.mxu0 %v3079
        %v3185 = vpop.f32.mrf.mxu0
        %v3186 = vadd.f32 0.0, %v3185
        %v3187 = vpop.f32.mrf.mxu0
        %v3188 = vpop.f32.mrf.mxu0
        %v3189 = vadd.f32 0.0, %v3188
        %v3190 = vpop.f32.mrf.mxu0
        %3191 = vmatprep.mubr.bf16.mxu0 0
        %3192 = vmatmul.mubr.bf16.gmra.mxu0 %v3082
        %v3193 = vpop.f32.mrf.mxu0
        %v3194 = vadd.f32 0.0, %v3193
        %v3195 = vpop.f32.mrf.mxu0
        %v3196 = vpop.f32.mrf.mxu0
        %v3197 = vadd.f32 0.0, %v3196
        %v3198 = vpop.f32.mrf.mxu0
        %3199 = vmatprep.mubr.bf16.mxu0 0
        %3200 = vmatmul.mubr.bf16.gmra.mxu0 %v3085
        %v3201 = vpop.f32.mrf.mxu0
        %v3202 = vadd.f32 0.0, %v3201
        %v3203 = vpop.f32.mrf.mxu0
        %v3204 = vpop.f32.mrf.mxu0
        %v3205 = vadd.f32 0.0, %v3204
        %v3206 = vpop.f32.mrf.mxu0
        %3207 = vmatprep.mubr.bf16.mxu0 0
        %3208 = vmatmul.mubr.bf16.gmra.mxu0 %v3088
        %v3209 = vpop.f32.mrf.mxu0
        %v3210 = vadd.f32 0.0, %v3209
        %v3211 = vpop.f32.mrf.mxu0
        %v3212 = vpop.f32.mrf.mxu0
        %v3213 = vadd.f32 0.0, %v3212
        %v3214 = vpop.f32.mrf.mxu0
        %3215 = vmatprep.mubr.bf16.mxu0 0
        %3216 = vmatmul.mubr.bf16.gmra.mxu0 %v3091
        %v3217 = vpop.f32.mrf.mxu0
        %v3218 = vadd.f32 0.0, %v3217
        %v3219 = vpop.f32.mrf.mxu0
        %v3220 = vpop.f32.mrf.mxu0
        %v3221 = vadd.f32 0.0, %v3220
        %v3222 = vpop.f32.mrf.mxu0
        %3223 = vmatprep.mubr.bf16.mxu0 0
        %3224 = vmatmul.mubr.bf16.gmra.mxu0 %v3094
        %v3225 = vpop.f32.mrf.mxu0
        %v3226 = vadd.f32 0.0, %v3225
        %v3227 = vpop.f32.mrf.mxu0
        %v3228 = vpop.f32.mrf.mxu0
        %v3229 = vadd.f32 0.0, %v3228
        %v3230 = vpop.f32.mrf.mxu0
        %3231 = vmatprep.mubr.bf16.mxu0 0
        %3232 = vmatmul.mubr.bf16.gmra.mxu0 %v3097
        %v3233 = vpop.f32.mrf.mxu0
        %v3234 = vadd.f32 0.0, %v3233
        %v3235 = vpop.f32.mrf.mxu0
        %v3236 = vpop.f32.mrf.mxu0
        %v3237 = vadd.f32 0.0, %v3236
        %v3238 = vpop.f32.mrf.mxu0
        %3239 = vmatprep.mubr.bf16.mxu0 0
        %3240 = vmatmul.mubr.bf16.gmra.mxu0 %v3100
        %v3241 = vpop.f32.mrf.mxu0
        %v3242 = vadd.f32 0.0, %v3241
        %v3243 = vpop.f32.mrf.mxu0
        %v3244 = vpop.f32.mrf.mxu0
        %v3245 = vadd.f32 0.0, %v3244
        %v3246 = vpop.f32.mrf.mxu0
        %3247 = vmatprep.mubr.bf16.mxu0 0
        %3248 = vmatmul.mubr.bf16.gmra.mxu0 %v3103
        %v3249 = vpop.f32.mrf.mxu0
        %v3250 = vadd.f32 0.0, %v3249
        %v3251 = vpop.f32.mrf.mxu0
        %v3252 = vpop.f32.mrf.mxu0
        %v3253 = vadd.f32 0.0, %v3252
        %v3254 = vpop.f32.mrf.mxu0
        %3255 = vmatprep.mubr.bf16.mxu0 0
        %3256 = vmatmul.mubr.bf16.gmra.mxu0 %v3106
        %v3257 = vpop.f32.mrf.mxu0
        %v3258 = vadd.f32 0.0, %v3257
        %v3259 = vpop.f32.mrf.mxu0
        %v3260 = vpop.f32.mrf.mxu0
        %v3261 = vadd.f32 0.0, %v3260
        %v3262 = vpop.f32.mrf.mxu0
        %3263 = vmatprep.mubr.bf16.mxu0 0
        %3264 = vmatmul.mubr.bf16.gmra.mxu0 %v3109
        %v3265 = vpop.f32.mrf.mxu0
        %v3266 = vadd.f32 0.0, %v3265
        %v3267 = vpop.f32.mrf.mxu0
        %v3268 = vpop.f32.mrf.mxu0
        %v3269 = vadd.f32 0.0, %v3268
        %v3270 = vpop.f32.mrf.mxu0
        %3271 = vdwg.mxu0
        %v3276 = vunpack.c.l.b16 %v2864
        %v3277 = vunpack.c.l.b16 %v2865
        %v3278 = vunpack.c.l.b16 %v2866
        %v3279 = vunpack.c.l.b16 %v2867
        %v3280 = vpack.c.b16 %v3277, %v3276
        %v3281 = vpack.c.b16 %v3279, %v3278
        %v3285 = vsel %vm3062, %v2848, 0
        %v3288 = vsel %vm3062, %v2849, 0
        %v3291 = vsel %vm3062, %v2850, 0
        %v3294 = vsel %vm3062, %v2851, 0
        %v3297 = vsel %vm3062, %v2852, 0
        %v3300 = vsel %vm3062, %v2853, 0
        %v3303 = vsel %vm3062, %v2854, 0
        %v3306 = vsel %vm3062, %v2855, 0
        %v3309 = vsel %vm3062, %v2856, 0
        %v3312 = vsel %vm3062, %v2857, 0
        %v3315 = vsel %vm3062, %v2858, 0
        %v3318 = vsel %vm3062, %v2859, 0
        %v3321 = vsel %vm3062, %v2860, 0
        %v3324 = vsel %vm3062, %v2861, 0
        %v3327 = vsel %vm3062, %v2862, 0
        %v3330 = vsel %vm3062, %v2863, 0
        %3332 = vmatprep.subr.bf16.mxu0 0
        %3333 = vmatpush1.bf16.msra.mxu0 0
        %3334 = vmatprep.subr.bf16.mxu0 0
        %3335 = vmatpush1.bf16.msra.mxu0 0
        %3336 = vmatprep.subr.bf16.mxu0 0
        %3337 = vmatpush1.bf16.msra.mxu0 0
        %3338 = vmatprep.subr.bf16.mxu0 0
        %3339 = vmatpush1.bf16.msra.mxu0 0
        %3340 = vmatprep.subr.bf16.mxu0 0
        %3341 = vmatpush1.bf16.msra.mxu0 0
        %3342 = vmatprep.subr.bf16.mxu0 0
        %3343 = vmatpush1.bf16.msra.mxu0 0
        %3344 = vmatprep.subr.bf16.mxu0 0
        %3345 = vmatpush1.bf16.msra.mxu0 %v3281
        %3346 = vmatprep.subr.bf16.mxu0 0
        %3347 = vmatpush1.bf16.msra.mxu0 %v3280
        %3348 = vmatprep.subr.bf16.mxu0 0
        %3349 = vmatpush2.bf16.msra.mxu0 0
        %3350 = vmatprep.subr.bf16.mxu0 0
        %3351 = vmatpush2.bf16.msra.mxu0 0
        %3352 = vmatprep.subr.bf16.mxu0 0
        %3353 = vmatpush2.bf16.msra.mxu0 0
        %3354 = vmatprep.subr.bf16.mxu0 0
        %3355 = vmatpush2.bf16.msra.mxu0 0
        %3356 = vmatprep.subr.bf16.mxu0 0
        %3357 = vmatpush2.bf16.msra.mxu0 0
        %3358 = vmatprep.subr.bf16.mxu0 0
        %3359 = vmatpush2.bf16.msra.mxu0 0
        %3360 = vmatprep.subr.bf16.mxu0 0
        %3361 = vmatpush2.bf16.msra.mxu0 0
        %3362 = vmatprep.subr.bf16.mxu0 0
        %3363 = vmatpush2.bf16.msra.mxu0 0
        %3364 = vmatprep.mubr.bf16.mxu0 0
        %3365 = vmatmul.mubr.bf16.gmra.mxu0 %v3285
        %v3366 = vpop.f32.mrf.mxu0
        %v3367 = vadd.f32 %v3146, %v3366
        %v3368 = vpop.f32.mrf.mxu0
        %v3369 = vpop.f32.mrf.mxu0
        %v3370 = vadd.f32 %v3149, %v3369
        %v3371 = vpop.f32.mrf.mxu0
        %3372 = vmatprep.mubr.bf16.mxu0 0
        %3373 = vmatmul.mubr.bf16.gmra.mxu0 %v3288
        %v3374 = vpop.f32.mrf.mxu0
        %v3375 = vadd.f32 %v3154, %v3374
        %v3376 = vpop.f32.mrf.mxu0
        %v3377 = vpop.f32.mrf.mxu0
        %v3378 = vadd.f32 %v3157, %v3377
        %v3379 = vpop.f32.mrf.mxu0
        %3380 = vmatprep.mubr.bf16.mxu0 0
        %3381 = vmatmul.mubr.bf16.gmra.mxu0 %v3291
        %v3382 = vpop.f32.mrf.mxu0
        %v3383 = vadd.f32 %v3162, %v3382
        %v3384 = vpop.f32.mrf.mxu0
        %v3385 = vpop.f32.mrf.mxu0
        %v3386 = vadd.f32 %v3165, %v3385
        %v3387 = vpop.f32.mrf.mxu0
        %3388 = vmatprep.mubr.bf16.mxu0 0
        %3389 = vmatmul.mubr.bf16.gmra.mxu0 %v3294
        %v3390 = vpop.f32.mrf.mxu0
        %v3391 = vadd.f32 %v3170, %v3390
        %v3392 = vpop.f32.mrf.mxu0
        %v3393 = vpop.f32.mrf.mxu0
        %v3394 = vadd.f32 %v3173, %v3393
        %v3395 = vpop.f32.mrf.mxu0
        %3396 = vmatprep.mubr.bf16.mxu0 0
        %3397 = vmatmul.mubr.bf16.gmra.mxu0 %v3297
        %v3398 = vpop.f32.mrf.mxu0
        %v3399 = vadd.f32 %v3178, %v3398
        %v3400 = vpop.f32.mrf.mxu0
        %v3401 = vpop.f32.mrf.mxu0
        %v3402 = vadd.f32 %v3181, %v3401
        %v3403 = vpop.f32.mrf.mxu0
        %3404 = vmatprep.mubr.bf16.mxu0 0
        %3405 = vmatmul.mubr.bf16.gmra.mxu0 %v3300
        %v3406 = vpop.f32.mrf.mxu0
        %v3407 = vadd.f32 %v3186, %v3406
        %v3408 = vpop.f32.mrf.mxu0
        %v3409 = vpop.f32.mrf.mxu0
        %v3410 = vadd.f32 %v3189, %v3409
        %v3411 = vpop.f32.mrf.mxu0
        %3412 = vmatprep.mubr.bf16.mxu0 0
        %3413 = vmatmul.mubr.bf16.gmra.mxu0 %v3303
        %v3414 = vpop.f32.mrf.mxu0
        %v3415 = vadd.f32 %v3194, %v3414
        %v3416 = vpop.f32.mrf.mxu0
        %v3417 = vpop.f32.mrf.mxu0
        %v3418 = vadd.f32 %v3197, %v3417
        %v3419 = vpop.f32.mrf.mxu0
        %3420 = vmatprep.mubr.bf16.mxu0 0
        %3421 = vmatmul.mubr.bf16.gmra.mxu0 %v3306
        %v3422 = vpop.f32.mrf.mxu0
        %v3423 = vadd.f32 %v3202, %v3422
        %v3424 = vpop.f32.mrf.mxu0
        %v3425 = vpop.f32.mrf.mxu0
        %v3426 = vadd.f32 %v3205, %v3425
        %v3427 = vpop.f32.mrf.mxu0
        %3428 = vmatprep.mubr.bf16.mxu0 0
        %3429 = vmatmul.mubr.bf16.gmra.mxu0 %v3309
        %v3430 = vpop.f32.mrf.mxu0
        %v3431 = vadd.f32 %v3210, %v3430
        %v3432 = vpop.f32.mrf.mxu0
        %v3433 = vpop.f32.mrf.mxu0
        %v3434 = vadd.f32 %v3213, %v3433
        %v3435 = vpop.f32.mrf.mxu0
        %3436 = vmatprep.mubr.bf16.mxu0 0
        %3437 = vmatmul.mubr.bf16.gmra.mxu0 %v3312
        %v3438 = vpop.f32.mrf.mxu0
        %v3439 = vadd.f32 %v3218, %v3438
        %v3440 = vpop.f32.mrf.mxu0
        %v3441 = vpop.f32.mrf.mxu0
        %v3442 = vadd.f32 %v3221, %v3441
        %v3443 = vpop.f32.mrf.mxu0
        %3444 = vmatprep.mubr.bf16.mxu0 0
        %3445 = vmatmul.mubr.bf16.gmra.mxu0 %v3315
        %v3446 = vpop.f32.mrf.mxu0
        %v3447 = vadd.f32 %v3226, %v3446
        %v3448 = vpop.f32.mrf.mxu0
        %v3449 = vpop.f32.mrf.mxu0
        %v3450 = vadd.f32 %v3229, %v3449
        %v3451 = vpop.f32.mrf.mxu0
        %3452 = vmatprep.mubr.bf16.mxu0 0
        %3453 = vmatmul.mubr.bf16.gmra.mxu0 %v3318
        %v3454 = vpop.f32.mrf.mxu0
        %v3455 = vadd.f32 %v3234, %v3454
        %v3456 = vpop.f32.mrf.mxu0
        %v3457 = vpop.f32.mrf.mxu0
        %v3458 = vadd.f32 %v3237, %v3457
        %v3459 = vpop.f32.mrf.mxu0
        %3460 = vmatprep.mubr.bf16.mxu0 0
        %3461 = vmatmul.mubr.bf16.gmra.mxu0 %v3321
        %v3462 = vpop.f32.mrf.mxu0
        %v3463 = vadd.f32 %v3242, %v3462
        %v3464 = vpop.f32.mrf.mxu0
        %v3465 = vpop.f32.mrf.mxu0
        %v3466 = vadd.f32 %v3245, %v3465
        %v3467 = vpop.f32.mrf.mxu0
        %3468 = vmatprep.mubr.bf16.mxu0 0
        %3469 = vmatmul.mubr.bf16.gmra.mxu0 %v3324
        %v3470 = vpop.f32.mrf.mxu0
        %v3471 = vadd.f32 %v3250, %v3470
        %v3472 = vpop.f32.mrf.mxu0
        %v3473 = vpop.f32.mrf.mxu0
        %v3474 = vadd.f32 %v3253, %v3473
        %v3475 = vpop.f32.mrf.mxu0
        %3476 = vmatprep.mubr.bf16.mxu0 0
        %3477 = vmatmul.mubr.bf16.gmra.mxu0 %v3327
        %v3478 = vpop.f32.mrf.mxu0
        %v3479 = vadd.f32 %v3258, %v3478
        %v3480 = vpop.f32.mrf.mxu0
        %v3481 = vpop.f32.mrf.mxu0
        %v3482 = vadd.f32 %v3261, %v3481
        %v3483 = vpop.f32.mrf.mxu0
        %3484 = vmatprep.mubr.bf16.mxu0 0
        %3485 = vmatmul.mubr.bf16.gmra.mxu0 %v3330
        %v3486 = vpop.f32.mrf.mxu0
        %v3487 = vadd.f32 %v3266, %v3486
        %v3488 = vpop.f32.mrf.mxu0
        %v3489 = vpop.f32.mrf.mxu0
        %v3490 = vadd.f32 %v3269, %v3489
        %v3491 = vpop.f32.mrf.mxu0
        %3492 = vdwg.mxu0
        %3493 = vmatprep.subr.bf16.mxu0 0
        %3494 = vmatpush1.bf16.msra.mxu0 %v2678
        %3495 = vmatprep.subr.bf16.mxu0 0
        %3496 = vmatpush1.bf16.msra.mxu0 %v2677
        %3497 = vmatprep.subr.bf16.mxu0 0
        %3498 = vmatpush1.bf16.msra.mxu0 %v2676
        %3499 = vmatprep.subr.bf16.mxu0 0
        %3500 = vmatpush1.bf16.msra.mxu0 %v2675
        %3501 = vmatprep.subr.bf16.mxu0 0
        %3502 = vmatpush1.bf16.msra.mxu0 %v2674
        %3503 = vmatprep.subr.bf16.mxu0 0
        %3504 = vmatpush1.bf16.msra.mxu0 %v2673
        %3505 = vmatprep.subr.bf16.mxu0 0
        %3506 = vmatpush1.bf16.msra.mxu0 %v2672
        %3507 = vmatprep.subr.bf16.mxu0 0
        %3508 = vmatpush1.bf16.msra.mxu0 %v2671
        %3509 = vmatprep.subr.bf16.mxu0 0
        %3510 = vmatpush2.bf16.msra.mxu0 %v2686
        %3511 = vmatprep.subr.bf16.mxu0 0
        %3512 = vmatpush2.bf16.msra.mxu0 %v2685
        %3513 = vmatprep.subr.bf16.mxu0 0
        %3514 = vmatpush2.bf16.msra.mxu0 %v2684
        %3515 = vmatprep.subr.bf16.mxu0 0
        %3516 = vmatpush2.bf16.msra.mxu0 %v2683
        %3517 = vmatprep.subr.bf16.mxu0 0
        %3518 = vmatpush2.bf16.msra.mxu0 %v2682
        %3519 = vmatprep.subr.bf16.mxu0 0
        %3520 = vmatpush2.bf16.msra.mxu0 %v2681
        %3521 = vmatprep.subr.bf16.mxu0 0
        %3522 = vmatpush2.bf16.msra.mxu0 %v2680
        %3523 = vmatprep.subr.bf16.mxu0 0
        %3524 = vmatpush2.bf16.msra.mxu0 %v2679
        %3525 = vmatprep.mubr.bf16.mxu0 %v1235
        %3526 = vmatmul.mubr.bf16.gmra.mxu0 %v1234
        %v3527 = vpop.f32.mrf.mxu0
        %v3528 = vadd.f32 0.0, %v3527
        %v3529 = vpop.f32.mrf.mxu0
        %v3530 = vpop.f32.mrf.mxu0
        %v3531 = vadd.f32 0.0, %v3530
        %v3532 = vpop.f32.mrf.mxu0
        %3533 = vmatprep.mubr.bf16.mxu0 %v1237
        %3534 = vmatmul.mubr.bf16.gmra.mxu0 %v1236
        %v3535 = vpop.f32.mrf.mxu0
        %v3536 = vadd.f32 0.0, %v3535
        %v3537 = vpop.f32.mrf.mxu0
        %v3538 = vpop.f32.mrf.mxu0
        %v3539 = vadd.f32 0.0, %v3538
        %v3540 = vpop.f32.mrf.mxu0
        %3541 = vmatprep.mubr.bf16.mxu0 %v1239
        %3542 = vmatmul.mubr.bf16.gmra.mxu0 %v1238
        %v3543 = vpop.f32.mrf.mxu0
        %v3544 = vadd.f32 0.0, %v3543
        %v3545 = vpop.f32.mrf.mxu0
        %v3546 = vpop.f32.mrf.mxu0
        %v3547 = vadd.f32 0.0, %v3546
        %v3548 = vpop.f32.mrf.mxu0
        %3549 = vmatprep.mubr.bf16.mxu0 %v1241
        %3550 = vmatmul.mubr.bf16.gmra.mxu0 %v1240
        %v3551 = vpop.f32.mrf.mxu0
        %v3552 = vadd.f32 0.0, %v3551
        %v3553 = vpop.f32.mrf.mxu0
        %v3554 = vpop.f32.mrf.mxu0
        %v3555 = vadd.f32 0.0, %v3554
        %v3556 = vpop.f32.mrf.mxu0
        %3557 = vmatprep.mubr.bf16.mxu0 %v1243
        %3558 = vmatmul.mubr.bf16.gmra.mxu0 %v1242
        %v3559 = vpop.f32.mrf.mxu0
        %v3560 = vadd.f32 0.0, %v3559
        %v3561 = vpop.f32.mrf.mxu0
        %v3562 = vpop.f32.mrf.mxu0
        %v3563 = vadd.f32 0.0, %v3562
        %v3564 = vpop.f32.mrf.mxu0
        %3565 = vmatprep.mubr.bf16.mxu0 %v1245
        %3566 = vmatmul.mubr.bf16.gmra.mxu0 %v1244
        %v3567 = vpop.f32.mrf.mxu0
        %v3568 = vadd.f32 0.0, %v3567
        %v3569 = vpop.f32.mrf.mxu0
        %v3570 = vpop.f32.mrf.mxu0
        %v3571 = vadd.f32 0.0, %v3570
        %v3572 = vpop.f32.mrf.mxu0
        %3573 = vmatprep.mubr.bf16.mxu0 %v1247
        %3574 = vmatmul.mubr.bf16.gmra.mxu0 %v1246
        %v3575 = vpop.f32.mrf.mxu0
        %v3576 = vadd.f32 0.0, %v3575
        %v3577 = vpop.f32.mrf.mxu0
        %v3578 = vpop.f32.mrf.mxu0
        %v3579 = vadd.f32 0.0, %v3578
        %v3580 = vpop.f32.mrf.mxu0
        %3581 = vmatprep.mubr.bf16.mxu0 %v1249
        %3582 = vmatmul.mubr.bf16.gmra.mxu0 %v1248
        %v3583 = vpop.f32.mrf.mxu0
        %v3584 = vadd.f32 0.0, %v3583
        %v3585 = vpop.f32.mrf.mxu0
        %v3586 = vpop.f32.mrf.mxu0
        %v3587 = vadd.f32 0.0, %v3586
        %v3588 = vpop.f32.mrf.mxu0
        %3589 = vmatprep.mubr.bf16.mxu0 %v1251
        %3590 = vmatmul.mubr.bf16.gmra.mxu0 %v1250
        %v3591 = vpop.f32.mrf.mxu0
        %v3592 = vadd.f32 0.0, %v3591
        %v3593 = vpop.f32.mrf.mxu0
        %v3594 = vpop.f32.mrf.mxu0
        %v3595 = vadd.f32 0.0, %v3594
        %v3596 = vpop.f32.mrf.mxu0
        %3597 = vmatprep.mubr.bf16.mxu0 %v1253
        %3598 = vmatmul.mubr.bf16.gmra.mxu0 %v1252
        %v3599 = vpop.f32.mrf.mxu0
        %v3600 = vadd.f32 0.0, %v3599
        %v3601 = vpop.f32.mrf.mxu0
        %v3602 = vpop.f32.mrf.mxu0
        %v3603 = vadd.f32 0.0, %v3602
        %v3604 = vpop.f32.mrf.mxu0
        %3605 = vmatprep.mubr.bf16.mxu0 %v1255
        %3606 = vmatmul.mubr.bf16.gmra.mxu0 %v1254
        %v3607 = vpop.f32.mrf.mxu0
        %v3608 = vadd.f32 0.0, %v3607
        %v3609 = vpop.f32.mrf.mxu0
        %v3610 = vpop.f32.mrf.mxu0
        %v3611 = vadd.f32 0.0, %v3610
        %v3612 = vpop.f32.mrf.mxu0
        %3613 = vmatprep.mubr.bf16.mxu0 %v1257
        %3614 = vmatmul.mubr.bf16.gmra.mxu0 %v1256
        %v3615 = vpop.f32.mrf.mxu0
        %v3616 = vadd.f32 0.0, %v3615
        %v3617 = vpop.f32.mrf.mxu0
        %v3618 = vpop.f32.mrf.mxu0
        %v3619 = vadd.f32 0.0, %v3618
        %v3620 = vpop.f32.mrf.mxu0
        %3621 = vmatprep.mubr.bf16.mxu0 %v1259
        %3622 = vmatmul.mubr.bf16.gmra.mxu0 %v1258
        %v3623 = vpop.f32.mrf.mxu0
        %v3624 = vadd.f32 0.0, %v3623
        %v3625 = vpop.f32.mrf.mxu0
        %v3626 = vpop.f32.mrf.mxu0
        %v3627 = vadd.f32 0.0, %v3626
        %v3628 = vpop.f32.mrf.mxu0
        %3629 = vmatprep.mubr.bf16.mxu0 %v1261
        %3630 = vmatmul.mubr.bf16.gmra.mxu0 %v1260
        %v3631 = vpop.f32.mrf.mxu0
        %v3632 = vadd.f32 0.0, %v3631
        %v3633 = vpop.f32.mrf.mxu0
        %v3634 = vpop.f32.mrf.mxu0
        %v3635 = vadd.f32 0.0, %v3634
        %v3636 = vpop.f32.mrf.mxu0
        %3637 = vmatprep.mubr.bf16.mxu0 %v1263
        %3638 = vmatmul.mubr.bf16.gmra.mxu0 %v1262
        %v3639 = vpop.f32.mrf.mxu0
        %v3640 = vadd.f32 0.0, %v3639
        %v3641 = vpop.f32.mrf.mxu0
        %v3642 = vpop.f32.mrf.mxu0
        %v3643 = vadd.f32 0.0, %v3642
        %v3644 = vpop.f32.mrf.mxu0
        %3645 = vmatprep.mubr.bf16.mxu0 %v1265
        %3646 = vmatmul.mubr.bf16.gmra.mxu0 %v1264
        %v3647 = vpop.f32.mrf.mxu0
        %v3648 = vadd.f32 0.0, %v3647
        %v3649 = vpop.f32.mrf.mxu0
        %v3650 = vpop.f32.mrf.mxu0
        %v3651 = vadd.f32 0.0, %v3650
        %v3652 = vpop.f32.mrf.mxu0
        %3653 = vdwg.mxu0
        %v3654 = vpack.c.bf16 %v3531, %v3528
        %v3655 = vpack.c.bf16 %v3539, %v3536
        %v3656 = vpack.c.bf16 %v3547, %v3544
        %v3657 = vpack.c.bf16 %v3555, %v3552
        %v3658 = vpack.c.bf16 %v3563, %v3560
        %v3659 = vpack.c.bf16 %v3571, %v3568
        %v3660 = vpack.c.bf16 %v3579, %v3576
        %v3661 = vpack.c.bf16 %v3587, %v3584
        %v3662 = vpack.c.bf16 %v3595, %v3592
        %v3663 = vpack.c.bf16 %v3603, %v3600
        %v3664 = vpack.c.bf16 %v3611, %v3608
        %v3665 = vpack.c.bf16 %v3619, %v3616
        %v3666 = vpack.c.bf16 %v3627, %v3624
        %v3667 = vpack.c.bf16 %v3635, %v3632
        %v3668 = vpack.c.bf16 %v3643, %v3640
        %v3669 = vpack.c.bf16 %v3651, %v3648
        %s3670 = scalar_lea.vmem %s4, 32
        %v3671 = vld [vmem:[%s3670] sm:$0xf]
        %v3672 = vld [vmem:[%s3670 + $0x4] sm:$0xf]
        %v3673 = vld [vmem:[%s3670 + $0x8] sm:$0xf]
        %v3674 = vld [vmem:[%s3670 + $0xc] sm:$0xf]
        %v3679 = vunpack.c.l.b16 %v3671
        %v3680 = vunpack.c.l.b16 %v3672
        %v3681 = vunpack.c.l.b16 %v3673
        %v3682 = vunpack.c.l.b16 %v3674
        %v3683 = vpack.c.b16 %v3680, %v3679
        %v3684 = vpack.c.b16 %v3682, %v3681
        %v3688 = vsel %vm3062, %v3654, 0
        %v3691 = vsel %vm3062, %v3655, 0
        %v3694 = vsel %vm3062, %v3656, 0
        %v3697 = vsel %vm3062, %v3657, 0
        %v3700 = vsel %vm3062, %v3658, 0
        %v3703 = vsel %vm3062, %v3659, 0
        %v3706 = vsel %vm3062, %v3660, 0
        %v3709 = vsel %vm3062, %v3661, 0
        %v3712 = vsel %vm3062, %v3662, 0
        %v3715 = vsel %vm3062, %v3663, 0
        %v3718 = vsel %vm3062, %v3664, 0
        %v3721 = vsel %vm3062, %v3665, 0
        %v3724 = vsel %vm3062, %v3666, 0
        %v3727 = vsel %vm3062, %v3667, 0
        %v3730 = vsel %vm3062, %v3668, 0
        %v3733 = vsel %vm3062, %v3669, 0
        %3735 = vmatprep.subr.bf16.mxu0 0
        %3736 = vmatpush1.bf16.msra.mxu0 0
        %3737 = vmatprep.subr.bf16.mxu0 0
        %3738 = vmatpush1.bf16.msra.mxu0 0
        %3739 = vmatprep.subr.bf16.mxu0 0
        %3740 = vmatpush1.bf16.msra.mxu0 0
        %3741 = vmatprep.subr.bf16.mxu0 0
        %3742 = vmatpush1.bf16.msra.mxu0 0
        %3743 = vmatprep.subr.bf16.mxu0 0
        %3744 = vmatpush1.bf16.msra.mxu0 0
        %3745 = vmatprep.subr.bf16.mxu0 0
        %3746 = vmatpush1.bf16.msra.mxu0 0
        %3747 = vmatprep.subr.bf16.mxu0 0
        %3748 = vmatpush1.bf16.msra.mxu0 %v3684
        %3749 = vmatprep.subr.bf16.mxu0 0
        %3750 = vmatpush1.bf16.msra.mxu0 %v3683
        %3751 = vmatprep.subr.bf16.mxu0 0
        %3752 = vmatpush2.bf16.msra.mxu0 0
        %3753 = vmatprep.subr.bf16.mxu0 0
        %3754 = vmatpush2.bf16.msra.mxu0 0
        %3755 = vmatprep.subr.bf16.mxu0 0
        %3756 = vmatpush2.bf16.msra.mxu0 0
        %3757 = vmatprep.subr.bf16.mxu0 0
        %3758 = vmatpush2.bf16.msra.mxu0 0
        %3759 = vmatprep.subr.bf16.mxu0 0
        %3760 = vmatpush2.bf16.msra.mxu0 0
        %3761 = vmatprep.subr.bf16.mxu0 0
        %3762 = vmatpush2.bf16.msra.mxu0 0
        %3763 = vmatprep.subr.bf16.mxu0 0
        %3764 = vmatpush2.bf16.msra.mxu0 0
        %3765 = vmatprep.subr.bf16.mxu0 0
        %3766 = vmatpush2.bf16.msra.mxu0 0
        %3767 = vmatprep.mubr.bf16.mxu0 0
        %3768 = vmatmul.mubr.bf16.gmra.mxu0 %v3688
        %v3769 = vpop.f32.mrf.mxu0
        %v3770 = vadd.f32 0.0, %v3769
        %v3771 = vpop.f32.mrf.mxu0
        %v3772 = vpop.f32.mrf.mxu0
        %v3773 = vadd.f32 0.0, %v3772
        %v3774 = vpop.f32.mrf.mxu0
        %3775 = vmatprep.mubr.bf16.mxu0 0
        %3776 = vmatmul.mubr.bf16.gmra.mxu0 %v3691
        %v3777 = vpop.f32.mrf.mxu0
        %v3778 = vadd.f32 0.0, %v3777
        %v3779 = vpop.f32.mrf.mxu0
        %v3780 = vpop.f32.mrf.mxu0
        %v3781 = vadd.f32 0.0, %v3780
        %v3782 = vpop.f32.mrf.mxu0
        %3783 = vmatprep.mubr.bf16.mxu0 0
        %3784 = vmatmul.mubr.bf16.gmra.mxu0 %v3694
        %v3785 = vpop.f32.mrf.mxu0
        %v3786 = vadd.f32 0.0, %v3785
        %v3787 = vpop.f32.mrf.mxu0
        %v3788 = vpop.f32.mrf.mxu0
        %v3789 = vadd.f32 0.0, %v3788
        %v3790 = vpop.f32.mrf.mxu0
        %3791 = vmatprep.mubr.bf16.mxu0 0
        %3792 = vmatmul.mubr.bf16.gmra.mxu0 %v3697
        %v3793 = vpop.f32.mrf.mxu0
        %v3794 = vadd.f32 0.0, %v3793
        %v3795 = vpop.f32.mrf.mxu0
        %v3796 = vpop.f32.mrf.mxu0
        %v3797 = vadd.f32 0.0, %v3796
        %v3798 = vpop.f32.mrf.mxu0
        %3799 = vmatprep.mubr.bf16.mxu0 0
        %3800 = vmatmul.mubr.bf16.gmra.mxu0 %v3700
        %v3801 = vpop.f32.mrf.mxu0
        %v3802 = vadd.f32 0.0, %v3801
        %v3803 = vpop.f32.mrf.mxu0
        %v3804 = vpop.f32.mrf.mxu0
        %v3805 = vadd.f32 0.0, %v3804
        %v3806 = vpop.f32.mrf.mxu0
        %3807 = vmatprep.mubr.bf16.mxu0 0
        %3808 = vmatmul.mubr.bf16.gmra.mxu0 %v3703
        %v3809 = vpop.f32.mrf.mxu0
        %v3810 = vadd.f32 0.0, %v3809
        %v3811 = vpop.f32.mrf.mxu0
        %v3812 = vpop.f32.mrf.mxu0
        %v3813 = vadd.f32 0.0, %v3812
        %v3814 = vpop.f32.mrf.mxu0
        %3815 = vmatprep.mubr.bf16.mxu0 0
        %3816 = vmatmul.mubr.bf16.gmra.mxu0 %v3706
        %v3817 = vpop.f32.mrf.mxu0
        %v3818 = vadd.f32 0.0, %v3817
        %v3819 = vpop.f32.mrf.mxu0
        %v3820 = vpop.f32.mrf.mxu0
        %v3821 = vadd.f32 0.0, %v3820
        %v3822 = vpop.f32.mrf.mxu0
        %3823 = vmatprep.mubr.bf16.mxu0 0
        %3824 = vmatmul.mubr.bf16.gmra.mxu0 %v3709
        %v3825 = vpop.f32.mrf.mxu0
        %v3826 = vadd.f32 0.0, %v3825
        %v3827 = vpop.f32.mrf.mxu0
        %v3828 = vpop.f32.mrf.mxu0
        %v3829 = vadd.f32 0.0, %v3828
        %v3830 = vpop.f32.mrf.mxu0
        %3831 = vmatprep.mubr.bf16.mxu0 0
        %3832 = vmatmul.mubr.bf16.gmra.mxu0 %v3712
        %v3833 = vpop.f32.mrf.mxu0
        %v3834 = vadd.f32 0.0, %v3833
        %v3835 = vpop.f32.mrf.mxu0
        %v3836 = vpop.f32.mrf.mxu0
        %v3837 = vadd.f32 0.0, %v3836
        %v3838 = vpop.f32.mrf.mxu0
        %3839 = vmatprep.mubr.bf16.mxu0 0
        %3840 = vmatmul.mubr.bf16.gmra.mxu0 %v3715
        %v3841 = vpop.f32.mrf.mxu0
        %v3842 = vadd.f32 0.0, %v3841
        %v3843 = vpop.f32.mrf.mxu0
        %v3844 = vpop.f32.mrf.mxu0
        %v3845 = vadd.f32 0.0, %v3844
        %v3846 = vpop.f32.mrf.mxu0
        %3847 = vmatprep.mubr.bf16.mxu0 0
        %3848 = vmatmul.mubr.bf16.gmra.mxu0 %v3718
        %v3849 = vpop.f32.mrf.mxu0
        %v3850 = vadd.f32 0.0, %v3849
        %v3851 = vpop.f32.mrf.mxu0
        %v3852 = vpop.f32.mrf.mxu0
        %v3853 = vadd.f32 0.0, %v3852
        %v3854 = vpop.f32.mrf.mxu0
        %3855 = vmatprep.mubr.bf16.mxu0 0
        %3856 = vmatmul.mubr.bf16.gmra.mxu0 %v3721
        %v3857 = vpop.f32.mrf.mxu0
        %v3858 = vadd.f32 0.0, %v3857
        %v3859 = vpop.f32.mrf.mxu0
        %v3860 = vpop.f32.mrf.mxu0
        %v3861 = vadd.f32 0.0, %v3860
        %v3862 = vpop.f32.mrf.mxu0
        %3863 = vmatprep.mubr.bf16.mxu0 0
        %3864 = vmatmul.mubr.bf16.gmra.mxu0 %v3724
        %v3865 = vpop.f32.mrf.mxu0
        %v3866 = vadd.f32 0.0, %v3865
        %v3867 = vpop.f32.mrf.mxu0
        %v3868 = vpop.f32.mrf.mxu0
        %v3869 = vadd.f32 0.0, %v3868
        %v3870 = vpop.f32.mrf.mxu0
        %3871 = vmatprep.mubr.bf16.mxu0 0
        %3872 = vmatmul.mubr.bf16.gmra.mxu0 %v3727
        %v3873 = vpop.f32.mrf.mxu0
        %v3874 = vadd.f32 0.0, %v3873
        %v3875 = vpop.f32.mrf.mxu0
        %v3876 = vpop.f32.mrf.mxu0
        %v3877 = vadd.f32 0.0, %v3876
        %v3878 = vpop.f32.mrf.mxu0
        %3879 = vmatprep.mubr.bf16.mxu0 0
        %3880 = vmatmul.mubr.bf16.gmra.mxu0 %v3730
        %v3881 = vpop.f32.mrf.mxu0
        %v3882 = vadd.f32 0.0, %v3881
        %v3883 = vpop.f32.mrf.mxu0
        %v3884 = vpop.f32.mrf.mxu0
        %v3885 = vadd.f32 0.0, %v3884
        %v3886 = vpop.f32.mrf.mxu0
        %3887 = vmatprep.mubr.bf16.mxu0 0
        %3888 = vmatmul.mubr.bf16.gmra.mxu0 %v3733
        %v3889 = vpop.f32.mrf.mxu0
        %v3890 = vadd.f32 0.0, %v3889
        %v3891 = vpop.f32.mrf.mxu0
        %v3892 = vpop.f32.mrf.mxu0
        %v3893 = vadd.f32 0.0, %v3892
        %v3894 = vpop.f32.mrf.mxu0
        %3895 = vdwg.mxu0
        %v3896 = vadd.f32 %v3367, %v3770
        %v3897 = vadd.f32 %v3370, %v3773
        %v3898 = vadd.f32 %v3375, %v3778
        %v3899 = vadd.f32 %v3378, %v3781
        %v3900 = vadd.f32 %v3383, %v3786
        %v3901 = vadd.f32 %v3386, %v3789
        %v3902 = vadd.f32 %v3391, %v3794
        %v3903 = vadd.f32 %v3394, %v3797
        %v3904 = vadd.f32 %v3399, %v3802
        %v3905 = vadd.f32 %v3402, %v3805
        %v3906 = vadd.f32 %v3407, %v3810
        %v3907 = vadd.f32 %v3410, %v3813
        %v3908 = vadd.f32 %v3415, %v3818
        %v3909 = vadd.f32 %v3418, %v3821
        %v3910 = vadd.f32 %v3423, %v3826
        %v3911 = vadd.f32 %v3426, %v3829
        %v3912 = vadd.f32 %v3431, %v3834
        %v3913 = vadd.f32 %v3434, %v3837
        %v3914 = vadd.f32 %v3439, %v3842
        %v3915 = vadd.f32 %v3442, %v3845
        %v3916 = vadd.f32 %v3447, %v3850
        %v3917 = vadd.f32 %v3450, %v3853
        %v3918 = vadd.f32 %v3455, %v3858
        %v3919 = vadd.f32 %v3458, %v3861
        %v3920 = vadd.f32 %v3463, %v3866
        %v3921 = vadd.f32 %v3466, %v3869
        %v3922 = vadd.f32 %v3471, %v3874
        %v3923 = vadd.f32 %v3474, %v3877
        %v3924 = vadd.f32 %v3479, %v3882
        %v3925 = vadd.f32 %v3482, %v3885
        %v3926 = vadd.f32 %v3487, %v3890
        %v3927 = vadd.f32 %v3490, %v3893
        %v3928 = vld [vmem:[%s5] sm:$0x1]
        %v3930 = vlaneseq
        %v3931 = vshrl.u32 %v3930, 7
        %v3932 = vsub.s32 0, %v3931
        %v3933 = vrot.slane %v3928, %v3932
        %v3935 = vadd.f32 %v3896, %v3933
        %v3936 = vadd.f32 %v3897, %v3933
        %v3937 = vadd.f32 %v3898, %v3933
        %v3938 = vadd.f32 %v3899, %v3933
        %v3939 = vadd.f32 %v3900, %v3933
        %v3940 = vadd.f32 %v3901, %v3933
        %v3941 = vadd.f32 %v3902, %v3933
        %v3942 = vadd.f32 %v3903, %v3933
        %v3943 = vadd.f32 %v3904, %v3933
        %v3944 = vadd.f32 %v3905, %v3933
        %v3945 = vadd.f32 %v3906, %v3933
        %v3946 = vadd.f32 %v3907, %v3933
        %v3947 = vadd.f32 %v3908, %v3933
        %v3948 = vadd.f32 %v3909, %v3933
        %v3949 = vadd.f32 %v3910, %v3933
        %v3950 = vadd.f32 %v3911, %v3933
        %v3951 = vadd.f32 %v3912, %v3933
        %v3952 = vadd.f32 %v3913, %v3933
        %v3953 = vadd.f32 %v3914, %v3933
        %v3954 = vadd.f32 %v3915, %v3933
        %v3955 = vadd.f32 %v3916, %v3933
        %v3956 = vadd.f32 %v3917, %v3933
        %v3957 = vadd.f32 %v3918, %v3933
        %v3958 = vadd.f32 %v3919, %v3933
        %v3959 = vadd.f32 %v3920, %v3933
        %v3960 = vadd.f32 %v3921, %v3933
        %v3961 = vadd.f32 %v3922, %v3933
        %v3962 = vadd.f32 %v3923, %v3933
        %v3963 = vadd.f32 %v3924, %v3933
        %v3964 = vadd.f32 %v3925, %v3933
        %v3965 = vadd.f32 %v3926, %v3933
        %v3966 = vadd.f32 %v3927, %v3933
        %v3967 = vmax.f32 %v3935, 0.0
        %v3968 = vmax.f32 %v3936, 0.0
        %v3969 = vmax.f32 %v3937, 0.0
        %v3970 = vmax.f32 %v3938, 0.0
        %v3971 = vmax.f32 %v3939, 0.0
        %v3972 = vmax.f32 %v3940, 0.0
        %v3973 = vmax.f32 %v3941, 0.0
        %v3974 = vmax.f32 %v3942, 0.0
        %v3975 = vmax.f32 %v3943, 0.0
        %v3976 = vmax.f32 %v3944, 0.0
        %v3977 = vmax.f32 %v3945, 0.0
        %v3978 = vmax.f32 %v3946, 0.0
        %v3979 = vmax.f32 %v3947, 0.0
        %v3980 = vmax.f32 %v3948, 0.0
        %v3981 = vmax.f32 %v3949, 0.0
        %v3982 = vmax.f32 %v3950, 0.0
        %v3983 = vmax.f32 %v3951, 0.0
        %v3984 = vmax.f32 %v3952, 0.0
        %v3985 = vmax.f32 %v3953, 0.0
        %v3986 = vmax.f32 %v3954, 0.0
        %v3987 = vmax.f32 %v3955, 0.0
        %v3988 = vmax.f32 %v3956, 0.0
        %v3989 = vmax.f32 %v3957, 0.0
        %v3990 = vmax.f32 %v3958, 0.0
        %v3991 = vmax.f32 %v3959, 0.0
        %v3992 = vmax.f32 %v3960, 0.0
        %v3993 = vmax.f32 %v3961, 0.0
        %v3994 = vmax.f32 %v3962, 0.0
        %v3995 = vmax.f32 %v3963, 0.0
        %v3996 = vmax.f32 %v3964, 0.0
        %v3997 = vmax.f32 %v3965, 0.0
        %v3998 = vmax.f32 %v3966, 0.0
        %v3999 = vlaneseq
        %v4000 = vshrl.u32 %v3999, 7
        %v4001 = vadd.s32 %v4000, 8
        %v4002 = vadd.s32 %v4000, 16
        %v4003 = vadd.s32 %v4000, 24
        %vm4004 = vcmp.ne.s32.totalorder %v4000, 0
        %vm4005 = vcmp.ne.s32.totalorder %v4001, 0
        %vm4006 = vcmp.ne.s32.totalorder %v4002, 0
        %vm4007 = vcmp.ne.s32.totalorder %v4003, 0
        %v4008 = vsel %vm4004, 1, 0
        %v4009 = vsel %vm4005, 1, 0
        %v4010 = vsel %vm4006, 1, 0
        %v4011 = vsel %vm4007, 1, 0
        %vm4012 = vcmp.eq.s32.totalorder %v4008, 1
        %vm4013 = vcmp.eq.s32.totalorder %v4009, 1
        %vm4014 = vcmp.eq.s32.totalorder %v4010, 1
        %vm4015 = vcmp.eq.s32.totalorder %v4011, 1
        %v4016 = vsel %vm4012, %v3967, 0.0
        %v4017 = vsel %vm4013, %v3968, 0.0
        %v4018 = vsel %vm4014, %v3969, 0.0
        %v4019 = vsel %vm4015, %v3970, 0.0
        %v4020 = vsel %vm4012, %v3971, 0.0
        %v4021 = vsel %vm4013, %v3972, 0.0
        %v4022 = vsel %vm4014, %v3973, 0.0
        %v4023 = vsel %vm4015, %v3974, 0.0
        %v4024 = vsel %vm4012, %v3975, 0.0
        %v4025 = vsel %vm4013, %v3976, 0.0
        %v4026 = vsel %vm4014, %v3977, 0.0
        %v4027 = vsel %vm4015, %v3978, 0.0
        %v4028 = vsel %vm4012, %v3979, 0.0
        %v4029 = vsel %vm4013, %v3980, 0.0
        %v4030 = vsel %vm4014, %v3981, 0.0
        %v4031 = vsel %vm4015, %v3982, 0.0
        %v4032 = vsel %vm4012, %v3983, 0.0
        %v4033 = vsel %vm4013, %v3984, 0.0
        %v4034 = vsel %vm4014, %v3985, 0.0
        %v4035 = vsel %vm4015, %v3986, 0.0
        %v4036 = vsel %vm4012, %v3987, 0.0
        %v4037 = vsel %vm4013, %v3988, 0.0
        %v4038 = vsel %vm4014, %v3989, 0.0
        %v4039 = vsel %vm4015, %v3990, 0.0
        %v4040 = vsel %vm4012, %v3991, 0.0
        %v4041 = vsel %vm4013, %v3992, 0.0
        %v4042 = vsel %vm4014, %v3993, 0.0
        %v4043 = vsel %vm4015, %v3994, 0.0
        %v4044 = vsel %vm4012, %v3995, 0.0
        %v4045 = vsel %vm4013, %v3996, 0.0
        %v4046 = vsel %vm4014, %v3997, 0.0
        %v4047 = vsel %vm4015, %v3998, 0.0
        %v4048 = vmax.f32 %v4016, %v4017
        %v4049 = vmax.f32 %v4048, %v4018
        %v4050 = vmax.f32 %v4049, %v4019
        %v4051 = vrot.slane %v4050, 4
        %v4052 = vmax.f32 %v4050, %v4051
        %v4053 = vrot.slane %v4052, 2
        %v4054 = vmax.f32 %v4052, %v4053
        %v4055 = vrot.slane %v4054, 1
        %v4056 = vmax.f32 %v4054, %v4055
        %v4057 = vmax.f32 %v4020, %v4021
        %v4058 = vmax.f32 %v4057, %v4022
        %v4059 = vmax.f32 %v4058, %v4023
        %v4060 = vrot.slane %v4059, 4
        %v4061 = vmax.f32 %v4059, %v4060
        %v4062 = vrot.slane %v4061, 2
        %v4063 = vmax.f32 %v4061, %v4062
        %v4064 = vrot.slane %v4063, 1
        %v4065 = vmax.f32 %v4063, %v4064
        %v4066 = vmax.f32 %v4024, %v4025
        %v4067 = vmax.f32 %v4066, %v4026
        %v4068 = vmax.f32 %v4067, %v4027
        %v4069 = vrot.slane %v4068, 4
        %v4070 = vmax.f32 %v4068, %v4069
        %v4071 = vrot.slane %v4070, 2
        %v4072 = vmax.f32 %v4070, %v4071
        %v4073 = vrot.slane %v4072, 1
        %v4074 = vmax.f32 %v4072, %v4073
        %v4075 = vmax.f32 %v4028, %v4029
        %v4076 = vmax.f32 %v4075, %v4030
        %v4077 = vmax.f32 %v4076, %v4031
        %v4078 = vrot.slane %v4077, 4
        %v4079 = vmax.f32 %v4077, %v4078
        %v4080 = vrot.slane %v4079, 2
        %v4081 = vmax.f32 %v4079, %v4080
        %v4082 = vrot.slane %v4081, 1
        %v4083 = vmax.f32 %v4081, %v4082
        %v4084 = vmax.f32 %v4032, %v4033
        %v4085 = vmax.f32 %v4084, %v4034
        %v4086 = vmax.f32 %v4085, %v4035
        %v4087 = vrot.slane %v4086, 4
        %v4088 = vmax.f32 %v4086, %v4087
        %v4089 = vrot.slane %v4088, 2
        %v4090 = vmax.f32 %v4088, %v4089
        %v4091 = vrot.slane %v4090, 1
        %v4092 = vmax.f32 %v4090, %v4091
        %v4093 = vmax.f32 %v4036, %v4037
        %v4094 = vmax.f32 %v4093, %v4038
        %v4095 = vmax.f32 %v4094, %v4039
        %v4096 = vrot.slane %v4095, 4
        %v4097 = vmax.f32 %v4095, %v4096
        %v4098 = vrot.slane %v4097, 2
        %v4099 = vmax.f32 %v4097, %v4098
        %v4100 = vrot.slane %v4099, 1
        %v4101 = vmax.f32 %v4099, %v4100
        %v4102 = vmax.f32 %v4040, %v4041
        %v4103 = vmax.f32 %v4102, %v4042
        %v4104 = vmax.f32 %v4103, %v4043
        %v4105 = vrot.slane %v4104, 4
        %v4106 = vmax.f32 %v4104, %v4105
        %v4107 = vrot.slane %v4106, 2
        %v4108 = vmax.f32 %v4106, %v4107
        %v4109 = vrot.slane %v4108, 1
        %v4110 = vmax.f32 %v4108, %v4109
        %v4111 = vmax.f32 %v4044, %v4045
        %v4112 = vmax.f32 %v4111, %v4046
        %v4113 = vmax.f32 %v4112, %v4047
        %v4114 = vrot.slane %v4113, 4
        %v4115 = vmax.f32 %v4113, %v4114
        %v4116 = vrot.slane %v4115, 2
        %v4117 = vmax.f32 %v4115, %v4116
        %v4118 = vrot.slane %v4117, 1
        %v4119 = vmax.f32 %v4117, %v4118
        %vm4128 = vcmask 1041409
        %v4129 = vsel %vm4128, %v4065, %v4056
        %vm4130 = vcmask 1042434
        %v4131 = vsel %vm4130, %v4074, %v4129
        %vm4132 = vcmask 1043459
        %v4133 = vsel %vm4132, %v4083, %v4131
        %vm4134 = vcmask 1044484
        %v4135 = vsel %vm4134, %v4092, %v4133
        %vm4136 = vcmask 1045509
        %v4137 = vsel %vm4136, %v4101, %v4135
        %vm4138 = vcmask 1046534
        %v4139 = vsel %vm4138, %v4110, %v4137
        %vm4140 = vcmask 1047559
        %v4141 = vsel %vm4140, %v4119, %v4139
        %4143 = vst [vmem:[%s259] sm:$0xff] %v4141
        %s4144 = sand.u32 %s164, 1
        %s4145 = scalar_lea.sflag [#allocation3], %s4144
        %s4146 = sand.u32 %s164, 1
        %s4147 = smul.addr %s4146, 8
        %s4148 = scalar_lea.vmem [#allocation2], %s4147
        // Predicated region
        $region45: #{tpu_custom_call.1} parent=43 // pred_check
          %p4149 = pneg %p174
        $region46: #{tpu_custom_call.1} parent=43 // pred_check_branch
          %4151 = sbr.rel (%p4149) target = $region48
        $region47: #{tpu_custom_call.1} parent=43 // pred_region
          %s4153 = ssub.s32 128, 128
          %4154 = vsyncadd %s4145, %s4153
          %s4155 = smul.addr %s20, 128
          %s4156 = scalar_lea.hbm %s6, %s4155
          %s4158 = sshll.u32 %s4148, 4
          %s4159 = int_to_ptr.vmem [resolvable:$true] %s4158
          %4161 = dma.vmem_to_hbm [thread:$0]  %s4159, 128, %s4156, %s4145
        $region48: #{tpu_custom_call.1} parent=43 // pred_fallthru
          _
      $region44: #{tpu_custom_call.1} parent=5 // pred_fallthru
        _
      %p4162 = scmp.le.s32.totalorder 2, %s15
      // Predicated region
      $region49: #{tpu_custom_call.1} parent=5 // pred_check
        %p4163 = pneg %p4162
      $region50: #{tpu_custom_call.1} parent=5 // pred_check_branch
        %4165 = sbr.rel (%p4163) target = $region52
      $region51: #{tpu_custom_call.1} parent=5 // pred_region
        %s4166 = ssub.s32 %s15, 2
        // Predicated region
        $region53: #{tpu_custom_call.1} parent=51 // pred_check
          %p4167 = pneg %p180
        $region54: #{tpu_custom_call.1} parent=51 // pred_check_branch
          %4169 = sbr.rel (%p4167) target = $region56
        $region55: #{tpu_custom_call.1} parent=51 // pred_region
          %s4170 = sand.u32 %s165, 1
          %s4171 = scalar_lea.sflag [#allocation3], %s4170
          %s4172 = sand.u32 %s165, 1
          %s4173 = smul.addr %s4172, 8
          %s4174 = scalar_lea.vmem [#allocation2], %s4173
          %4175 = dma.done %s4171, 128
        $region56: #{tpu_custom_call.1} parent=51 // pred_fallthru
          _
      $region52: #{tpu_custom_call.1} parent=5 // pred_fallthru
        _
    $region6: #{tpu_custom_call.1} parent=1 // loop_footer
      %s19 = sadd.s32 1, %s15
    $region7: #{tpu_custom_call.1} parent=1 // loop_footer_branch
      %14 = sbr.rel target = $region3
    $region8: #{tpu_custom_call.1} parent=1 // loop_exit
      _
    %4176 = vsyncpa [#allocation3], 1
    %s4177 = scalar_lea.sflag [#allocation3], 1
    %4178 = vsyncpa %s4177, 1

</llo_original>
